<compile_context>
chip_gen: v7x
topology: tpu7x:2x2x1
jax: 0.10.0
libtpu: 0.0.40
codegen_flags: <defaults>
</compile_context>

<pallas_src>
import math

import jax
import jax.numpy as jnp
from jax import lax
from jax.experimental import pallas as pl
from jax.experimental.pallas import tpu as pltpu

NEG_SLOPE = 0.01           # nn.LeakyReLU default
EPS = 1e-5                 # adaIN eps
SEQ = 16                   # sequence length; AdaptiveMaxPool2d((16,1)) is exact when N == 16
BLOCK_BATCH = 256          # default batch tile (M = Bt*16 = 4096 rows); sweep 128-512
VMEM_LIMIT_BYTES = 48 * 1024 * 1024   # explicit scoped-VMEM limit (v7x-safe)


# ----------------------------- kernel ---------------------------------------

def _leaky(x):
    return jnp.where(x > 0, x, NEG_SLOPE * x)


def generator_kernel(y_ref, e_ref, rep_ref, P_ref,
                     fc1_w_ref, fc1_b_ref,
                     r1_w1_ref, r1_b1_ref, r1_w2_ref, r1_b2_ref,
                     r2_w1_ref, r2_b1_ref, r2_w2_ref, r2_b2_ref,
                     fc4_w_ref, fc4_b_ref,
                     fc5_w_ref, fc5_b_ref,
                     out_ref):
    M = y_ref.shape[0]          # Bt * SEQ rows
    Bt = out_ref.shape[0]
    N = M // Bt

    # Exact per-row replication of the style code: rep is one-hot per row
    # (row b*N+n selects batch element b), so this reproduces e[b] bit-for-bit
    # while staying on the (mostly idle) MXU.  No wrapper-side broadcast, no
    # in-kernel sublane-broadcast relayouts.
    e_rows = jnp.dot(rep_ref[...], e_ref[...],
                     preferred_element_type=jnp.float32)               # (M, 32)

    def style(k):
        # k-th used 64-column block of psi_hat, at lane offset 0 -> no relayout.
        return jnp.dot(e_rows, P_ref[k], preferred_element_type=jnp.float32)

    def linear(x, w_ref, b_ref):
        return jnp.dot(x, w_ref[...], preferred_element_type=jnp.float32) + b_ref[...]

    def adain(feat, mean_style, std_style):
        # torch.std uses the unbiased estimator (ddof=1); eps added to std.
        mean_feat = jnp.mean(feat, axis=-1, keepdims=True)
        diff = feat - mean_feat
        var = jnp.sum(diff * diff, axis=-1, keepdims=True) * (1.0 / (feat.shape[-1] - 1))
        inv_std = pl.reciprocal(jnp.sqrt(var) + EPS, approx=True)      # EUP slot
        return std_style * diff * inv_std + mean_style

    def resblock(x, c0, c1, c2, w1_ref, b1_ref, w2_ref, b2_ref):
        res = x
        o = linear(_leaky(adain(x, c0, c1)), w1_ref, b1_ref)
        o = linear(_leaky(adain(o, c2, c0)), w2_ref, b2_ref)
        return o + res

    out = _leaky(linear(y_ref[...], fc1_w_ref, fc1_b_ref))             # (M, 64), K = 14

    c0, c1, c2 = style(0), style(1), style(2)                          # psi[0:192]
    out = resblock(out, c0, c1, c2, r1_w1_ref, r1_b1_ref, r1_w2_ref, r1_b2_ref)
    c0, c1, c2 = style(3), style(4), style(5)                          # psi[256:448]
    out = resblock(out, c0, c1, c2, r2_w1_ref, r2_b1_ref, r2_w2_ref, r2_b2_ref)

    out = _leaky(linear(out, fc4_w_ref, fc4_b_ref))                    # (M, 16)

    # nn.AdaptiveMaxPool2d((16, 1)) on the (B, N, 16) tensor with N == 16:
    # each output bin is one sequence row, pooled over the feature axis.
    pooled = jnp.max(out.reshape(Bt, N, 16), axis=-1)                  # (Bt, 16)

    # Fused fc5_1 (cols 0..2) + fc5_2 (cols 3..6) + zero pad col 7.
    # LeakyReLU only on lanes >= 3 (the pad column stays 0).
    head = jnp.dot(pooled, fc5_w_ref[...],
                   preferred_element_type=jnp.float32) + fc5_b_ref[...]  # (Bt, 8)
    lane = lax.broadcasted_iota(jnp.int32, head.shape, 1)
    out_ref[...] = jnp.where(lane >= 3, _leaky(head), head)


# ----------------------------- wrapper ---------------------------------------

def generator_forward(y, e, kparams, *, block_batch=BLOCK_BATCH):
    B, N, Fin = y.shape
    assert N == SEQ and Fin == 14 and e.shape == (B, 32)

    # Adaptive batch tile: multiple of 8, capped by block_batch.  For v7x keep
    # block_batch <= ~256 and (for full megacore use) batches with Bp//Bt >= 2.
    Bt = min(block_batch, ((B + 7) // 8) * 8)
    Bp = ((B + Bt - 1) // Bt) * Bt
    M = Bt * N

    if Bp != B:                                   # only materializes when padding is needed
        y = jnp.pad(y, ((0, Bp - B), (0, 0), (0, 0)))
        e = jnp.pad(e, ((0, Bp - B), (0, 0)))
    y_flat = y.reshape(Bp * N, Fin)               # contiguous reshape: free (bitcast) in XLA

    # One-hot replication matrix (row b*N+n -> batch element b); constant
    # index_map so it is fetched to VMEM once per call.  Size Bt*Bt*16*4 bytes.
    rep = jnp.repeat(jnp.eye(Bt, dtype=jnp.float32), N, axis=0)        # (M, Bt)

    def whole(shape):
        # Full-array block, constant index -> fetched once, VMEM-resident.
        return pl.BlockSpec(shape, lambda b, _s=shape: (0,) * len(_s))

    in_specs = [
        pl.BlockSpec((M, Fin), lambda b: (b, 0)),     # y rows (contiguous slab)
        pl.BlockSpec((Bt, 32), lambda b: (b, 0)),     # e (one row per batch element)
        whole((M, Bt)),                               # replication matrix
        whole((6, 32, 64)),                           # packed, used psi blocks of P^T
        whole((14, 64)), whole((1, 64)),              # fc1
        whole((64, 64)), whole((1, 64)), whole((64, 64)), whole((1, 64)),   # res1
        whole((64, 64)), whole((1, 64)), whole((64, 64)), whole((1, 64)),   # res2
        whole((64, 16)), whole((1, 16)),              # fc4
        whole((16, 8)), whole((1, 8)),                # fused fc5 (padded to 8 cols)
    ]
    out_specs = pl.BlockSpec((Bt, 8), lambda b: (b, 0))

    out = pl.pallas_call(
        generator_kernel,
        out_shape=jax.ShapeDtypeStruct((Bp, 8), jnp.float32),
        grid_spec=pltpu.PrefetchScalarGridSpec(
            num_scalar_prefetch=0,
            grid=(Bp // Bt,),
            in_specs=in_specs,
            out_specs=out_specs,
        ),
        compiler_params=pltpu.CompilerParams(
            dimension_semantics=("parallel",),
            vmem_limit_bytes=VMEM_LIMIT_BYTES,
        ),
    )(y_flat, e, rep, *kparams)
    return out[:B, :7]


# ------------------------- parameter construction ----------------------------

def _spectral_normalize(w, iters=50):
    # nn.utils.spectral_norm divides by (an estimate of) the largest singular
    # value; here we use a deterministic power iteration to get sigma.
    # TODO(synk): PyTorch's spectral_norm keeps a persistent random `u` vector
    # and does 1 power iteration per forward; we use the converged sigma.
    v = jnp.ones((w.shape[1],), w.dtype) / jnp.sqrt(float(w.shape[1]))
    u = w @ v
    for _ in range(iters):
        u = w @ v
        u = u / (jnp.linalg.norm(u) + 1e-12)
        v = w.T @ u
        v = v / (jnp.linalg.norm(v) + 1e-12)
    sigma = u @ (w @ v)
    return w / sigma


def _linear_init(key, in_f, out_f):
    # init_weigths: bound = 1 / sqrt(weight.size(0)) = 1 / sqrt(out_f)
    bound = 1.0 / math.sqrt(out_f)
    kw, kb = jax.random.split(key)
    w = jax.random.uniform(kw, (out_f, in_f), jnp.float32, -bound, bound)
    b = jax.random.uniform(kb, (out_f,), jnp.float32, -bound, bound)
    return w, b


def init_torch_layout_params(key):
    ks = jax.random.split(key, 9)
    p = {}
    p["P"] = 0.02 * jax.random.normal(ks[0], (64 * 8, 32), jnp.float32)
    p["fc1_w"], p["fc1_b"] = _linear_init(ks[1], 14, 64)
    for name, k1, k2 in (("r1", ks[2], ks[3]), ("r2", ks[4], ks[5])):
        w1, b1 = _linear_init(k1, 64, 64)
        w2, b2 = _linear_init(k2, 64, 64)
        p[f"{name}_w1"], p[f"{name}_b1"] = _spectral_normalize(w1), b1
        p[f"{name}_w2"], p[f"{name}_b2"] = _spectral_normalize(w2), b2
    p["fc4_w"], p["fc4_b"] = _linear_init(ks[6], 64, 16)
    p["fc51_w"], p["fc51_b"] = _linear_init(ks[7], 16, 3)
    p["fc52_w"], p["fc52_b"] = _linear_init(ks[8], 16, 4)
    return p


def pack_kernel_params(p):
    def wt(w):  # (out, in) -> (in, out)
        return jnp.asarray(w.T)

    def bt(b):  # (out,) -> (1, out)
        return jnp.asarray(b).reshape(1, -1)

    # Only the six 64-row blocks of P that are actually read:
    # res1 -> psi[0:64], [64:128], [128:192]; res2 -> psi[256:320], [320:384], [384:448].
    P = jnp.asarray(p["P"])                                      # (512, 32)
    used_blocks = (0, 1, 2, 4, 5, 6)
    Pt = jnp.stack([P[64 * i:64 * (i + 1), :].T for i in used_blocks], axis=0)  # (6, 32, 64)

    # Fused output head: cols 0..2 = fc5_1, cols 3..6 = fc5_2, col 7 = zero pad.
    fc5_w = jnp.concatenate([wt(p["fc51_w"]), wt(p["fc52_w"]),
                             jnp.zeros((16, 1), jnp.float32)], axis=1)          # (16, 8)
    fc5_b = jnp.concatenate([bt(p["fc51_b"]), bt(p["fc52_b"]),
                             jnp.zeros((1, 1), jnp.float32)], axis=1)           # (1, 8)

    return (
        Pt,
        wt(p["fc1_w"]), bt(p["fc1_b"]),
        wt(p["r1_w1"]), bt(p["r1_b1"]), wt(p["r1_w2"]), bt(p["r1_b2"]),
        wt(p["r2_w1"]), bt(p["r2_b1"]), wt(p["r2_w2"]), bt(p["r2_b2"]),
        wt(p["fc4_w"]), bt(p["fc4_b"]),
        fc5_w, fc5_b,
    )


# ----------------------------- pure-JAX reference ----------------------------

def reference_forward(y, e, p):
    def leaky(x):
        return jnp.where(x > 0, x, NEG_SLOPE * x)

    def lin(x, w, b):
        return x @ w.T + b

    def adain(f, m, s):
        sf = jnp.std(f, axis=-1, keepdims=True, ddof=1) + EPS
        mf = jnp.mean(f, axis=-1, keepdims=True)
        return s * (f - mf) / sf + m

    def resblock(x, psi_slice, w1, b1, w2, b2):
        c = [psi_slice[..., i * 64:(i + 1) * 64] for i in range(4)]
        res = x
        o = adain(x, c[0], c[1]); o = leaky(o); o = lin(o, w1, b1)
        o = adain(o, c[2], c[0]); o = leaky(o); o = lin(o, w2, b2)
        return o + res

    psi_hat = jnp.swapaxes(jnp.matmul(p["P"], e[..., None]), 1, 2)   # (B, 1, 512)
    out = leaky(lin(y, p["fc1_w"], p["fc1_b"]))
    out = resblock(out, psi_hat[..., 0:256], p["r1_w1"], p["r1_b1"], p["r1_w2"], p["r1_b2"])
    out = resblock(out, psi_hat[..., 256:512], p["r2_w1"], p["r2_b1"], p["r2_w2"], p["r2_b2"])
    out = leaky(lin(out, p["fc4_w"], p["fc4_b"]))                    # (B, 16, 16)
    pooled = jnp.max(out, axis=-1)                                   # AdaptiveMaxPool2d((16,1)), N == 16
    o1 = lin(pooled, p["fc51_w"], p["fc51_b"])
    o2 = leaky(lin(pooled, p["fc52_w"], p["fc52_b"]))
    return jnp.concatenate([o1, o2], axis=-1)


# --------------------------------- main ---------------------------------------

if __name__ == "__main__":
    key = jax.random.PRNGKey(0)
    k_y, k_e, k_p, k_y2, k_e2 = jax.random.split(key, 5)

    torch_params = init_torch_layout_params(k_p)
    kernel_params = pack_kernel_params(torch_params)

    # Small shapes consistent with the module: y (B, 16, 14), e (B, 32).
    B, N = 2, SEQ
    y = jax.random.normal(k_y, (B, N, 14), jnp.float32)
    e = jax.random.normal(k_e, (B, 32), jnp.float32)

    out = jax.block_until_ready(generator_forward(y, e, kernel_params))
    ref = reference_forward(y, e, torch_params)
    assert out.shape == (B, 7), out.shape
    # Tolerance allows for the approximate (EUP) reciprocal used inside adaIN.
    assert jnp.allclose(out, ref, atol=2e-3, rtol=2e-3), (out, ref)

    # Exercise the multi-step grid + batch-padding path with a small tile.
    B2 = 20
    y2 = jax.random.normal(k_y2, (B2, N, 14), jnp.float32)
    e2 = jax.random.normal(k_e2, (B2, 32), jnp.float32)
    out2 = jax.block_until_ready(generator_forward(y2, e2, kernel_params, block_batch=8))
    ref2 = reference_forward(y2, e2, torch_params)
    assert out2.shape == (B2, 7), out2.shape
    assert jnp.allclose(out2, ref2, atol=2e-3, rtol=2e-3), (out2, ref2)

    print("KERNEL_OK")
</pallas_src>

<mosaic_0001>
module attributes {stable_mosaic.version = 11 : i64} {
  func.func @generator_kernel(%arg0: i32, %arg1: memref<128x14xf32, #tpu.memory_space<vmem>>, %arg2: memref<8x32xf32, #tpu.memory_space<vmem>>, %arg3: memref<128x8xf32, #tpu.memory_space<vmem>>, %arg4: memref<6x32x64xf32, #tpu.memory_space<vmem>>, %arg5: memref<14x64xf32, #tpu.memory_space<vmem>>, %arg6: memref<1x64xf32, #tpu.memory_space<vmem>>, %arg7: memref<64x64xf32, #tpu.memory_space<vmem>>, %arg8: memref<1x64xf32, #tpu.memory_space<vmem>>, %arg9: memref<64x64xf32, #tpu.memory_space<vmem>>, %arg10: memref<1x64xf32, #tpu.memory_space<vmem>>, %arg11: memref<64x64xf32, #tpu.memory_space<vmem>>, %arg12: memref<1x64xf32, #tpu.memory_space<vmem>>, %arg13: memref<64x64xf32, #tpu.memory_space<vmem>>, %arg14: memref<1x64xf32, #tpu.memory_space<vmem>>, %arg15: memref<64x16xf32, #tpu.memory_space<vmem>>, %arg16: memref<1x16xf32, #tpu.memory_space<vmem>>, %arg17: memref<16x8xf32, #tpu.memory_space<vmem>>, %arg18: memref<1x8xf32, #tpu.memory_space<vmem>>, %arg19: memref<8x8xf32, #tpu.memory_space<vmem>>) attributes {dimension_semantics = [#tpu.dimension_semantics<parallel>], iteration_bounds = array<i64: 1>, scalar_prefetch = 0 : i64, scratch_operands = 0 : i64, tpu.core_type = #tpu.core_type<tc>, window_params = [{transform_indices = @transform_0, window_bounds = array<i64: 128, 14>}, {transform_indices = @transform_1, window_bounds = array<i64: 8, 32>}, {pipeline_mode = #tpu.pipeline_mode<synchronous>, transform_indices = @transform_2, window_bounds = array<i64: 128, 8>}, {pipeline_mode = #tpu.pipeline_mode<synchronous>, transform_indices = @transform_3, window_bounds = array<i64: 6, 32, 64>}, {pipeline_mode = #tpu.pipeline_mode<synchronous>, transform_indices = @transform_4, window_bounds = array<i64: 14, 64>}, {pipeline_mode = #tpu.pipeline_mode<synchronous>, transform_indices = @transform_5, window_bounds = array<i64: 1, 64>}, {pipeline_mode = #tpu.pipeline_mode<synchronous>, transform_indices = @transform_6, window_bounds = array<i64: 64, 64>}, {pipeline_mode = #tpu.pipeline_mode<synchronous>, transform_indices = @transform_7, window_bounds = array<i64: 1, 64>}, {pipeline_mode = #tpu.pipeline_mode<synchronous>, transform_indices = @transform_8, window_bounds = array<i64: 64, 64>}, {pipeline_mode = #tpu.pipeline_mode<synchronous>, transform_indices = @transform_9, window_bounds = array<i64: 1, 64>}, {pipeline_mode = #tpu.pipeline_mode<synchronous>, transform_indices = @transform_10, window_bounds = array<i64: 64, 64>}, {pipeline_mode = #tpu.pipeline_mode<synchronous>, transform_indices = @transform_11, window_bounds = array<i64: 1, 64>}, {pipeline_mode = #tpu.pipeline_mode<synchronous>, transform_indices = @transform_12, window_bounds = array<i64: 64, 64>}, {pipeline_mode = #tpu.pipeline_mode<synchronous>, transform_indices = @transform_13, window_bounds = array<i64: 1, 64>}, {pipeline_mode = #tpu.pipeline_mode<synchronous>, transform_indices = @transform_14, window_bounds = array<i64: 64, 16>}, {pipeline_mode = #tpu.pipeline_mode<synchronous>, transform_indices = @transform_15, window_bounds = array<i64: 1, 16>}, {pipeline_mode = #tpu.pipeline_mode<synchronous>, transform_indices = @transform_16, window_bounds = array<i64: 16, 8>}, {pipeline_mode = #tpu.pipeline_mode<synchronous>, transform_indices = @transform_17, window_bounds = array<i64: 1, 8>}, {transform_indices = @transform_18, window_bounds = array<i64: 8, 8>}]} {
    %c0 = arith.constant 0 : index
    %c0_0 = arith.constant 0 : index
    %0 = vector.load %arg3[%c0, %c0_0] : memref<128x8xf32, #tpu.memory_space<vmem>>, vector<128x8xf32>
    %c0_1 = arith.constant 0 : index
    %c0_2 = arith.constant 0 : index
    %1 = vector.load %arg2[%c0_1, %c0_2] : memref<8x32xf32, #tpu.memory_space<vmem>>, vector<8x32xf32>
    %cst = arith.constant dense<0.000000e+00> : vector<128x32xf32>
    %2 = tpu.matmul %0, %1, %cst {dimension_numbers = #tpu.dot_dimension_numbers<[1], [0], [0], [1], [0, 0, 1, 1], [], []>} : vector<128x8xf32>, vector<8x32xf32>, vector<128x32xf32> -> vector<128x32xf32>
    %c0_3 = arith.constant 0 : index
    %c0_4 = arith.constant 0 : index
    %3 = vector.load %arg1[%c0_3, %c0_4] : memref<128x14xf32, #tpu.memory_space<vmem>>, vector<128x14xf32>
    %c0_5 = arith.constant 0 : index
    %c0_6 = arith.constant 0 : index
    %4 = vector.load %arg5[%c0_5, %c0_6] : memref<14x64xf32, #tpu.memory_space<vmem>>, vector<14x64xf32>
    %cst_7 = arith.constant dense<0.000000e+00> : vector<128x64xf32>
    %5 = tpu.matmul %3, %4, %cst_7 {dimension_numbers = #tpu.dot_dimension_numbers<[1], [0], [0], [1], [0, 0, 1, 1], [], []>} : vector<128x14xf32>, vector<14x64xf32>, vector<128x64xf32> -> vector<128x64xf32>
    %c0_8 = arith.constant 0 : index
    %c0_9 = arith.constant 0 : index
    %6 = vector.load %arg6[%c0_8, %c0_9] : memref<1x64xf32, #tpu.memory_space<vmem>>, vector<1x64xf32>
    %7 = vector.broadcast %6 : vector<1x64xf32> to vector<128x64xf32>
    %8 = arith.addf %5, %7 : vector<128x64xf32>
    %cst_10 = arith.constant 0.000000e+00 : f32
    %9 = vector.broadcast %cst_10 : f32 to vector<128x64xf32>
    %10 = arith.cmpf ogt, %8, %9 : vector<128x64xf32>
    %cst_11 = arith.constant 0.00999999977 : f32
    %11 = vector.broadcast %cst_11 : f32 to vector<128x64xf32>
    %12 = arith.mulf %11, %8 : vector<128x64xf32>
    %13 = arith.select %10, %8, %12 : vector<128x64xi1>, vector<128x64xf32>
    %c0_12 = arith.constant 0 : index
    %c0_13 = arith.constant 0 : index
    %c0_14 = arith.constant 0 : index
    %14 = vector.load %arg4[%c0_12, %c0_13, %c0_14] : memref<6x32x64xf32, #tpu.memory_space<vmem>>, vector<1x32x64xf32>
    %15 = vector.shape_cast %14 : vector<1x32x64xf32> to vector<32x64xf32>
    %cst_15 = arith.constant dense<0.000000e+00> : vector<128x64xf32>
    %16 = tpu.matmul %2, %15, %cst_15 {dimension_numbers = #tpu.dot_dimension_numbers<[1], [0], [0], [1], [0, 0, 1, 1], [], []>} : vector<128x32xf32>, vector<32x64xf32>, vector<128x64xf32> -> vector<128x64xf32>
    %c1 = arith.constant 1 : index
    %c0_16 = arith.constant 0 : index
    %c0_17 = arith.constant 0 : index
    %17 = vector.load %arg4[%c1, %c0_16, %c0_17] : memref<6x32x64xf32, #tpu.memory_space<vmem>>, vector<1x32x64xf32>
    %18 = vector.shape_cast %17 : vector<1x32x64xf32> to vector<32x64xf32>
    %cst_18 = arith.constant dense<0.000000e+00> : vector<128x64xf32>
    %19 = tpu.matmul %2, %18, %cst_18 {dimension_numbers = #tpu.dot_dimension_numbers<[1], [0], [0], [1], [0, 0, 1, 1], [], []>} : vector<128x32xf32>, vector<32x64xf32>, vector<128x64xf32> -> vector<128x64xf32>
    %c2 = arith.constant 2 : index
    %c0_19 = arith.constant 0 : index
    %c0_20 = arith.constant 0 : index
    %20 = vector.load %arg4[%c2, %c0_19, %c0_20] : memref<6x32x64xf32, #tpu.memory_space<vmem>>, vector<1x32x64xf32>
    %21 = vector.shape_cast %20 : vector<1x32x64xf32> to vector<32x64xf32>
    %cst_21 = arith.constant dense<0.000000e+00> : vector<128x64xf32>
    %22 = tpu.matmul %2, %21, %cst_21 {dimension_numbers = #tpu.dot_dimension_numbers<[1], [0], [0], [1], [0, 0, 1, 1], [], []>} : vector<128x32xf32>, vector<32x64xf32>, vector<128x64xf32> -> vector<128x64xf32>
    %cst_22 = arith.constant dense<0.000000e+00> : vector<128xf32>
    %23 = vector.multi_reduction <add>, %13, %cst_22 [1] : vector<128x64xf32> to vector<128xf32>
    %24 = vector.shape_cast %23 : vector<128xf32> to vector<128x1xf32>
    %cst_23 = arith.constant 6.400000e+01 : f32
    %25 = vector.broadcast %cst_23 : f32 to vector<128x1xf32>
    %26 = arith.divf %24, %25 : vector<128x1xf32>
    %27 = vector.broadcast %26 : vector<128x1xf32> to vector<128x64xf32>
    %28 = arith.subf %13, %27 : vector<128x64xf32>
    %29 = arith.mulf %28, %28 : vector<128x64xf32>
    %cst_24 = arith.constant dense<0.000000e+00> : vector<128xf32>
    %30 = vector.multi_reduction <add>, %29, %cst_24 [1] : vector<128x64xf32> to vector<128xf32>
    %31 = vector.shape_cast %30 : vector<128xf32> to vector<128x1xf32>
    %cst_25 = arith.constant 0.0158730168 : f32
    %32 = vector.broadcast %cst_25 : f32 to vector<128x1xf32>
    %33 = arith.mulf %31, %32 : vector<128x1xf32>
    %34 = math.sqrt %33 : vector<128x1xf32>
    %cst_26 = arith.constant 9.99999974E-6 : f32
    %35 = vector.broadcast %cst_26 : f32 to vector<128x1xf32>
    %36 = arith.addf %34, %35 : vector<128x1xf32>
    %37 = tpu.reciprocal %36 {approx = true} : vector<128x1xf32> -> vector<128x1xf32>
    %38 = arith.mulf %19, %28 : vector<128x64xf32>
    %39 = vector.broadcast %37 : vector<128x1xf32> to vector<128x64xf32>
    %40 = arith.mulf %38, %39 : vector<128x64xf32>
    %41 = arith.addf %40, %16 : vector<128x64xf32>
    %cst_27 = arith.constant 0.000000e+00 : f32
    %42 = vector.broadcast %cst_27 : f32 to vector<128x64xf32>
    %43 = arith.cmpf ogt, %41, %42 : vector<128x64xf32>
    %cst_28 = arith.constant 0.00999999977 : f32
    %44 = vector.broadcast %cst_28 : f32 to vector<128x64xf32>
    %45 = arith.mulf %44, %41 : vector<128x64xf32>
    %46 = arith.select %43, %41, %45 : vector<128x64xi1>, vector<128x64xf32>
    %c0_29 = arith.constant 0 : index
    %c0_30 = arith.constant 0 : index
    %47 = vector.load %arg7[%c0_29, %c0_30] : memref<64x64xf32, #tpu.memory_space<vmem>>, vector<64x64xf32>
    %cst_31 = arith.constant dense<0.000000e+00> : vector<128x64xf32>
    %48 = tpu.matmul %46, %47, %cst_31 {dimension_numbers = #tpu.dot_dimension_numbers<[1], [0], [0], [1], [0, 0, 1, 1], [], []>} : vector<128x64xf32>, vector<64x64xf32>, vector<128x64xf32> -> vector<128x64xf32>
    %c0_32 = arith.constant 0 : index
    %c0_33 = arith.constant 0 : index
    %49 = vector.load %arg8[%c0_32, %c0_33] : memref<1x64xf32, #tpu.memory_space<vmem>>, vector<1x64xf32>
    %50 = vector.broadcast %49 : vector<1x64xf32> to vector<128x64xf32>
    %51 = arith.addf %48, %50 : vector<128x64xf32>
    %cst_34 = arith.constant dense<0.000000e+00> : vector<128xf32>
    %52 = vector.multi_reduction <add>, %51, %cst_34 [1] : vector<128x64xf32> to vector<128xf32>
    %53 = vector.shape_cast %52 : vector<128xf32> to vector<128x1xf32>
    %cst_35 = arith.constant 6.400000e+01 : f32
    %54 = vector.broadcast %cst_35 : f32 to vector<128x1xf32>
    %55 = arith.divf %53, %54 : vector<128x1xf32>
    %56 = vector.broadcast %55 : vector<128x1xf32> to vector<128x64xf32>
    %57 = arith.subf %51, %56 : vector<128x64xf32>
    %58 = arith.mulf %57, %57 : vector<128x64xf32>
    %cst_36 = arith.constant dense<0.000000e+00> : vector<128xf32>
    %59 = vector.multi_reduction <add>, %58, %cst_36 [1] : vector<128x64xf32> to vector<128xf32>
    %60 = vector.shape_cast %59 : vector<128xf32> to vector<128x1xf32>
    %cst_37 = arith.constant 0.0158730168 : f32
    %61 = vector.broadcast %cst_37 : f32 to vector<128x1xf32>
    %62 = arith.mulf %60, %61 : vector<128x1xf32>
    %63 = math.sqrt %62 : vector<128x1xf32>
    %cst_38 = arith.constant 9.99999974E-6 : f32
    %64 = vector.broadcast %cst_38 : f32 to vector<128x1xf32>
    %65 = arith.addf %63, %64 : vector<128x1xf32>
    %66 = tpu.reciprocal %65 {approx = true} : vector<128x1xf32> -> vector<128x1xf32>
    %67 = arith.mulf %16, %57 : vector<128x64xf32>
    %68 = vector.broadcast %66 : vector<128x1xf32> to vector<128x64xf32>
    %69 = arith.mulf %67, %68 : vector<128x64xf32>
    %70 = arith.addf %69, %22 : vector<128x64xf32>
    %cst_39 = arith.constant 0.000000e+00 : f32
    %71 = vector.broadcast %cst_39 : f32 to vector<128x64xf32>
    %72 = arith.cmpf ogt, %70, %71 : vector<128x64xf32>
    %cst_40 = arith.constant 0.00999999977 : f32
    %73 = vector.broadcast %cst_40 : f32 to vector<128x64xf32>
    %74 = arith.mulf %73, %70 : vector<128x64xf32>
    %75 = arith.select %72, %70, %74 : vector<128x64xi1>, vector<128x64xf32>
    %c0_41 = arith.constant 0 : index
    %c0_42 = arith.constant 0 : index
    %76 = vector.load %arg9[%c0_41, %c0_42] : memref<64x64xf32, #tpu.memory_space<vmem>>, vector<64x64xf32>
    %cst_43 = arith.constant dense<0.000000e+00> : vector<128x64xf32>
    %77 = tpu.matmul %75, %76, %cst_43 {dimension_numbers = #tpu.dot_dimension_numbers<[1], [0], [0], [1], [0, 0, 1, 1], [], []>} : vector<128x64xf32>, vector<64x64xf32>, vector<128x64xf32> -> vector<128x64xf32>
    %c0_44 = arith.constant 0 : index
    %c0_45 = arith.constant 0 : index
    %78 = vector.load %arg10[%c0_44, %c0_45] : memref<1x64xf32, #tpu.memory_space<vmem>>, vector<1x64xf32>
    %79 = vector.broadcast %78 : vector<1x64xf32> to vector<128x64xf32>
    %80 = arith.addf %77, %79 : vector<128x64xf32>
    %81 = arith.addf %80, %13 : vector<128x64xf32>
    %c3 = arith.constant 3 : index
    %c0_46 = arith.constant 0 : index
    %c0_47 = arith.constant 0 : index
    %82 = vector.load %arg4[%c3, %c0_46, %c0_47] : memref<6x32x64xf32, #tpu.memory_space<vmem>>, vector<1x32x64xf32>
    %83 = vector.shape_cast %82 : vector<1x32x64xf32> to vector<32x64xf32>
    %cst_48 = arith.constant dense<0.000000e+00> : vector<128x64xf32>
    %84 = tpu.matmul %2, %83, %cst_48 {dimension_numbers = #tpu.dot_dimension_numbers<[1], [0], [0], [1], [0, 0, 1, 1], [], []>} : vector<128x32xf32>, vector<32x64xf32>, vector<128x64xf32> -> vector<128x64xf32>
    %c4 = arith.constant 4 : index
    %c0_49 = arith.constant 0 : index
    %c0_50 = arith.constant 0 : index
    %85 = vector.load %arg4[%c4, %c0_49, %c0_50] : memref<6x32x64xf32, #tpu.memory_space<vmem>>, vector<1x32x64xf32>
    %86 = vector.shape_cast %85 : vector<1x32x64xf32> to vector<32x64xf32>
    %cst_51 = arith.constant dense<0.000000e+00> : vector<128x64xf32>
    %87 = tpu.matmul %2, %86, %cst_51 {dimension_numbers = #tpu.dot_dimension_numbers<[1], [0], [0], [1], [0, 0, 1, 1], [], []>} : vector<128x32xf32>, vector<32x64xf32>, vector<128x64xf32> -> vector<128x64xf32>
    %c5 = arith.constant 5 : index
    %c0_52 = arith.constant 0 : index
    %c0_53 = arith.constant 0 : index
    %88 = vector.load %arg4[%c5, %c0_52, %c0_53] : memref<6x32x64xf32, #tpu.memory_space<vmem>>, vector<1x32x64xf32>
    %89 = vector.shape_cast %88 : vector<1x32x64xf32> to vector<32x64xf32>
    %cst_54 = arith.constant dense<0.000000e+00> : vector<128x64xf32>
    %90 = tpu.matmul %2, %89, %cst_54 {dimension_numbers = #tpu.dot_dimension_numbers<[1], [0], [0], [1], [0, 0, 1, 1], [], []>} : vector<128x32xf32>, vector<32x64xf32>, vector<128x64xf32> -> vector<128x64xf32>
    %cst_55 = arith.constant dense<0.000000e+00> : vector<128xf32>
    %91 = vector.multi_reduction <add>, %81, %cst_55 [1] : vector<128x64xf32> to vector<128xf32>
    %92 = vector.shape_cast %91 : vector<128xf32> to vector<128x1xf32>
    %cst_56 = arith.constant 6.400000e+01 : f32
    %93 = vector.broadcast %cst_56 : f32 to vector<128x1xf32>
    %94 = arith.divf %92, %93 : vector<128x1xf32>
    %95 = vector.broadcast %94 : vector<128x1xf32> to vector<128x64xf32>
    %96 = arith.subf %81, %95 : vector<128x64xf32>
    %97 = arith.mulf %96, %96 : vector<128x64xf32>
    %cst_57 = arith.constant dense<0.000000e+00> : vector<128xf32>
    %98 = vector.multi_reduction <add>, %97, %cst_57 [1] : vector<128x64xf32> to vector<128xf32>
    %99 = vector.shape_cast %98 : vector<128xf32> to vector<128x1xf32>
    %cst_58 = arith.constant 0.0158730168 : f32
    %100 = vector.broadcast %cst_58 : f32 to vector<128x1xf32>
    %101 = arith.mulf %99, %100 : vector<128x1xf32>
    %102 = math.sqrt %101 : vector<128x1xf32>
    %cst_59 = arith.constant 9.99999974E-6 : f32
    %103 = vector.broadcast %cst_59 : f32 to vector<128x1xf32>
    %104 = arith.addf %102, %103 : vector<128x1xf32>
    %105 = tpu.reciprocal %104 {approx = true} : vector<128x1xf32> -> vector<128x1xf32>
    %106 = arith.mulf %87, %96 : vector<128x64xf32>
    %107 = vector.broadcast %105 : vector<128x1xf32> to vector<128x64xf32>
    %108 = arith.mulf %106, %107 : vector<128x64xf32>
    %109 = arith.addf %108, %84 : vector<128x64xf32>
    %cst_60 = arith.constant 0.000000e+00 : f32
    %110 = vector.broadcast %cst_60 : f32 to vector<128x64xf32>
    %111 = arith.cmpf ogt, %109, %110 : vector<128x64xf32>
    %cst_61 = arith.constant 0.00999999977 : f32
    %112 = vector.broadcast %cst_61 : f32 to vector<128x64xf32>
    %113 = arith.mulf %112, %109 : vector<128x64xf32>
    %114 = arith.select %111, %109, %113 : vector<128x64xi1>, vector<128x64xf32>
    %c0_62 = arith.constant 0 : index
    %c0_63 = arith.constant 0 : index
    %115 = vector.load %arg11[%c0_62, %c0_63] : memref<64x64xf32, #tpu.memory_space<vmem>>, vector<64x64xf32>
    %cst_64 = arith.constant dense<0.000000e+00> : vector<128x64xf32>
    %116 = tpu.matmul %114, %115, %cst_64 {dimension_numbers = #tpu.dot_dimension_numbers<[1], [0], [0], [1], [0, 0, 1, 1], [], []>} : vector<128x64xf32>, vector<64x64xf32>, vector<128x64xf32> -> vector<128x64xf32>
    %c0_65 = arith.constant 0 : index
    %c0_66 = arith.constant 0 : index
    %117 = vector.load %arg12[%c0_65, %c0_66] : memref<1x64xf32, #tpu.memory_space<vmem>>, vector<1x64xf32>
    %118 = vector.broadcast %117 : vector<1x64xf32> to vector<128x64xf32>
    %119 = arith.addf %116, %118 : vector<128x64xf32>
    %cst_67 = arith.constant dense<0.000000e+00> : vector<128xf32>
    %120 = vector.multi_reduction <add>, %119, %cst_67 [1] : vector<128x64xf32> to vector<128xf32>
    %121 = vector.shape_cast %120 : vector<128xf32> to vector<128x1xf32>
    %cst_68 = arith.constant 6.400000e+01 : f32
    %122 = vector.broadcast %cst_68 : f32 to vector<128x1xf32>
    %123 = arith.divf %121, %122 : vector<128x1xf32>
    %124 = vector.broadcast %123 : vector<128x1xf32> to vector<128x64xf32>
    %125 = arith.subf %119, %124 : vector<128x64xf32>
    %126 = arith.mulf %125, %125 : vector<128x64xf32>
    %cst_69 = arith.constant dense<0.000000e+00> : vector<128xf32>
    %127 = vector.multi_reduction <add>, %126, %cst_69 [1] : vector<128x64xf32> to vector<128xf32>
    %128 = vector.shape_cast %127 : vector<128xf32> to vector<128x1xf32>
    %cst_70 = arith.constant 0.0158730168 : f32
    %129 = vector.broadcast %cst_70 : f32 to vector<128x1xf32>
    %130 = arith.mulf %128, %129 : vector<128x1xf32>
    %131 = math.sqrt %130 : vector<128x1xf32>
    %cst_71 = arith.constant 9.99999974E-6 : f32
    %132 = vector.broadcast %cst_71 : f32 to vector<128x1xf32>
    %133 = arith.addf %131, %132 : vector<128x1xf32>
    %134 = tpu.reciprocal %133 {approx = true} : vector<128x1xf32> -> vector<128x1xf32>
    %135 = arith.mulf %84, %125 : vector<128x64xf32>
    %136 = vector.broadcast %134 : vector<128x1xf32> to vector<128x64xf32>
    %137 = arith.mulf %135, %136 : vector<128x64xf32>
    %138 = arith.addf %137, %90 : vector<128x64xf32>
    %cst_72 = arith.constant 0.000000e+00 : f32
    %139 = vector.broadcast %cst_72 : f32 to vector<128x64xf32>
    %140 = arith.cmpf ogt, %138, %139 : vector<128x64xf32>
    %cst_73 = arith.constant 0.00999999977 : f32
    %141 = vector.broadcast %cst_73 : f32 to vector<128x64xf32>
    %142 = arith.mulf %141, %138 : vector<128x64xf32>
    %143 = arith.select %140, %138, %142 : vector<128x64xi1>, vector<128x64xf32>
    %c0_74 = arith.constant 0 : index
    %c0_75 = arith.constant 0 : index
    %144 = vector.load %arg13[%c0_74, %c0_75] : memref<64x64xf32, #tpu.memory_space<vmem>>, vector<64x64xf32>
    %cst_76 = arith.constant dense<0.000000e+00> : vector<128x64xf32>
    %145 = tpu.matmul %143, %144, %cst_76 {dimension_numbers = #tpu.dot_dimension_numbers<[1], [0], [0], [1], [0, 0, 1, 1], [], []>} : vector<128x64xf32>, vector<64x64xf32>, vector<128x64xf32> -> vector<128x64xf32>
    %c0_77 = arith.constant 0 : index
    %c0_78 = arith.constant 0 : index
    %146 = vector.load %arg14[%c0_77, %c0_78] : memref<1x64xf32, #tpu.memory_space<vmem>>, vector<1x64xf32>
    %147 = vector.broadcast %146 : vector<1x64xf32> to vector<128x64xf32>
    %148 = arith.addf %145, %147 : vector<128x64xf32>
    %149 = arith.addf %148, %81 : vector<128x64xf32>
    %c0_79 = arith.constant 0 : index
    %c0_80 = arith.constant 0 : index
    %150 = vector.load %arg15[%c0_79, %c0_80] : memref<64x16xf32, #tpu.memory_space<vmem>>, vector<64x16xf32>
    %cst_81 = arith.constant dense<0.000000e+00> : vector<128x16xf32>
    %151 = tpu.matmul %149, %150, %cst_81 {dimension_numbers = #tpu.dot_dimension_numbers<[1], [0], [0], [1], [0, 0, 1, 1], [], []>} : vector<128x64xf32>, vector<64x16xf32>, vector<128x16xf32> -> vector<128x16xf32>
    %c0_82 = arith.constant 0 : index
    %c0_83 = arith.constant 0 : index
    %152 = vector.load %arg16[%c0_82, %c0_83] : memref<1x16xf32, #tpu.memory_space<vmem>>, vector<1x16xf32>
    %153 = vector.broadcast %152 : vector<1x16xf32> to vector<128x16xf32>
    %154 = arith.addf %151, %153 : vector<128x16xf32>
    %cst_84 = arith.constant 0.000000e+00 : f32
    %155 = vector.broadcast %cst_84 : f32 to vector<128x16xf32>
    %156 = arith.cmpf ogt, %154, %155 : vector<128x16xf32>
    %cst_85 = arith.constant 0.00999999977 : f32
    %157 = vector.broadcast %cst_85 : f32 to vector<128x16xf32>
    %158 = arith.mulf %157, %154 : vector<128x16xf32>
    %159 = arith.select %156, %154, %158 : vector<128x16xi1>, vector<128x16xf32>
    %160 = vector.shape_cast %159 : vector<128x16xf32> to vector<8x16x16xf32>
    %cst_86 = arith.constant dense<0xFF800000> : vector<8x16xf32>
    %161 = vector.multi_reduction <maximumf>, %160, %cst_86 [2] : vector<8x16x16xf32> to vector<8x16xf32>
    %c0_87 = arith.constant 0 : index
    %c0_88 = arith.constant 0 : index
    %162 = vector.load %arg17[%c0_87, %c0_88] : memref<16x8xf32, #tpu.memory_space<vmem>>, vector<16x8xf32>
    %cst_89 = arith.constant dense<0.000000e+00> : vector<8x8xf32>
    %163 = tpu.matmul %161, %162, %cst_89 {dimension_numbers = #tpu.dot_dimension_numbers<[1], [0], [0], [1], [0, 0, 1, 1], [], []>} : vector<8x16xf32>, vector<16x8xf32>, vector<8x8xf32> -> vector<8x8xf32>
    %c0_90 = arith.constant 0 : index
    %c0_91 = arith.constant 0 : index
    %164 = vector.load %arg18[%c0_90, %c0_91] : memref<1x8xf32, #tpu.memory_space<vmem>>, vector<1x8xf32>
    %165 = vector.broadcast %164 : vector<1x8xf32> to vector<8x8xf32>
    %166 = arith.addf %163, %165 : vector<8x8xf32>
    %167 = tpu.iota {dimensions = array<i32: 1>} : vector<8x8xi32>
    %c3_i32 = arith.constant 3 : i32
    %168 = vector.broadcast %c3_i32 : i32 to vector<8x8xi32>
    %169 = arith.cmpi sge, %167, %168 : vector<8x8xi32>
    %cst_92 = arith.constant 0.000000e+00 : f32
    %170 = vector.broadcast %cst_92 : f32 to vector<8x8xf32>
    %171 = arith.cmpf ogt, %166, %170 : vector<8x8xf32>
    %cst_93 = arith.constant 0.00999999977 : f32
    %172 = vector.broadcast %cst_93 : f32 to vector<8x8xf32>
    %173 = arith.mulf %172, %166 : vector<8x8xf32>
    %174 = arith.select %171, %166, %173 : vector<8x8xi1>, vector<8x8xf32>
    %175 = arith.select %169, %174, %166 : vector<8x8xi1>, vector<8x8xf32>
    %c0_94 = arith.constant 0 : index
    %c0_95 = arith.constant 0 : index
    %176 = vector.load %arg19[%c0_94, %c0_95] : memref<8x8xf32, #tpu.memory_space<vmem>>, vector<8x8xf32>
    tpu.vector_store %arg19[%c0_94, %c0_95], %175 {strides = array<i32>} : memref<8x8xf32, #tpu.memory_space<vmem>>, vector<8x8xf32>,
    return
  }
  func.func @transform_0(%arg0: i32) -> (i32, i32) {
    %c0_i32 = arith.constant 0 : i32
    %c0_i32_0 = arith.constant 0 : i32
    return %arg0, %c0_i32 : i32, i32
  }
  func.func @transform_1(%arg0: i32) -> (i32, i32) {
    %c0_i32 = arith.constant 0 : i32
    %c0_i32_0 = arith.constant 0 : i32
    return %arg0, %c0_i32 : i32, i32
  }
  func.func @transform_2(%arg0: i32) -> (i32, i32) {
    %c0_i32 = arith.constant 0 : i32
    %c0_i32_0 = arith.constant 0 : i32
    %c0_i32_1 = arith.constant 0 : i32
    return %c0_i32, %c0_i32_0 : i32, i32
  }
  func.func @transform_3(%arg0: i32) -> (i32, i32, i32) {
    %c0_i32 = arith.constant 0 : i32
    %c0_i32_0 = arith.constant 0 : i32
    %c0_i32_1 = arith.constant 0 : i32
    %c0_i32_2 = arith.constant 0 : i32
    return %c0_i32, %c0_i32_0, %c0_i32_1 : i32, i32, i32
  }
  func.func @transform_4(%arg0: i32) -> (i32, i32) {
    %c0_i32 = arith.constant 0 : i32
    %c0_i32_0 = arith.constant 0 : i32
    %c0_i32_1 = arith.constant 0 : i32
    return %c0_i32, %c0_i32_0 : i32, i32
  }
  func.func @transform_5(%arg0: i32) -> (i32, i32) {
    %c0_i32 = arith.constant 0 : i32
    %c0_i32_0 = arith.constant 0 : i32
    %c0_i32_1 = arith.constant 0 : i32
    return %c0_i32, %c0_i32_0 : i32, i32
  }
  func.func @transform_6(%arg0: i32) -> (i32, i32) {
    %c0_i32 = arith.constant 0 : i32
    %c0_i32_0 = arith.constant 0 : i32
    %c0_i32_1 = arith.constant 0 : i32
    return %c0_i32, %c0_i32_0 : i32, i32
  }
  func.func @transform_7(%arg0: i32) -> (i32, i32) {
    %c0_i32 = arith.constant 0 : i32
    %c0_i32_0 = arith.constant 0 : i32
    %c0_i32_1 = arith.constant 0 : i32
    return %c0_i32, %c0_i32_0 : i32, i32
  }
  func.func @transform_8(%arg0: i32) -> (i32, i32) {
    %c0_i32 = arith.constant 0 : i32
    %c0_i32_0 = arith.constant 0 : i32
    %c0_i32_1 = arith.constant 0 : i32
    return %c0_i32, %c0_i32_0 : i32, i32
  }
  func.func @transform_9(%arg0: i32) -> (i32, i32) {
    %c0_i32 = arith.constant 0 : i32
    %c0_i32_0 = arith.constant 0 : i32
    %c0_i32_1 = arith.constant 0 : i32
    return %c0_i32, %c0_i32_0 : i32, i32
  }
  func.func @transform_10(%arg0: i32) -> (i32, i32) {
    %c0_i32 = arith.constant 0 : i32
    %c0_i32_0 = arith.constant 0 : i32
    %c0_i32_1 = arith.constant 0 : i32
    return %c0_i32, %c0_i32_0 : i32, i32
  }
  func.func @transform_11(%arg0: i32) -> (i32, i32) {
    %c0_i32 = arith.constant 0 : i32
    %c0_i32_0 = arith.constant 0 : i32
    %c0_i32_1 = arith.constant 0 : i32
    return %c0_i32, %c0_i32_0 : i32, i32
  }
  func.func @transform_12(%arg0: i32) -> (i32, i32) {
    %c0_i32 = arith.constant 0 : i32
    %c0_i32_0 = arith.constant 0 : i32
    %c0_i32_1 = arith.constant 0 : i32
    return %c0_i32, %c0_i32_0 : i32, i32
  }
  func.func @transform_13(%arg0: i32) -> (i32, i32) {
    %c0_i32 = arith.constant 0 : i32
    %c0_i32_0 = arith.constant 0 : i32
    %c0_i32_1 = arith.constant 0 : i32
    return %c0_i32, %c0_i32_0 : i32, i32
  }
  func.func @transform_14(%arg0: i32) -> (i32, i32) {
    %c0_i32 = arith.constant 0 : i32
    %c0_i32_0 = arith.constant 0 : i32
    %c0_i32_1 = arith.constant 0 : i32
    return %c0_i32, %c0_i32_0 : i32, i32
  }
  func.func @transform_15(%arg0: i32) -> (i32, i32) {
    %c0_i32 = arith.constant 0 : i32
    %c0_i32_0 = arith.constant 0 : i32
    %c0_i32_1 = arith.constant 0 : i32
    return %c0_i32, %c0_i32_0 : i32, i32
  }
  func.func @transform_16(%arg0: i32) -> (i32, i32) {
    %c0_i32 = arith.constant 0 : i32
    %c0_i32_0 = arith.constant 0 : i32
    %c0_i32_1 = arith.constant 0 : i32
    return %c0_i32, %c0_i32_0 : i32, i32
  }
  func.func @transform_17(%arg0: i32) -> (i32, i32) {
    %c0_i32 = arith.constant 0 : i32
    %c0_i32_0 = arith.constant 0 : i32
    %c0_i32_1 = arith.constant 0 : i32
    return %c0_i32, %c0_i32_0 : i32, i32
  }
  func.func @transform_18(%arg0: i32) -> (i32, i32) {
    %c0_i32 = arith.constant 0 : i32
    %c0_i32_0 = arith.constant 0 : i32
    return %arg0, %c0_i32 : i32, i32
  }
}

</mosaic_0001>

<llo_original>
// kernel: tpu_custom_call.1
$region0: #{tpu_custom_call.1}
  #allocation0 [shape = 'u32[]', space=smem, size = 0x4, offset = 0x4, fixed_abs, tag = 'smem constant byte address 0x4 - core index']
  #allocation1 [shape = 'u32[144,128]{1,0:T(1,128)}', space=vmem, size = 0x12000, scoped, tag = 'internal scratch']
  %s0 = inlined_call_operand.vmem [shape: f32[128,14], index: 0, kind: input, shape index: {}]
  %s1 = inlined_call_operand.hbm [shape: f32[8,32], index: 1, kind: input, shape index: {}]
  %s2 = inlined_call_operand.vmem [shape: f32[128,8], index: 2, kind: input, shape index: {}]
  %s3 = inlined_call_operand.vmem [shape: f32[6,32,64], index: 3, kind: input, shape index: {}]
  %s4 = inlined_call_operand.hbm [shape: f32[14,64], index: 4, kind: input, shape index: {}]
  %s5 = inlined_call_operand.vmem [shape: f32[1,64], index: 5, kind: input, shape index: {}]
  %s6 = inlined_call_operand.vmem [shape: f32[64,64], index: 6, kind: input, shape index: {}]
  %s7 = inlined_call_operand.vmem [shape: f32[1,64], index: 7, kind: input, shape index: {}]
  %s8 = inlined_call_operand.vmem [shape: f32[64,64], index: 8, kind: input, shape index: {}]
  %s9 = inlined_call_operand.vmem [shape: f32[1,64], index: 9, kind: input, shape index: {}]
  %s10 = inlined_call_operand.vmem [shape: f32[64,64], index: 10, kind: input, shape index: {}]
  %s11 = inlined_call_operand.vmem [shape: f32[1,64], index: 11, kind: input, shape index: {}]
  %s12 = inlined_call_operand.hbm [shape: f32[64,64], index: 12, kind: input, shape index: {}]
  %s13 = inlined_call_operand.vmem [shape: f32[1,64], index: 13, kind: input, shape index: {}]
  %s14 = inlined_call_operand.vmem [shape: f32[64,16], index: 14, kind: input, shape index: {}]
  %s15 = inlined_call_operand.vmem [shape: f32[1,16], index: 15, kind: input, shape index: {}]
  %s16 = inlined_call_operand.vmem [shape: f32[16,8], index: 16, kind: input, shape index: {}]
  %s17 = inlined_call_operand.vmem [shape: f32[1,8], index: 17, kind: input, shape index: {}]
  %s18 = inlined_call_operand.hbm [shape: f32[8,8], index: 18, kind: output, shape index: {}]
  %s19 = sld [smem:[#allocation0]]
  $region94: #{tpu_custom_call.1} parent=0
    _
  %s21 = ssub.s32 1, %s19
  %s22 = scalar_select 0, %s21, %s19
  $region1: #{tpu_custom_call.1} parent=0
    #allocation2 [shape = 'u8[4096]{0}', space=vmem, size = 0x1000, scoped, tag = 'input window, operand 1, single buffered']
    #allocation3 [shape = 's32[1]{0}', space=sflag, size = 0x4, scoped, tag = 'scoped memory for tpu_custom_call.1']
    #allocation4 [shape = 's32[1]{0}', space=sflag, size = 0x4, scoped, tag = 'scoped memory for tpu_custom_call.1']
    #allocation5 [shape = 'u8[8192]{0}', space=vmem, size = 0x2000, scoped, tag = 'input window, operand 4, single buffered']
    #allocation6 [shape = 's32[1]{0}', space=sflag, size = 0x4, scoped, tag = 'scoped memory for tpu_custom_call.1']
    #allocation7 [shape = 'u8[32768]{0}', space=vmem, size = 0x8000, scoped, tag = 'input window, operand 12, single buffered']
    #allocation8 [shape = 'u8[4096]{0}', space=vmem, size = 0x1000, scoped, tag = 'output window, operand 0, single buffered']
    %23 = vsyncpa [#allocation3], 0
    %24 = vsyncpa [#allocation6], 0
    %25 = vsyncpa [#allocation4], 0
    // Predicated region
    $region2: #{tpu_custom_call.1} parent=1 // pred_check
      _
    $region3: #{tpu_custom_call.1} parent=1 // pred_check_branch
      %27 = sbr.rel (0) target = $region5
    $region4: #{tpu_custom_call.1} parent=1 // pred_region
      _
    $region5: #{tpu_custom_call.1} parent=1 // pred_fallthru
      _
    // Predicated region
    $region6: #{tpu_custom_call.1} parent=1 // pred_check
      _
    $region7: #{tpu_custom_call.1} parent=1 // pred_check_branch
      %29 = sbr.rel (0) target = $region9
    $region8: #{tpu_custom_call.1} parent=1 // pred_region
      %s31 = ssub.s32 128, 128
      %32 = vsyncadd [#allocation3], %s31
      %s34 = sshll.u32 [#allocation2], 4
      %s35 = int_to_ptr.vmem [resolvable:$true] %s34
      %37 = dma.hbm_to_vmem [thread:$0]  %s1, 128, %s35, [#allocation3]
    $region9: #{tpu_custom_call.1} parent=1 // pred_fallthru
      _
    // Predicated region
    $region10: #{tpu_custom_call.1} parent=1 // pred_check
      _
    $region11: #{tpu_custom_call.1} parent=1 // pred_check_branch
      %39 = sbr.rel (0) target = $region13
    $region12: #{tpu_custom_call.1} parent=1 // pred_region
      _
    $region13: #{tpu_custom_call.1} parent=1 // pred_fallthru
      _
    // Predicated region
    $region14: #{tpu_custom_call.1} parent=1 // pred_check
      _
    $region15: #{tpu_custom_call.1} parent=1 // pred_check_branch
      %41 = sbr.rel (0) target = $region17
    $region16: #{tpu_custom_call.1} parent=1 // pred_region
      _
    $region17: #{tpu_custom_call.1} parent=1 // pred_fallthru
      _
    // Predicated region
    $region18: #{tpu_custom_call.1} parent=1 // pred_check
      _
    $region19: #{tpu_custom_call.1} parent=1 // pred_check_branch
      %43 = sbr.rel (0) target = $region21
    $region20: #{tpu_custom_call.1} parent=1 // pred_region
      %s45 = ssub.s32 256, 256
      %46 = vsyncadd [#allocation6], %s45
      %s47 = sshll.u32 [#allocation5], 4
      %s48 = int_to_ptr.vmem [resolvable:$true] %s47
      %53 = dma.hbm_to_vmem [thread:$0]  %s4, 256, %s48, [#allocation6], 128, 128, 8
    $region21: #{tpu_custom_call.1} parent=1 // pred_fallthru
      _
    // Predicated region
    $region22: #{tpu_custom_call.1} parent=1 // pred_check
      _
    $region23: #{tpu_custom_call.1} parent=1 // pred_check_branch
      %55 = sbr.rel (0) target = $region25
    $region24: #{tpu_custom_call.1} parent=1 // pred_region
      _
    $region25: #{tpu_custom_call.1} parent=1 // pred_fallthru
      _
    // Predicated region
    $region26: #{tpu_custom_call.1} parent=1 // pred_check
      _
    $region27: #{tpu_custom_call.1} parent=1 // pred_check_branch
      %57 = sbr.rel (0) target = $region29
    $region28: #{tpu_custom_call.1} parent=1 // pred_region
      _
    $region29: #{tpu_custom_call.1} parent=1 // pred_fallthru
      _
    // Predicated region
    $region30: #{tpu_custom_call.1} parent=1 // pred_check
      _
    $region31: #{tpu_custom_call.1} parent=1 // pred_check_branch
      %59 = sbr.rel (0) target = $region33
    $region32: #{tpu_custom_call.1} parent=1 // pred_region
      _
    $region33: #{tpu_custom_call.1} parent=1 // pred_fallthru
      _
    // Predicated region
    $region34: #{tpu_custom_call.1} parent=1 // pred_check
      _
    $region35: #{tpu_custom_call.1} parent=1 // pred_check_branch
      %61 = sbr.rel (0) target = $region37
    $region36: #{tpu_custom_call.1} parent=1 // pred_region
      _
    $region37: #{tpu_custom_call.1} parent=1 // pred_fallthru
      _
    // Predicated region
    $region38: #{tpu_custom_call.1} parent=1 // pred_check
      _
    $region39: #{tpu_custom_call.1} parent=1 // pred_check_branch
      %63 = sbr.rel (0) target = $region41
    $region40: #{tpu_custom_call.1} parent=1 // pred_region
      _
    $region41: #{tpu_custom_call.1} parent=1 // pred_fallthru
      _
    // Predicated region
    $region42: #{tpu_custom_call.1} parent=1 // pred_check
      _
    $region43: #{tpu_custom_call.1} parent=1 // pred_check_branch
      %65 = sbr.rel (0) target = $region45
    $region44: #{tpu_custom_call.1} parent=1 // pred_region
      _
    $region45: #{tpu_custom_call.1} parent=1 // pred_fallthru
      _
    // Predicated region
    $region46: #{tpu_custom_call.1} parent=1 // pred_check
      _
    $region47: #{tpu_custom_call.1} parent=1 // pred_check_branch
      %67 = sbr.rel (0) target = $region49
    $region48: #{tpu_custom_call.1} parent=1 // pred_region
      _
    $region49: #{tpu_custom_call.1} parent=1 // pred_fallthru
      _
    // Predicated region
    $region50: #{tpu_custom_call.1} parent=1 // pred_check
      _
    $region51: #{tpu_custom_call.1} parent=1 // pred_check_branch
      %69 = sbr.rel (0) target = $region53
    $region52: #{tpu_custom_call.1} parent=1 // pred_region
      %s71 = ssub.s32 1024, 1024
      %72 = vsyncadd [#allocation6], %s71
      %s73 = sshll.u32 [#allocation7], 4
      %s74 = int_to_ptr.vmem [resolvable:$true] %s73
      %79 = dma.hbm_to_vmem [thread:$0]  %s12, 1024, %s74, [#allocation6], 128, 128, 8
    $region53: #{tpu_custom_call.1} parent=1 // pred_fallthru
      _
    // Predicated region
    $region54: #{tpu_custom_call.1} parent=1 // pred_check
      _
    $region55: #{tpu_custom_call.1} parent=1 // pred_check_branch
      %81 = sbr.rel (0) target = $region57
    $region56: #{tpu_custom_call.1} parent=1 // pred_region
      _
    $region57: #{tpu_custom_call.1} parent=1 // pred_fallthru
      _
    // Predicated region
    $region58: #{tpu_custom_call.1} parent=1 // pred_check
      _
    $region59: #{tpu_custom_call.1} parent=1 // pred_check_branch
      %83 = sbr.rel (0) target = $region61
    $region60: #{tpu_custom_call.1} parent=1 // pred_region
      _
    $region61: #{tpu_custom_call.1} parent=1 // pred_fallthru
      _
    // Predicated region
    $region62: #{tpu_custom_call.1} parent=1 // pred_check
      _
    $region63: #{tpu_custom_call.1} parent=1 // pred_check_branch
      %85 = sbr.rel (0) target = $region65
    $region64: #{tpu_custom_call.1} parent=1 // pred_region
      _
    $region65: #{tpu_custom_call.1} parent=1 // pred_fallthru
      _
    // Predicated region
    $region66: #{tpu_custom_call.1} parent=1 // pred_check
      _
    $region67: #{tpu_custom_call.1} parent=1 // pred_check_branch
      %87 = sbr.rel (0) target = $region69
    $region68: #{tpu_custom_call.1} parent=1 // pred_region
      _
    $region69: #{tpu_custom_call.1} parent=1 // pred_fallthru
      _
    // Predicated region
    $region70: #{tpu_custom_call.1} parent=1 // pred_check
      _
    $region71: #{tpu_custom_call.1} parent=1 // pred_check_branch
      %89 = sbr.rel (0) target = $region73
    $region72: #{tpu_custom_call.1} parent=1 // pred_region
      _
    $region73: #{tpu_custom_call.1} parent=1 // pred_fallthru
      _
    // Predicated region
    $region74: #{tpu_custom_call.1} parent=1 // pred_check
      _
    $region75: #{tpu_custom_call.1} parent=1 // pred_check_branch
      %91 = sbr.rel (0) target = $region77
    $region76: #{tpu_custom_call.1} parent=1 // pred_region
      %92 = dma.done [#allocation3], 128
    $region77: #{tpu_custom_call.1} parent=1 // pred_fallthru
      _
    // Predicated region
    $region78: #{tpu_custom_call.1} parent=1 // pred_check
      _
    $region79: #{tpu_custom_call.1} parent=1 // pred_check_branch
      %94 = sbr.rel (0) target = $region81
    $region80: #{tpu_custom_call.1} parent=1 // pred_region
      %95 = dma.done [#allocation6], 256
    $region81: #{tpu_custom_call.1} parent=1 // pred_fallthru
      _
    // Predicated region
    $region82: #{tpu_custom_call.1} parent=1 // pred_check
      _
    $region83: #{tpu_custom_call.1} parent=1 // pred_check_branch
      %97 = sbr.rel (0) target = $region85
    $region84: #{tpu_custom_call.1} parent=1 // pred_region
      %98 = dma.done [#allocation6], 1024
    $region85: #{tpu_custom_call.1} parent=1 // pred_fallthru
      _
    %v99 = vld [vmem:[%s2] sm:$0xff]
    %v100 = vld [vmem:[%s2 + $0x8] sm:$0xff]
    %v101 = vld [vmem:[%s2 + $0x10] sm:$0xff]
    %v102 = vld [vmem:[%s2 + $0x18] sm:$0xff]
    %v103 = vld [vmem:[%s2 + $0x20] sm:$0xff]
    %v104 = vld [vmem:[%s2 + $0x28] sm:$0xff]
    %v105 = vld [vmem:[%s2 + $0x30] sm:$0xff]
    %v106 = vld [vmem:[%s2 + $0x38] sm:$0xff]
    %v107 = vld [vmem:[%s2 + $0x40] sm:$0xff]
    %v108 = vld [vmem:[%s2 + $0x48] sm:$0xff]
    %v109 = vld [vmem:[%s2 + $0x50] sm:$0xff]
    %v110 = vld [vmem:[%s2 + $0x58] sm:$0xff]
    %v111 = vld [vmem:[%s2 + $0x60] sm:$0xff]
    %v112 = vld [vmem:[%s2 + $0x68] sm:$0xff]
    %v113 = vld [vmem:[%s2 + $0x70] sm:$0xff]
    %v114 = vld [vmem:[%s2 + $0x78] sm:$0xff]
    %v115 = vld [vmem:[#allocation2] sm:$0xff]
    %vm116 = vcmask 64512
    %v118 = vsel %vm116, %v99, 0
    %v121 = vsel %vm116, %v100, 0
    %v124 = vsel %vm116, %v101, 0
    %v127 = vsel %vm116, %v102, 0
    %v130 = vsel %vm116, %v103, 0
    %v133 = vsel %vm116, %v104, 0
    %v136 = vsel %vm116, %v105, 0
    %v139 = vsel %vm116, %v106, 0
    %v142 = vsel %vm116, %v107, 0
    %v145 = vsel %vm116, %v108, 0
    %v148 = vsel %vm116, %v109, 0
    %v151 = vsel %vm116, %v110, 0
    %v154 = vsel %vm116, %v111, 0
    %v157 = vsel %vm116, %v112, 0
    %v160 = vsel %vm116, %v113, 0
    %v163 = vsel %vm116, %v114, 0
    %165 = vmatprep.subr.mxu0 0.0
    %166 = vmatpush1.msra.mxu0 %v115
    %167 = vmatprep.subr.mxu0 0.0
    %168 = vmatpush1.msra.mxu0 0.0
    %169 = vmatprep.subr.mxu0 0.0
    %170 = vmatpush1.msra.mxu0 0.0
    %171 = vmatprep.subr.mxu0 0.0
    %172 = vmatpush1.msra.mxu0 0.0
    %173 = vmatprep.subr.mxu0 0.0
    %174 = vmatpush1.msra.mxu0 0.0
    %175 = vmatprep.subr.mxu0 0.0
    %176 = vmatpush1.msra.mxu0 0.0
    %177 = vmatprep.subr.mxu0 0.0
    %178 = vmatpush1.msra.mxu0 0.0
    %179 = vmatprep.subr.mxu0 0.0
    %180 = vmatpush1.msra.mxu0 0.0
    %181 = vmatprep.subr.mxu0 0.0
    %182 = vmatpush1.msra.mxu0 0.0
    %183 = vmatprep.subr.mxu0 0.0
    %184 = vmatpush1.msra.mxu0 0.0
    %185 = vmatprep.subr.mxu0 0.0
    %186 = vmatpush1.msra.mxu0 0.0
    %187 = vmatprep.subr.mxu0 0.0
    %188 = vmatpush1.msra.mxu0 0.0
    %189 = vmatprep.subr.mxu0 0.0
    %190 = vmatpush1.msra.mxu0 0.0
    %191 = vmatprep.subr.mxu0 0.0
    %192 = vmatpush1.msra.mxu0 0.0
    %193 = vmatprep.subr.mxu0 0.0
    %194 = vmatpush1.msra.mxu0 0.0
    %195 = vmatprep.subr.mxu0 0.0
    %196 = vmatpush1.msra.mxu0 0.0
    %197 = vmatprep.subr.mxu0 0.0
    %198 = vmatpush1.msra.mxu0 0.0
    %199 = vmatprep.subr.mxu0 0.0
    %200 = vmatpush1.msra.mxu0 0.0
    %201 = vmatprep.subr.mxu0 0.0
    %202 = vmatpush1.msra.mxu0 0.0
    %203 = vmatprep.subr.mxu0 0.0
    %204 = vmatpush1.msra.mxu0 0.0
    %205 = vmatprep.subr.mxu0 0.0
    %206 = vmatpush1.msra.mxu0 0.0
    %207 = vmatprep.subr.mxu0 0.0
    %208 = vmatpush1.msra.mxu0 0.0
    %209 = vmatprep.subr.mxu0 0.0
    %210 = vmatpush1.msra.mxu0 0.0
    %211 = vmatprep.subr.mxu0 0.0
    %212 = vmatpush1.msra.mxu0 0.0
    %213 = vmatprep.subr.mxu0 0.0
    %214 = vmatpush1.msra.mxu0 0.0
    %215 = vmatprep.subr.mxu0 0.0
    %216 = vmatpush1.msra.mxu0 0.0
    %217 = vmatprep.subr.mxu0 0.0
    %218 = vmatpush1.msra.mxu0 0.0
    %219 = vmatprep.subr.mxu0 0.0
    %220 = vmatpush1.msra.mxu0 0.0
    %221 = vmatprep.subr.mxu0 0.0
    %222 = vmatpush1.msra.mxu0 0.0
    %223 = vmatprep.subr.mxu0 0.0
    %224 = vmatpush1.msra.mxu0 0.0
    %225 = vmatprep.subr.mxu0 0.0
    %226 = vmatpush1.msra.mxu0 0.0
    %227 = vmatprep.subr.mxu0 0.0
    %228 = vmatpush1.msra.mxu0 0.0
    %229 = vmatprep.mubr.f32.mxu0 0.0
    %230 = vmatmul.mubr.f32.gmra.mrb[0].mxu0 %v118
    %v231 = vpop.f32.mrb[0].mxu0
    %v232 = vadd.f32 0.0, %v231
    %v233 = vpop.f32.mrb[0].mxu0
    %234 = vmatprep.mubr.f32.mxu0 0.0
    %235 = vmatmul.mubr.f32.gmra.mrb[0].mxu0 %v121
    %v236 = vpop.f32.mrb[0].mxu0
    %v237 = vadd.f32 0.0, %v236
    %v238 = vpop.f32.mrb[0].mxu0
    %239 = vmatprep.mubr.f32.mxu0 0.0
    %240 = vmatmul.mubr.f32.gmra.mrb[0].mxu0 %v124
    %v241 = vpop.f32.mrb[0].mxu0
    %v242 = vadd.f32 0.0, %v241
    %v243 = vpop.f32.mrb[0].mxu0
    %244 = vmatprep.mubr.f32.mxu0 0.0
    %245 = vmatmul.mubr.f32.gmra.mrb[0].mxu0 %v127
    %v246 = vpop.f32.mrb[0].mxu0
    %v247 = vadd.f32 0.0, %v246
    %v248 = vpop.f32.mrb[0].mxu0
    %249 = vmatprep.mubr.f32.mxu0 0.0
    %250 = vmatmul.mubr.f32.gmra.mrb[0].mxu0 %v130
    %v251 = vpop.f32.mrb[0].mxu0
    %v252 = vadd.f32 0.0, %v251
    %v253 = vpop.f32.mrb[0].mxu0
    %254 = vmatprep.mubr.f32.mxu0 0.0
    %255 = vmatmul.mubr.f32.gmra.mrb[0].mxu0 %v133
    %v256 = vpop.f32.mrb[0].mxu0
    %v257 = vadd.f32 0.0, %v256
    %v258 = vpop.f32.mrb[0].mxu0
    %259 = vmatprep.mubr.f32.mxu0 0.0
    %260 = vmatmul.mubr.f32.gmra.mrb[0].mxu0 %v136
    %v261 = vpop.f32.mrb[0].mxu0
    %v262 = vadd.f32 0.0, %v261
    %v263 = vpop.f32.mrb[0].mxu0
    %264 = vmatprep.mubr.f32.mxu0 0.0
    %265 = vmatmul.mubr.f32.gmra.mrb[0].mxu0 %v139
    %v266 = vpop.f32.mrb[0].mxu0
    %v267 = vadd.f32 0.0, %v266
    %v268 = vpop.f32.mrb[0].mxu0
    %269 = vmatprep.mubr.f32.mxu0 0.0
    %270 = vmatmul.mubr.f32.gmra.mrb[0].mxu0 %v142
    %v271 = vpop.f32.mrb[0].mxu0
    %v272 = vadd.f32 0.0, %v271
    %v273 = vpop.f32.mrb[0].mxu0
    %274 = vmatprep.mubr.f32.mxu0 0.0
    %275 = vmatmul.mubr.f32.gmra.mrb[0].mxu0 %v145
    %v276 = vpop.f32.mrb[0].mxu0
    %v277 = vadd.f32 0.0, %v276
    %v278 = vpop.f32.mrb[0].mxu0
    %279 = vmatprep.mubr.f32.mxu0 0.0
    %280 = vmatmul.mubr.f32.gmra.mrb[0].mxu0 %v148
    %v281 = vpop.f32.mrb[0].mxu0
    %v282 = vadd.f32 0.0, %v281
    %v283 = vpop.f32.mrb[0].mxu0
    %284 = vmatprep.mubr.f32.mxu0 0.0
    %285 = vmatmul.mubr.f32.gmra.mrb[0].mxu0 %v151
    %v286 = vpop.f32.mrb[0].mxu0
    %v287 = vadd.f32 0.0, %v286
    %v288 = vpop.f32.mrb[0].mxu0
    %289 = vmatprep.mubr.f32.mxu0 0.0
    %290 = vmatmul.mubr.f32.gmra.mrb[0].mxu0 %v154
    %v291 = vpop.f32.mrb[0].mxu0
    %v292 = vadd.f32 0.0, %v291
    %v293 = vpop.f32.mrb[0].mxu0
    %294 = vmatprep.mubr.f32.mxu0 0.0
    %295 = vmatmul.mubr.f32.gmra.mrb[0].mxu0 %v157
    %v296 = vpop.f32.mrb[0].mxu0
    %v297 = vadd.f32 0.0, %v296
    %v298 = vpop.f32.mrb[0].mxu0
    %299 = vmatprep.mubr.f32.mxu0 0.0
    %300 = vmatmul.mubr.f32.gmra.mrb[0].mxu0 %v160
    %v301 = vpop.f32.mrb[0].mxu0
    %v302 = vadd.f32 0.0, %v301
    %v303 = vpop.f32.mrb[0].mxu0
    %304 = vmatprep.mubr.f32.mxu0 0.0
    %305 = vmatmul.mubr.f32.gmra.mrb[0].mxu0 %v163
    %v306 = vpop.f32.mrb[0].mxu0
    %v307 = vadd.f32 0.0, %v306
    %v308 = vpop.f32.mrb[0].mxu0
    %309 = vdwg.mxu0
    %v310 = vld [vmem:[%s0] sm:$0xff]
    %v311 = vld [vmem:[%s0 + $0x8] sm:$0xff]
    %v312 = vld [vmem:[%s0 + $0x10] sm:$0xff]
    %v313 = vld [vmem:[%s0 + $0x18] sm:$0xff]
    %v314 = vld [vmem:[%s0 + $0x20] sm:$0xff]
    %v315 = vld [vmem:[%s0 + $0x28] sm:$0xff]
    %v316 = vld [vmem:[%s0 + $0x30] sm:$0xff]
    %v317 = vld [vmem:[%s0 + $0x38] sm:$0xff]
    %v318 = vld [vmem:[%s0 + $0x40] sm:$0xff]
    %v319 = vld [vmem:[%s0 + $0x48] sm:$0xff]
    %v320 = vld [vmem:[%s0 + $0x50] sm:$0xff]
    %v321 = vld [vmem:[%s0 + $0x58] sm:$0xff]
    %v322 = vld [vmem:[%s0 + $0x60] sm:$0xff]
    %v323 = vld [vmem:[%s0 + $0x68] sm:$0xff]
    %v324 = vld [vmem:[%s0 + $0x70] sm:$0xff]
    %v325 = vld [vmem:[%s0 + $0x78] sm:$0xff]
    %v326 = vld [vmem:[#allocation5] sm:$0xff]
    %v327 = vld [vmem:[#allocation5 + $0x8] sm:$0x3f]
    %v328 = vld [vmem:[%s5] sm:$0x1]
    %v330 = vlaneseq
    %v331 = vshrl.u32 %v330, 7
    %v332 = vsub.s32 0, %v331
    %v333 = vrot.slane %v328, %v332
    %vm335 = vcmask 113664
    %v337 = vsel %vm335, %v310, 0
    %v340 = vsel %vm335, %v311, 0
    %v343 = vsel %vm335, %v312, 0
    %v346 = vsel %vm335, %v313, 0
    %v349 = vsel %vm335, %v314, 0
    %v352 = vsel %vm335, %v315, 0
    %v355 = vsel %vm335, %v316, 0
    %v358 = vsel %vm335, %v317, 0
    %v361 = vsel %vm335, %v318, 0
    %v364 = vsel %vm335, %v319, 0
    %v367 = vsel %vm335, %v320, 0
    %v370 = vsel %vm335, %v321, 0
    %v373 = vsel %vm335, %v322, 0
    %v376 = vsel %vm335, %v323, 0
    %v379 = vsel %vm335, %v324, 0
    %v382 = vsel %vm335, %v325, 0
    %vm384 = vcmask 1045504
    %v386 = vsel %vm384, %v327, 0
    %388 = vmatprep.subr.mxu0 0.0
    %389 = vmatpush1.msra.mxu0 %v326
    %390 = vmatprep.subr.mxu0 0.0
    %391 = vmatpush1.msra.mxu0 %v386
    %392 = vmatprep.subr.mxu0 0.0
    %393 = vmatpush1.msra.mxu0 0.0
    %394 = vmatprep.subr.mxu0 0.0
    %395 = vmatpush1.msra.mxu0 0.0
    %396 = vmatprep.subr.mxu0 0.0
    %397 = vmatpush1.msra.mxu0 0.0
    %398 = vmatprep.subr.mxu0 0.0
    %399 = vmatpush1.msra.mxu0 0.0
    %400 = vmatprep.subr.mxu0 0.0
    %401 = vmatpush1.msra.mxu0 0.0
    %402 = vmatprep.subr.mxu0 0.0
    %403 = vmatpush1.msra.mxu0 0.0
    %404 = vmatprep.subr.mxu0 0.0
    %405 = vmatpush1.msra.mxu0 0.0
    %406 = vmatprep.subr.mxu0 0.0
    %407 = vmatpush1.msra.mxu0 0.0
    %408 = vmatprep.subr.mxu0 0.0
    %409 = vmatpush1.msra.mxu0 0.0
    %410 = vmatprep.subr.mxu0 0.0
    %411 = vmatpush1.msra.mxu0 0.0
    %412 = vmatprep.subr.mxu0 0.0
    %413 = vmatpush1.msra.mxu0 0.0
    %414 = vmatprep.subr.mxu0 0.0
    %415 = vmatpush1.msra.mxu0 0.0
    %416 = vmatprep.subr.mxu0 0.0
    %417 = vmatpush1.msra.mxu0 0.0
    %418 = vmatprep.subr.mxu0 0.0
    %419 = vmatpush1.msra.mxu0 0.0
    %420 = vmatprep.subr.mxu0 0.0
    %421 = vmatpush1.msra.mxu0 0.0
    %422 = vmatprep.subr.mxu0 0.0
    %423 = vmatpush1.msra.mxu0 0.0
    %424 = vmatprep.subr.mxu0 0.0
    %425 = vmatpush1.msra.mxu0 0.0
    %426 = vmatprep.subr.mxu0 0.0
    %427 = vmatpush1.msra.mxu0 0.0
    %428 = vmatprep.subr.mxu0 0.0
    %429 = vmatpush1.msra.mxu0 0.0
    %430 = vmatprep.subr.mxu0 0.0
    %431 = vmatpush1.msra.mxu0 0.0
    %432 = vmatprep.subr.mxu0 0.0
    %433 = vmatpush1.msra.mxu0 0.0
    %434 = vmatprep.subr.mxu0 0.0
    %435 = vmatpush1.msra.mxu0 0.0
    %436 = vmatprep.subr.mxu0 0.0
    %437 = vmatpush1.msra.mxu0 0.0
    %438 = vmatprep.subr.mxu0 0.0
    %439 = vmatpush1.msra.mxu0 0.0
    %440 = vmatprep.subr.mxu0 0.0
    %441 = vmatpush1.msra.mxu0 0.0
    %442 = vmatprep.subr.mxu0 0.0
    %443 = vmatpush1.msra.mxu0 0.0
    %444 = vmatprep.subr.mxu0 0.0
    %445 = vmatpush1.msra.mxu0 0.0
    %446 = vmatprep.subr.mxu0 0.0
    %447 = vmatpush1.msra.mxu0 0.0
    %448 = vmatprep.subr.mxu0 0.0
    %449 = vmatpush1.msra.mxu0 0.0
    %450 = vmatprep.subr.mxu0 0.0
    %451 = vmatpush1.msra.mxu0 0.0
    %452 = vmatprep.mubr.f32.mxu0 0.0
    %453 = vmatmul.mubr.f32.gmra.mrb[0].mxu0 %v337
    %v454 = vpop.f32.mrb[0].mxu0
    %v455 = vadd.f32 %v333, %v454
    %v456 = vpop.f32.mrb[0].mxu0
    %457 = vmatprep.mubr.f32.mxu0 0.0
    %458 = vmatmul.mubr.f32.gmra.mrb[0].mxu0 %v340
    %v459 = vpop.f32.mrb[0].mxu0
    %v460 = vadd.f32 %v333, %v459
    %v461 = vpop.f32.mrb[0].mxu0
    %462 = vmatprep.mubr.f32.mxu0 0.0
    %463 = vmatmul.mubr.f32.gmra.mrb[0].mxu0 %v343
    %v464 = vpop.f32.mrb[0].mxu0
    %v465 = vadd.f32 %v333, %v464
    %v466 = vpop.f32.mrb[0].mxu0
    %467 = vmatprep.mubr.f32.mxu0 0.0
    %468 = vmatmul.mubr.f32.gmra.mrb[0].mxu0 %v346
    %v469 = vpop.f32.mrb[0].mxu0
    %v470 = vadd.f32 %v333, %v469
    %v471 = vpop.f32.mrb[0].mxu0
    %472 = vmatprep.mubr.f32.mxu0 0.0
    %473 = vmatmul.mubr.f32.gmra.mrb[0].mxu0 %v349
    %v474 = vpop.f32.mrb[0].mxu0
    %v475 = vadd.f32 %v333, %v474
    %v476 = vpop.f32.mrb[0].mxu0
    %477 = vmatprep.mubr.f32.mxu0 0.0
    %478 = vmatmul.mubr.f32.gmra.mrb[0].mxu0 %v352
    %v479 = vpop.f32.mrb[0].mxu0
    %v480 = vadd.f32 %v333, %v479
    %v481 = vpop.f32.mrb[0].mxu0
    %482 = vmatprep.mubr.f32.mxu0 0.0
    %483 = vmatmul.mubr.f32.gmra.mrb[0].mxu0 %v355
    %v484 = vpop.f32.mrb[0].mxu0
    %v485 = vadd.f32 %v333, %v484
    %v486 = vpop.f32.mrb[0].mxu0
    %487 = vmatprep.mubr.f32.mxu0 0.0
    %488 = vmatmul.mubr.f32.gmra.mrb[0].mxu0 %v358
    %v489 = vpop.f32.mrb[0].mxu0
    %v490 = vadd.f32 %v333, %v489
    %v491 = vpop.f32.mrb[0].mxu0
    %492 = vmatprep.mubr.f32.mxu0 0.0
    %493 = vmatmul.mubr.f32.gmra.mrb[0].mxu0 %v361
    %v494 = vpop.f32.mrb[0].mxu0
    %v495 = vadd.f32 %v333, %v494
    %v496 = vpop.f32.mrb[0].mxu0
    %497 = vmatprep.mubr.f32.mxu0 0.0
    %498 = vmatmul.mubr.f32.gmra.mrb[0].mxu0 %v364
    %v499 = vpop.f32.mrb[0].mxu0
    %v500 = vadd.f32 %v333, %v499
    %v501 = vpop.f32.mrb[0].mxu0
    %502 = vmatprep.mubr.f32.mxu0 0.0
    %503 = vmatmul.mubr.f32.gmra.mrb[0].mxu0 %v367
    %v504 = vpop.f32.mrb[0].mxu0
    %v505 = vadd.f32 %v333, %v504
    %v506 = vpop.f32.mrb[0].mxu0
    %507 = vmatprep.mubr.f32.mxu0 0.0
    %508 = vmatmul.mubr.f32.gmra.mrb[0].mxu0 %v370
    %v509 = vpop.f32.mrb[0].mxu0
    %v510 = vadd.f32 %v333, %v509
    %v511 = vpop.f32.mrb[0].mxu0
    %512 = vmatprep.mubr.f32.mxu0 0.0
    %513 = vmatmul.mubr.f32.gmra.mrb[0].mxu0 %v373
    %v514 = vpop.f32.mrb[0].mxu0
    %v515 = vadd.f32 %v333, %v514
    %v516 = vpop.f32.mrb[0].mxu0
    %517 = vmatprep.mubr.f32.mxu0 0.0
    %518 = vmatmul.mubr.f32.gmra.mrb[0].mxu0 %v376
    %v519 = vpop.f32.mrb[0].mxu0
    %v520 = vadd.f32 %v333, %v519
    %v521 = vpop.f32.mrb[0].mxu0
    %522 = vmatprep.mubr.f32.mxu0 0.0
    %523 = vmatmul.mubr.f32.gmra.mrb[0].mxu0 %v379
    %v524 = vpop.f32.mrb[0].mxu0
    %v525 = vadd.f32 %v333, %v524
    %v526 = vpop.f32.mrb[0].mxu0
    %527 = vmatprep.mubr.f32.mxu0 0.0
    %528 = vmatmul.mubr.f32.gmra.mrb[0].mxu0 %v382
    %v529 = vpop.f32.mrb[0].mxu0
    %v530 = vadd.f32 %v333, %v529
    %v531 = vpop.f32.mrb[0].mxu0
    %532 = vdwg.mxu0
    %vm533 = vcmp.gt.f32.partialorder %v455, 0.0
    %vm534 = vcmp.gt.f32.partialorder %v460, 0.0
    %vm535 = vcmp.gt.f32.partialorder %v465, 0.0
    %vm536 = vcmp.gt.f32.partialorder %v470, 0.0
    %vm537 = vcmp.gt.f32.partialorder %v475, 0.0
    %vm538 = vcmp.gt.f32.partialorder %v480, 0.0
    %vm539 = vcmp.gt.f32.partialorder %v485, 0.0
    %vm540 = vcmp.gt.f32.partialorder %v490, 0.0
    %vm541 = vcmp.gt.f32.partialorder %v495, 0.0
    %vm542 = vcmp.gt.f32.partialorder %v500, 0.0
    %vm543 = vcmp.gt.f32.partialorder %v505, 0.0
    %vm544 = vcmp.gt.f32.partialorder %v510, 0.0
    %vm545 = vcmp.gt.f32.partialorder %v515, 0.0
    %vm546 = vcmp.gt.f32.partialorder %v520, 0.0
    %vm547 = vcmp.gt.f32.partialorder %v525, 0.0
    %vm548 = vcmp.gt.f32.partialorder %v530, 0.0
    %v549 = vmul.f32 %v455, 0.01
    %v550 = vmul.f32 %v460, 0.01
    %v551 = vmul.f32 %v465, 0.01
    %v552 = vmul.f32 %v470, 0.01
    %v553 = vmul.f32 %v475, 0.01
    %v554 = vmul.f32 %v480, 0.01
    %v555 = vmul.f32 %v485, 0.01
    %v556 = vmul.f32 %v490, 0.01
    %v557 = vmul.f32 %v495, 0.01
    %v558 = vmul.f32 %v500, 0.01
    %v559 = vmul.f32 %v505, 0.01
    %v560 = vmul.f32 %v510, 0.01
    %v561 = vmul.f32 %v515, 0.01
    %v562 = vmul.f32 %v520, 0.01
    %v563 = vmul.f32 %v525, 0.01
    %v564 = vmul.f32 %v530, 0.01
    %v565 = vsel %vm533, %v455, %v549
    %v566 = vsel %vm534, %v460, %v550
    %v567 = vsel %vm535, %v465, %v551
    %v568 = vsel %vm536, %v470, %v552
    %v569 = vsel %vm537, %v475, %v553
    %v570 = vsel %vm538, %v480, %v554
    %v571 = vsel %vm539, %v485, %v555
    %v572 = vsel %vm540, %v490, %v556
    %v573 = vsel %vm541, %v495, %v557
    %v574 = vsel %vm542, %v500, %v558
    %v575 = vsel %vm543, %v505, %v559
    %v576 = vsel %vm544, %v510, %v560
    %v577 = vsel %vm545, %v515, %v561
    %v578 = vsel %vm546, %v520, %v562
    %v579 = vsel %vm547, %v525, %v563
    %v580 = vsel %vm548, %v530, %v564
    %v581 = vld [vmem:[%s3] sm:$0xff]
    %v582 = vld [vmem:[%s3 + $0x8] sm:$0xff]
    %v583 = vld [vmem:[%s3 + $0x10] sm:$0xff]
    %v584 = vld [vmem:[%s3 + $0x18] sm:$0xff]
    %vm585 = vcmask 261120
    %v587 = vsel %vm585, %v232, 0
    %v590 = vsel %vm585, %v237, 0
    %v593 = vsel %vm585, %v242, 0
    %v596 = vsel %vm585, %v247, 0
    %v599 = vsel %vm585, %v252, 0
    %v602 = vsel %vm585, %v257, 0
    %v605 = vsel %vm585, %v262, 0
    %v608 = vsel %vm585, %v267, 0
    %v611 = vsel %vm585, %v272, 0
    %v614 = vsel %vm585, %v277, 0
    %v617 = vsel %vm585, %v282, 0
    %v620 = vsel %vm585, %v287, 0
    %v623 = vsel %vm585, %v292, 0
    %v626 = vsel %vm585, %v297, 0
    %v629 = vsel %vm585, %v302, 0
    %v632 = vsel %vm585, %v307, 0
    %634 = vmatprep.subr.mxu0 0.0
    %635 = vmatpush1.msra.mxu0 %v581
    %636 = vmatprep.subr.mxu0 0.0
    %637 = vmatpush1.msra.mxu0 %v582
    %638 = vmatprep.subr.mxu0 0.0
    %639 = vmatpush1.msra.mxu0 %v583
    %640 = vmatprep.subr.mxu0 0.0
    %641 = vmatpush1.msra.mxu0 %v584
    %642 = vmatprep.subr.mxu0 0.0
    %643 = vmatpush1.msra.mxu0 0.0
    %644 = vmatprep.subr.mxu0 0.0
    %645 = vmatpush1.msra.mxu0 0.0
    %646 = vmatprep.subr.mxu0 0.0
    %647 = vmatpush1.msra.mxu0 0.0
    %648 = vmatprep.subr.mxu0 0.0
    %649 = vmatpush1.msra.mxu0 0.0
    %650 = vmatprep.subr.mxu0 0.0
    %651 = vmatpush1.msra.mxu0 0.0
    %652 = vmatprep.subr.mxu0 0.0
    %653 = vmatpush1.msra.mxu0 0.0
    %654 = vmatprep.subr.mxu0 0.0
    %655 = vmatpush1.msra.mxu0 0.0
    %656 = vmatprep.subr.mxu0 0.0
    %657 = vmatpush1.msra.mxu0 0.0
    %658 = vmatprep.subr.mxu0 0.0
    %659 = vmatpush1.msra.mxu0 0.0
    %660 = vmatprep.subr.mxu0 0.0
    %661 = vmatpush1.msra.mxu0 0.0
    %662 = vmatprep.subr.mxu0 0.0
    %663 = vmatpush1.msra.mxu0 0.0
    %664 = vmatprep.subr.mxu0 0.0
    %665 = vmatpush1.msra.mxu0 0.0
    %666 = vmatprep.subr.mxu0 0.0
    %667 = vmatpush1.msra.mxu0 0.0
    %668 = vmatprep.subr.mxu0 0.0
    %669 = vmatpush1.msra.mxu0 0.0
    %670 = vmatprep.subr.mxu0 0.0
    %671 = vmatpush1.msra.mxu0 0.0
    %672 = vmatprep.subr.mxu0 0.0
    %673 = vmatpush1.msra.mxu0 0.0
    %674 = vmatprep.subr.mxu0 0.0
    %675 = vmatpush1.msra.mxu0 0.0
    %676 = vmatprep.subr.mxu0 0.0
    %677 = vmatpush1.msra.mxu0 0.0
    %678 = vmatprep.subr.mxu0 0.0
    %679 = vmatpush1.msra.mxu0 0.0
    %680 = vmatprep.subr.mxu0 0.0
    %681 = vmatpush1.msra.mxu0 0.0
    %682 = vmatprep.subr.mxu0 0.0
    %683 = vmatpush1.msra.mxu0 0.0
    %684 = vmatprep.subr.mxu0 0.0
    %685 = vmatpush1.msra.mxu0 0.0
    %686 = vmatprep.subr.mxu0 0.0
    %687 = vmatpush1.msra.mxu0 0.0
    %688 = vmatprep.subr.mxu0 0.0
    %689 = vmatpush1.msra.mxu0 0.0
    %690 = vmatprep.subr.mxu0 0.0
    %691 = vmatpush1.msra.mxu0 0.0
    %692 = vmatprep.subr.mxu0 0.0
    %693 = vmatpush1.msra.mxu0 0.0
    %694 = vmatprep.subr.mxu0 0.0
    %695 = vmatpush1.msra.mxu0 0.0
    %696 = vmatprep.subr.mxu0 0.0
    %697 = vmatpush1.msra.mxu0 0.0
    %698 = vmatprep.mubr.f32.mxu0 0.0
    %699 = vmatmul.mubr.f32.gmra.mrb[0].mxu0 %v587
    %v700 = vpop.f32.mrb[0].mxu0
    %v701 = vadd.f32 0.0, %v700
    %v702 = vpop.f32.mrb[0].mxu0
    %703 = vmatprep.mubr.f32.mxu0 0.0
    %704 = vmatmul.mubr.f32.gmra.mrb[0].mxu0 %v590
    %v705 = vpop.f32.mrb[0].mxu0
    %v706 = vadd.f32 0.0, %v705
    %v707 = vpop.f32.mrb[0].mxu0
    %708 = vmatprep.mubr.f32.mxu0 0.0
    %709 = vmatmul.mubr.f32.gmra.mrb[0].mxu0 %v593
    %v710 = vpop.f32.mrb[0].mxu0
    %v711 = vadd.f32 0.0, %v710
    %v712 = vpop.f32.mrb[0].mxu0
    %713 = vmatprep.mubr.f32.mxu0 0.0
    %714 = vmatmul.mubr.f32.gmra.mrb[0].mxu0 %v596
    %v715 = vpop.f32.mrb[0].mxu0
    %v716 = vadd.f32 0.0, %v715
    %v717 = vpop.f32.mrb[0].mxu0
    %718 = vmatprep.mubr.f32.mxu0 0.0
    %719 = vmatmul.mubr.f32.gmra.mrb[0].mxu0 %v599
    %v720 = vpop.f32.mrb[0].mxu0
    %v721 = vadd.f32 0.0, %v720
    %v722 = vpop.f32.mrb[0].mxu0
    %723 = vmatprep.mubr.f32.mxu0 0.0
    %724 = vmatmul.mubr.f32.gmra.mrb[0].mxu0 %v602
    %v725 = vpop.f32.mrb[0].mxu0
    %v726 = vadd.f32 0.0, %v725
    %v727 = vpop.f32.mrb[0].mxu0
    %728 = vmatprep.mubr.f32.mxu0 0.0
    %729 = vmatmul.mubr.f32.gmra.mrb[0].mxu0 %v605
    %v730 = vpop.f32.mrb[0].mxu0
    %v731 = vadd.f32 0.0, %v730
    %v732 = vpop.f32.mrb[0].mxu0
    %733 = vmatprep.mubr.f32.mxu0 0.0
    %734 = vmatmul.mubr.f32.gmra.mrb[0].mxu0 %v608
    %v735 = vpop.f32.mrb[0].mxu0
    %v736 = vadd.f32 0.0, %v735
    %v737 = vpop.f32.mrb[0].mxu0
    %738 = vmatprep.mubr.f32.mxu0 0.0
    %739 = vmatmul.mubr.f32.gmra.mrb[0].mxu0 %v611
    %v740 = vpop.f32.mrb[0].mxu0
    %v741 = vadd.f32 0.0, %v740
    %v742 = vpop.f32.mrb[0].mxu0
    %743 = vmatprep.mubr.f32.mxu0 0.0
    %744 = vmatmul.mubr.f32.gmra.mrb[0].mxu0 %v614
    %v745 = vpop.f32.mrb[0].mxu0
    %v746 = vadd.f32 0.0, %v745
    %v747 = vpop.f32.mrb[0].mxu0
    %748 = vmatprep.mubr.f32.mxu0 0.0
    %749 = vmatmul.mubr.f32.gmra.mrb[0].mxu0 %v617
    %v750 = vpop.f32.mrb[0].mxu0
    %v751 = vadd.f32 0.0, %v750
    %v752 = vpop.f32.mrb[0].mxu0
    %753 = vmatprep.mubr.f32.mxu0 0.0
    %754 = vmatmul.mubr.f32.gmra.mrb[0].mxu0 %v620
    %v755 = vpop.f32.mrb[0].mxu0
    %v756 = vadd.f32 0.0, %v755
    %v757 = vpop.f32.mrb[0].mxu0
    %758 = vmatprep.mubr.f32.mxu0 0.0
    %759 = vmatmul.mubr.f32.gmra.mrb[0].mxu0 %v623
    %v760 = vpop.f32.mrb[0].mxu0
    %v761 = vadd.f32 0.0, %v760
    %v762 = vpop.f32.mrb[0].mxu0
    %763 = vmatprep.mubr.f32.mxu0 0.0
    %764 = vmatmul.mubr.f32.gmra.mrb[0].mxu0 %v626
    %v765 = vpop.f32.mrb[0].mxu0
    %v766 = vadd.f32 0.0, %v765
    %v767 = vpop.f32.mrb[0].mxu0
    %768 = vmatprep.mubr.f32.mxu0 0.0
    %769 = vmatmul.mubr.f32.gmra.mrb[0].mxu0 %v629
    %v770 = vpop.f32.mrb[0].mxu0
    %v771 = vadd.f32 0.0, %v770
    %v772 = vpop.f32.mrb[0].mxu0
    %773 = vmatprep.mubr.f32.mxu0 0.0
    %774 = vmatmul.mubr.f32.gmra.mrb[0].mxu0 %v632
    %v775 = vpop.f32.mrb[0].mxu0
    %v776 = vadd.f32 0.0, %v775
    %v777 = vpop.f32.mrb[0].mxu0
    %778 = vdwg.mxu0
    %s779 = scalar_lea.vmem %s3, 32
    %v780 = vld [vmem:[%s779] sm:$0xff]
    %v781 = vld [vmem:[%s779 + $0x8] sm:$0xff]
    %v782 = vld [vmem:[%s779 + $0x10] sm:$0xff]
    %v783 = vld [vmem:[%s779 + $0x18] sm:$0xff]
    %784 = vmatprep.subr.mxu0 0.0
    %785 = vmatpush1.msra.mxu0 %v780
    %786 = vmatprep.subr.mxu0 0.0
    %787 = vmatpush1.msra.mxu0 %v781
    %788 = vmatprep.subr.mxu0 0.0
    %789 = vmatpush1.msra.mxu0 %v782
    %790 = vmatprep.subr.mxu0 0.0
    %791 = vmatpush1.msra.mxu0 %v783
    %792 = vmatprep.subr.mxu0 0.0
    %793 = vmatpush1.msra.mxu0 0.0
    %794 = vmatprep.subr.mxu0 0.0
    %795 = vmatpush1.msra.mxu0 0.0
    %796 = vmatprep.subr.mxu0 0.0
    %797 = vmatpush1.msra.mxu0 0.0
    %798 = vmatprep.subr.mxu0 0.0
    %799 = vmatpush1.msra.mxu0 0.0
    %800 = vmatprep.subr.mxu0 0.0
    %801 = vmatpush1.msra.mxu0 0.0
    %802 = vmatprep.subr.mxu0 0.0
    %803 = vmatpush1.msra.mxu0 0.0
    %804 = vmatprep.subr.mxu0 0.0
    %805 = vmatpush1.msra.mxu0 0.0
    %806 = vmatprep.subr.mxu0 0.0
    %807 = vmatpush1.msra.mxu0 0.0
    %808 = vmatprep.subr.mxu0 0.0
    %809 = vmatpush1.msra.mxu0 0.0
    %810 = vmatprep.subr.mxu0 0.0
    %811 = vmatpush1.msra.mxu0 0.0
    %812 = vmatprep.subr.mxu0 0.0
    %813 = vmatpush1.msra.mxu0 0.0
    %814 = vmatprep.subr.mxu0 0.0
    %815 = vmatpush1.msra.mxu0 0.0
    %816 = vmatprep.subr.mxu0 0.0
    %817 = vmatpush1.msra.mxu0 0.0
    %818 = vmatprep.subr.mxu0 0.0
    %819 = vmatpush1.msra.mxu0 0.0
    %820 = vmatprep.subr.mxu0 0.0
    %821 = vmatpush1.msra.mxu0 0.0
    %822 = vmatprep.subr.mxu0 0.0
    %823 = vmatpush1.msra.mxu0 0.0
    %824 = vmatprep.subr.mxu0 0.0
    %825 = vmatpush1.msra.mxu0 0.0
    %826 = vmatprep.subr.mxu0 0.0
    %827 = vmatpush1.msra.mxu0 0.0
    %828 = vmatprep.subr.mxu0 0.0
    %829 = vmatpush1.msra.mxu0 0.0
    %830 = vmatprep.subr.mxu0 0.0
    %831 = vmatpush1.msra.mxu0 0.0
    %832 = vmatprep.subr.mxu0 0.0
    %833 = vmatpush1.msra.mxu0 0.0
    %834 = vmatprep.subr.mxu0 0.0
    %835 = vmatpush1.msra.mxu0 0.0
    %836 = vmatprep.subr.mxu0 0.0
    %837 = vmatpush1.msra.mxu0 0.0
    %838 = vmatprep.subr.mxu0 0.0
    %839 = vmatpush1.msra.mxu0 0.0
    %840 = vmatprep.subr.mxu0 0.0
    %841 = vmatpush1.msra.mxu0 0.0
    %842 = vmatprep.subr.mxu0 0.0
    %843 = vmatpush1.msra.mxu0 0.0
    %844 = vmatprep.subr.mxu0 0.0
    %845 = vmatpush1.msra.mxu0 0.0
    %846 = vmatprep.subr.mxu0 0.0
    %847 = vmatpush1.msra.mxu0 0.0
    %848 = vmatprep.mubr.f32.mxu0 0.0
    %849 = vmatmul.mubr.f32.gmra.mrb[0].mxu0 %v587
    %v850 = vpop.f32.mrb[0].mxu0
    %v851 = vadd.f32 0.0, %v850
    %v852 = vpop.f32.mrb[0].mxu0
    %853 = vmatprep.mubr.f32.mxu0 0.0
    %854 = vmatmul.mubr.f32.gmra.mrb[0].mxu0 %v590
    %v855 = vpop.f32.mrb[0].mxu0
    %v856 = vadd.f32 0.0, %v855
    %v857 = vpop.f32.mrb[0].mxu0
    %858 = vmatprep.mubr.f32.mxu0 0.0
    %859 = vmatmul.mubr.f32.gmra.mrb[0].mxu0 %v593
    %v860 = vpop.f32.mrb[0].mxu0
    %v861 = vadd.f32 0.0, %v860
    %v862 = vpop.f32.mrb[0].mxu0
    %863 = vmatprep.mubr.f32.mxu0 0.0
    %864 = vmatmul.mubr.f32.gmra.mrb[0].mxu0 %v596
    %v865 = vpop.f32.mrb[0].mxu0
    %v866 = vadd.f32 0.0, %v865
    %v867 = vpop.f32.mrb[0].mxu0
    %868 = vmatprep.mubr.f32.mxu0 0.0
    %869 = vmatmul.mubr.f32.gmra.mrb[0].mxu0 %v599
    %v870 = vpop.f32.mrb[0].mxu0
    %v871 = vadd.f32 0.0, %v870
    %v872 = vpop.f32.mrb[0].mxu0
    %873 = vmatprep.mubr.f32.mxu0 0.0
    %874 = vmatmul.mubr.f32.gmra.mrb[0].mxu0 %v602
    %v875 = vpop.f32.mrb[0].mxu0
    %v876 = vadd.f32 0.0, %v875
    %v877 = vpop.f32.mrb[0].mxu0
    %878 = vmatprep.mubr.f32.mxu0 0.0
    %879 = vmatmul.mubr.f32.gmra.mrb[0].mxu0 %v605
    %v880 = vpop.f32.mrb[0].mxu0
    %v881 = vadd.f32 0.0, %v880
    %v882 = vpop.f32.mrb[0].mxu0
    %883 = vmatprep.mubr.f32.mxu0 0.0
    %884 = vmatmul.mubr.f32.gmra.mrb[0].mxu0 %v608
    %v885 = vpop.f32.mrb[0].mxu0
    %v886 = vadd.f32 0.0, %v885
    %v887 = vpop.f32.mrb[0].mxu0
    %888 = vmatprep.mubr.f32.mxu0 0.0
    %889 = vmatmul.mubr.f32.gmra.mrb[0].mxu0 %v611
    %v890 = vpop.f32.mrb[0].mxu0
    %v891 = vadd.f32 0.0, %v890
    %v892 = vpop.f32.mrb[0].mxu0
    %893 = vmatprep.mubr.f32.mxu0 0.0
    %894 = vmatmul.mubr.f32.gmra.mrb[0].mxu0 %v614
    %v895 = vpop.f32.mrb[0].mxu0
    %v896 = vadd.f32 0.0, %v895
    %v897 = vpop.f32.mrb[0].mxu0
    %898 = vmatprep.mubr.f32.mxu0 0.0
    %899 = vmatmul.mubr.f32.gmra.mrb[0].mxu0 %v617
    %v900 = vpop.f32.mrb[0].mxu0
    %v901 = vadd.f32 0.0, %v900
    %v902 = vpop.f32.mrb[0].mxu0
    %903 = vmatprep.mubr.f32.mxu0 0.0
    %904 = vmatmul.mubr.f32.gmra.mrb[0].mxu0 %v620
    %v905 = vpop.f32.mrb[0].mxu0
    %v906 = vadd.f32 0.0, %v905
    %v907 = vpop.f32.mrb[0].mxu0
    %908 = vmatprep.mubr.f32.mxu0 0.0
    %909 = vmatmul.mubr.f32.gmra.mrb[0].mxu0 %v623
    %v910 = vpop.f32.mrb[0].mxu0
    %v911 = vadd.f32 0.0, %v910
    %v912 = vpop.f32.mrb[0].mxu0
    %913 = vmatprep.mubr.f32.mxu0 0.0
    %914 = vmatmul.mubr.f32.gmra.mrb[0].mxu0 %v626
    %v915 = vpop.f32.mrb[0].mxu0
    %v916 = vadd.f32 0.0, %v915
    %v917 = vpop.f32.mrb[0].mxu0
    %918 = vmatprep.mubr.f32.mxu0 0.0
    %919 = vmatmul.mubr.f32.gmra.mrb[0].mxu0 %v629
    %v920 = vpop.f32.mrb[0].mxu0
    %v921 = vadd.f32 0.0, %v920
    %v922 = vpop.f32.mrb[0].mxu0
    %923 = vmatprep.mubr.f32.mxu0 0.0
    %924 = vmatmul.mubr.f32.gmra.mrb[0].mxu0 %v632
    %v925 = vpop.f32.mrb[0].mxu0
    %v926 = vadd.f32 0.0, %v925
    %v927 = vpop.f32.mrb[0].mxu0
    %928 = vdwg.mxu0
    %s929 = scalar_lea.vmem %s3, 64
    %v930 = vld [vmem:[%s929] sm:$0xff]
    %v931 = vld [vmem:[%s929 + $0x8] sm:$0xff]
    %v932 = vld [vmem:[%s929 + $0x10] sm:$0xff]
    %v933 = vld [vmem:[%s929 + $0x18] sm:$0xff]
    %934 = vmatprep.subr.mxu0 0.0
    %935 = vmatpush1.msra.mxu0 %v930
    %936 = vmatprep.subr.mxu0 0.0
    %937 = vmatpush1.msra.mxu0 %v931
    %938 = vmatprep.subr.mxu0 0.0
    %939 = vmatpush1.msra.mxu0 %v932
    %940 = vmatprep.subr.mxu0 0.0
    %941 = vmatpush1.msra.mxu0 %v933
    %942 = vmatprep.subr.mxu0 0.0
    %943 = vmatpush1.msra.mxu0 0.0
    %944 = vmatprep.subr.mxu0 0.0
    %945 = vmatpush1.msra.mxu0 0.0
    %946 = vmatprep.subr.mxu0 0.0
    %947 = vmatpush1.msra.mxu0 0.0
    %948 = vmatprep.subr.mxu0 0.0
    %949 = vmatpush1.msra.mxu0 0.0
    %950 = vmatprep.subr.mxu0 0.0
    %951 = vmatpush1.msra.mxu0 0.0
    %952 = vmatprep.subr.mxu0 0.0
    %953 = vmatpush1.msra.mxu0 0.0
    %954 = vmatprep.subr.mxu0 0.0
    %955 = vmatpush1.msra.mxu0 0.0
    %956 = vmatprep.subr.mxu0 0.0
    %957 = vmatpush1.msra.mxu0 0.0
    %958 = vmatprep.subr.mxu0 0.0
    %959 = vmatpush1.msra.mxu0 0.0
    %960 = vmatprep.subr.mxu0 0.0
    %961 = vmatpush1.msra.mxu0 0.0
    %962 = vmatprep.subr.mxu0 0.0
    %963 = vmatpush1.msra.mxu0 0.0
    %964 = vmatprep.subr.mxu0 0.0
    %965 = vmatpush1.msra.mxu0 0.0
    %966 = vmatprep.subr.mxu0 0.0
    %967 = vmatpush1.msra.mxu0 0.0
    %968 = vmatprep.subr.mxu0 0.0
    %969 = vmatpush1.msra.mxu0 0.0
    %970 = vmatprep.subr.mxu0 0.0
    %971 = vmatpush1.msra.mxu0 0.0
    %972 = vmatprep.subr.mxu0 0.0
    %973 = vmatpush1.msra.mxu0 0.0
    %974 = vmatprep.subr.mxu0 0.0
    %975 = vmatpush1.msra.mxu0 0.0
    %976 = vmatprep.subr.mxu0 0.0
    %977 = vmatpush1.msra.mxu0 0.0
    %978 = vmatprep.subr.mxu0 0.0
    %979 = vmatpush1.msra.mxu0 0.0
    %980 = vmatprep.subr.mxu0 0.0
    %981 = vmatpush1.msra.mxu0 0.0
    %982 = vmatprep.subr.mxu0 0.0
    %983 = vmatpush1.msra.mxu0 0.0
    %984 = vmatprep.subr.mxu0 0.0
    %985 = vmatpush1.msra.mxu0 0.0
    %986 = vmatprep.subr.mxu0 0.0
    %987 = vmatpush1.msra.mxu0 0.0
    %988 = vmatprep.subr.mxu0 0.0
    %989 = vmatpush1.msra.mxu0 0.0
    %990 = vmatprep.subr.mxu0 0.0
    %991 = vmatpush1.msra.mxu0 0.0
    %992 = vmatprep.subr.mxu0 0.0
    %993 = vmatpush1.msra.mxu0 0.0
    %994 = vmatprep.subr.mxu0 0.0
    %995 = vmatpush1.msra.mxu0 0.0
    %996 = vmatprep.subr.mxu0 0.0
    %997 = vmatpush1.msra.mxu0 0.0
    %998 = vmatprep.mubr.f32.mxu0 0.0
    %999 = vmatmul.mubr.f32.gmra.mrb[0].mxu0 %v587
    %v1000 = vpop.f32.mrb[0].mxu0
    %v1001 = vadd.f32 0.0, %v1000
    %v1002 = vpop.f32.mrb[0].mxu0
    %1003 = vmatprep.mubr.f32.mxu0 0.0
    %1004 = vmatmul.mubr.f32.gmra.mrb[0].mxu0 %v590
    %v1005 = vpop.f32.mrb[0].mxu0
    %v1006 = vadd.f32 0.0, %v1005
    %v1007 = vpop.f32.mrb[0].mxu0
    %1008 = vmatprep.mubr.f32.mxu0 0.0
    %1009 = vmatmul.mubr.f32.gmra.mrb[0].mxu0 %v593
    %v1010 = vpop.f32.mrb[0].mxu0
    %v1011 = vadd.f32 0.0, %v1010
    %v1012 = vpop.f32.mrb[0].mxu0
    %1013 = vmatprep.mubr.f32.mxu0 0.0
    %1014 = vmatmul.mubr.f32.gmra.mrb[0].mxu0 %v596
    %v1015 = vpop.f32.mrb[0].mxu0
    %v1016 = vadd.f32 0.0, %v1015
    %v1017 = vpop.f32.mrb[0].mxu0
    %1018 = vmatprep.mubr.f32.mxu0 0.0
    %1019 = vmatmul.mubr.f32.gmra.mrb[0].mxu0 %v599
    %v1020 = vpop.f32.mrb[0].mxu0
    %v1021 = vadd.f32 0.0, %v1020
    %v1022 = vpop.f32.mrb[0].mxu0
    %1023 = vmatprep.mubr.f32.mxu0 0.0
    %1024 = vmatmul.mubr.f32.gmra.mrb[0].mxu0 %v602
    %v1025 = vpop.f32.mrb[0].mxu0
    %v1026 = vadd.f32 0.0, %v1025
    %v1027 = vpop.f32.mrb[0].mxu0
    %1028 = vmatprep.mubr.f32.mxu0 0.0
    %1029 = vmatmul.mubr.f32.gmra.mrb[0].mxu0 %v605
    %v1030 = vpop.f32.mrb[0].mxu0
    %v1031 = vadd.f32 0.0, %v1030
    %v1032 = vpop.f32.mrb[0].mxu0
    %1033 = vmatprep.mubr.f32.mxu0 0.0
    %1034 = vmatmul.mubr.f32.gmra.mrb[0].mxu0 %v608
    %v1035 = vpop.f32.mrb[0].mxu0
    %v1036 = vadd.f32 0.0, %v1035
    %v1037 = vpop.f32.mrb[0].mxu0
    %1038 = vmatprep.mubr.f32.mxu0 0.0
    %1039 = vmatmul.mubr.f32.gmra.mrb[0].mxu0 %v611
    %v1040 = vpop.f32.mrb[0].mxu0
    %v1041 = vadd.f32 0.0, %v1040
    %v1042 = vpop.f32.mrb[0].mxu0
    %1043 = vmatprep.mubr.f32.mxu0 0.0
    %1044 = vmatmul.mubr.f32.gmra.mrb[0].mxu0 %v614
    %v1045 = vpop.f32.mrb[0].mxu0
    %v1046 = vadd.f32 0.0, %v1045
    %v1047 = vpop.f32.mrb[0].mxu0
    %1048 = vmatprep.mubr.f32.mxu0 0.0
    %1049 = vmatmul.mubr.f32.gmra.mrb[0].mxu0 %v617
    %v1050 = vpop.f32.mrb[0].mxu0
    %v1051 = vadd.f32 0.0, %v1050
    %v1052 = vpop.f32.mrb[0].mxu0
    %1053 = vmatprep.mubr.f32.mxu0 0.0
    %1054 = vmatmul.mubr.f32.gmra.mrb[0].mxu0 %v620
    %v1055 = vpop.f32.mrb[0].mxu0
    %v1056 = vadd.f32 0.0, %v1055
    %v1057 = vpop.f32.mrb[0].mxu0
    %1058 = vmatprep.mubr.f32.mxu0 0.0
    %1059 = vmatmul.mubr.f32.gmra.mrb[0].mxu0 %v623
    %v1060 = vpop.f32.mrb[0].mxu0
    %v1061 = vadd.f32 0.0, %v1060
    %v1062 = vpop.f32.mrb[0].mxu0
    %1063 = vmatprep.mubr.f32.mxu0 0.0
    %1064 = vmatmul.mubr.f32.gmra.mrb[0].mxu0 %v626
    %v1065 = vpop.f32.mrb[0].mxu0
    %v1066 = vadd.f32 0.0, %v1065
    %v1067 = vpop.f32.mrb[0].mxu0
    %1068 = vmatprep.mubr.f32.mxu0 0.0
    %1069 = vmatmul.mubr.f32.gmra.mrb[0].mxu0 %v629
    %v1070 = vpop.f32.mrb[0].mxu0
    %v1071 = vadd.f32 0.0, %v1070
    %v1072 = vpop.f32.mrb[0].mxu0
    %1073 = vmatprep.mubr.f32.mxu0 0.0
    %1074 = vmatmul.mubr.f32.gmra.mrb[0].mxu0 %v632
    %v1075 = vpop.f32.mrb[0].mxu0
    %v1076 = vadd.f32 0.0, %v1075
    %v1077 = vpop.f32.mrb[0].mxu0
    %1078 = vdwg.mxu0
    %vm1079 = vcmask 523264
    %v1080 = vsel %vm1079, %v565, 0.0
    %1081 = vadd.xlane.f32.xlu0 %v1080
    %v1082 = vpop.xlane.xlu0 %1081
    %v1083 = vsel %vm1079, %v566, 0.0
    %1084 = vadd.xlane.f32.xlu0 %v1083
    %v1085 = vpop.xlane.xlu0 %1084
    %v1086 = vsel %vm1079, %v567, 0.0
    %1087 = vadd.xlane.f32.xlu0 %v1086
    %v1088 = vpop.xlane.xlu0 %1087
    %v1089 = vsel %vm1079, %v568, 0.0
    %1090 = vadd.xlane.f32.xlu0 %v1089
    %v1091 = vpop.xlane.xlu0 %1090
    %v1092 = vsel %vm1079, %v569, 0.0
    %1093 = vadd.xlane.f32.xlu0 %v1092
    %v1094 = vpop.xlane.xlu0 %1093
    %v1095 = vsel %vm1079, %v570, 0.0
    %1096 = vadd.xlane.f32.xlu0 %v1095
    %v1097 = vpop.xlane.xlu0 %1096
    %v1098 = vsel %vm1079, %v571, 0.0
    %1099 = vadd.xlane.f32.xlu0 %v1098
    %v1100 = vpop.xlane.xlu0 %1099
    %v1101 = vsel %vm1079, %v572, 0.0
    %1102 = vadd.xlane.f32.xlu0 %v1101
    %v1103 = vpop.xlane.xlu0 %1102
    %v1104 = vsel %vm1079, %v573, 0.0
    %1105 = vadd.xlane.f32.xlu0 %v1104
    %v1106 = vpop.xlane.xlu0 %1105
    %v1107 = vsel %vm1079, %v574, 0.0
    %1108 = vadd.xlane.f32.xlu0 %v1107
    %v1109 = vpop.xlane.xlu0 %1108
    %v1110 = vsel %vm1079, %v575, 0.0
    %1111 = vadd.xlane.f32.xlu0 %v1110
    %v1112 = vpop.xlane.xlu0 %1111
    %v1113 = vsel %vm1079, %v576, 0.0
    %1114 = vadd.xlane.f32.xlu0 %v1113
    %v1115 = vpop.xlane.xlu0 %1114
    %v1116 = vsel %vm1079, %v577, 0.0
    %1117 = vadd.xlane.f32.xlu0 %v1116
    %v1118 = vpop.xlane.xlu0 %1117
    %v1119 = vsel %vm1079, %v578, 0.0
    %1120 = vadd.xlane.f32.xlu0 %v1119
    %v1121 = vpop.xlane.xlu0 %1120
    %v1122 = vsel %vm1079, %v579, 0.0
    %1123 = vadd.xlane.f32.xlu0 %v1122
    %v1124 = vpop.xlane.xlu0 %1123
    %v1125 = vsel %vm1079, %v580, 0.0
    %1126 = vadd.xlane.f32.xlu0 %v1125
    %v1127 = vpop.xlane.xlu0 %1126
    %v1128 = vrcp.pop 64.0
    %v1129 = vmul.f32 %v1082, %v1128
    %v1130 = vmul.f32 %v1085, %v1128
    %v1131 = vmul.f32 %v1088, %v1128
    %v1132 = vmul.f32 %v1091, %v1128
    %v1133 = vmul.f32 %v1094, %v1128
    %v1134 = vmul.f32 %v1097, %v1128
    %v1135 = vmul.f32 %v1100, %v1128
    %v1136 = vmul.f32 %v1103, %v1128
    %v1137 = vmul.f32 %v1106, %v1128
    %v1138 = vmul.f32 %v1109, %v1128
    %v1139 = vmul.f32 %v1112, %v1128
    %v1140 = vmul.f32 %v1115, %v1128
    %v1141 = vmul.f32 %v1118, %v1128
    %v1142 = vmul.f32 %v1121, %v1128
    %v1143 = vmul.f32 %v1124, %v1128
    %v1144 = vmul.f32 %v1127, %v1128
    %v1145 = vsub.f32 %v565, %v1129
    %v1146 = vsub.f32 %v566, %v1130
    %v1147 = vsub.f32 %v567, %v1131
    %v1148 = vsub.f32 %v568, %v1132
    %v1149 = vsub.f32 %v569, %v1133
    %v1150 = vsub.f32 %v570, %v1134
    %v1151 = vsub.f32 %v571, %v1135
    %v1152 = vsub.f32 %v572, %v1136
    %v1153 = vsub.f32 %v573, %v1137
    %v1154 = vsub.f32 %v574, %v1138
    %v1155 = vsub.f32 %v575, %v1139
    %v1156 = vsub.f32 %v576, %v1140
    %v1157 = vsub.f32 %v577, %v1141
    %v1158 = vsub.f32 %v578, %v1142
    %v1159 = vsub.f32 %v579, %v1143
    %v1160 = vsub.f32 %v580, %v1144
    %v1161 = vmul.f32 %v1145, %v1145
    %v1162 = vmul.f32 %v1146, %v1146
    %v1163 = vmul.f32 %v1147, %v1147
    %v1164 = vmul.f32 %v1148, %v1148
    %v1165 = vmul.f32 %v1149, %v1149
    %v1166 = vmul.f32 %v1150, %v1150
    %v1167 = vmul.f32 %v1151, %v1151
    %v1168 = vmul.f32 %v1152, %v1152
    %v1169 = vmul.f32 %v1153, %v1153
    %v1170 = vmul.f32 %v1154, %v1154
    %v1171 = vmul.f32 %v1155, %v1155
    %v1172 = vmul.f32 %v1156, %v1156
    %v1173 = vmul.f32 %v1157, %v1157
    %v1174 = vmul.f32 %v1158, %v1158
    %v1175 = vmul.f32 %v1159, %v1159
    %v1176 = vmul.f32 %v1160, %v1160
    %v1177 = vsel %vm1079, %v1161, 0.0
    %1178 = vadd.xlane.f32.xlu0 %v1177
    %v1179 = vpop.xlane.xlu0 %1178
    %v1180 = vsel %vm1079, %v1162, 0.0
    %1181 = vadd.xlane.f32.xlu0 %v1180
    %v1182 = vpop.xlane.xlu0 %1181
    %v1183 = vsel %vm1079, %v1163, 0.0
    %1184 = vadd.xlane.f32.xlu0 %v1183
    %v1185 = vpop.xlane.xlu0 %1184
    %v1186 = vsel %vm1079, %v1164, 0.0
    %1187 = vadd.xlane.f32.xlu0 %v1186
    %v1188 = vpop.xlane.xlu0 %1187
    %v1189 = vsel %vm1079, %v1165, 0.0
    %1190 = vadd.xlane.f32.xlu0 %v1189
    %v1191 = vpop.xlane.xlu0 %1190
    %v1192 = vsel %vm1079, %v1166, 0.0
    %1193 = vadd.xlane.f32.xlu0 %v1192
    %v1194 = vpop.xlane.xlu0 %1193
    %v1195 = vsel %vm1079, %v1167, 0.0
    %1196 = vadd.xlane.f32.xlu0 %v1195
    %v1197 = vpop.xlane.xlu0 %1196
    %v1198 = vsel %vm1079, %v1168, 0.0
    %1199 = vadd.xlane.f32.xlu0 %v1198
    %v1200 = vpop.xlane.xlu0 %1199
    %v1201 = vsel %vm1079, %v1169, 0.0
    %1202 = vadd.xlane.f32.xlu0 %v1201
    %v1203 = vpop.xlane.xlu0 %1202
    %v1204 = vsel %vm1079, %v1170, 0.0
    %1205 = vadd.xlane.f32.xlu0 %v1204
    %v1206 = vpop.xlane.xlu0 %1205
    %v1207 = vsel %vm1079, %v1171, 0.0
    %1208 = vadd.xlane.f32.xlu0 %v1207
    %v1209 = vpop.xlane.xlu0 %1208
    %v1210 = vsel %vm1079, %v1172, 0.0
    %1211 = vadd.xlane.f32.xlu0 %v1210
    %v1212 = vpop.xlane.xlu0 %1211
    %v1213 = vsel %vm1079, %v1173, 0.0
    %1214 = vadd.xlane.f32.xlu0 %v1213
    %v1215 = vpop.xlane.xlu0 %1214
    %v1216 = vsel %vm1079, %v1174, 0.0
    %1217 = vadd.xlane.f32.xlu0 %v1216
    %v1218 = vpop.xlane.xlu0 %1217
    %v1219 = vsel %vm1079, %v1175, 0.0
    %1220 = vadd.xlane.f32.xlu0 %v1219
    %v1221 = vpop.xlane.xlu0 %1220
    %v1222 = vsel %vm1079, %v1176, 0.0
    %1223 = vadd.xlane.f32.xlu0 %v1222
    %v1224 = vpop.xlane.xlu0 %1223
    %v1225 = vmul.f32 %v1179, 0.015873017
    %v1226 = vmul.f32 %v1182, 0.015873017
    %v1227 = vmul.f32 %v1185, 0.015873017
    %v1228 = vmul.f32 %v1188, 0.015873017
    %v1229 = vmul.f32 %v1191, 0.015873017
    %v1230 = vmul.f32 %v1194, 0.015873017
    %v1231 = vmul.f32 %v1197, 0.015873017
    %v1232 = vmul.f32 %v1200, 0.015873017
    %v1233 = vmul.f32 %v1203, 0.015873017
    %v1234 = vmul.f32 %v1206, 0.015873017
    %v1235 = vmul.f32 %v1209, 0.015873017
    %v1236 = vmul.f32 %v1212, 0.015873017
    %v1237 = vmul.f32 %v1215, 0.015873017
    %v1238 = vmul.f32 %v1218, 0.015873017
    %v1239 = vmul.f32 %v1221, 0.015873017
    %v1240 = vmul.f32 %v1224, 0.015873017
    %v1241 = vrsqrt.pop %v1225
    %v1242 = vmul.f32 %v1225, %v1241
    %vm1243 = vcmp.eq.f32.partialorder %v1225, inf
    %v1244 = vsel %vm1243, %v1225, %v1242
    %vm1245 = vcmp.eq.f32.partialorder %v1225, 0.0
    %v1246 = vand.u32 %v1225, 2147483648
    %v1247 = vsel %vm1245, %v1246, %v1244
    %v1248 = vrsqrt.pop %v1226
    %v1249 = vmul.f32 %v1226, %v1248
    %vm1250 = vcmp.eq.f32.partialorder %v1226, inf
    %v1251 = vsel %vm1250, %v1226, %v1249
    %vm1252 = vcmp.eq.f32.partialorder %v1226, 0.0
    %v1253 = vand.u32 %v1226, 2147483648
    %v1254 = vsel %vm1252, %v1253, %v1251
    %v1255 = vrsqrt.pop %v1227
    %v1256 = vmul.f32 %v1227, %v1255
    %vm1257 = vcmp.eq.f32.partialorder %v1227, inf
    %v1258 = vsel %vm1257, %v1227, %v1256
    %vm1259 = vcmp.eq.f32.partialorder %v1227, 0.0
    %v1260 = vand.u32 %v1227, 2147483648
    %v1261 = vsel %vm1259, %v1260, %v1258
    %v1262 = vrsqrt.pop %v1228
    %v1263 = vmul.f32 %v1228, %v1262
    %vm1264 = vcmp.eq.f32.partialorder %v1228, inf
    %v1265 = vsel %vm1264, %v1228, %v1263
    %vm1266 = vcmp.eq.f32.partialorder %v1228, 0.0
    %v1267 = vand.u32 %v1228, 2147483648
    %v1268 = vsel %vm1266, %v1267, %v1265
    %v1269 = vrsqrt.pop %v1229
    %v1270 = vmul.f32 %v1229, %v1269
    %vm1271 = vcmp.eq.f32.partialorder %v1229, inf
    %v1272 = vsel %vm1271, %v1229, %v1270
    %vm1273 = vcmp.eq.f32.partialorder %v1229, 0.0
    %v1274 = vand.u32 %v1229, 2147483648
    %v1275 = vsel %vm1273, %v1274, %v1272
    %v1276 = vrsqrt.pop %v1230
    %v1277 = vmul.f32 %v1230, %v1276
    %vm1278 = vcmp.eq.f32.partialorder %v1230, inf
    %v1279 = vsel %vm1278, %v1230, %v1277
    %vm1280 = vcmp.eq.f32.partialorder %v1230, 0.0
    %v1281 = vand.u32 %v1230, 2147483648
    %v1282 = vsel %vm1280, %v1281, %v1279
    %v1283 = vrsqrt.pop %v1231
    %v1284 = vmul.f32 %v1231, %v1283
    %vm1285 = vcmp.eq.f32.partialorder %v1231, inf
    %v1286 = vsel %vm1285, %v1231, %v1284
    %vm1287 = vcmp.eq.f32.partialorder %v1231, 0.0
    %v1288 = vand.u32 %v1231, 2147483648
    %v1289 = vsel %vm1287, %v1288, %v1286
    %v1290 = vrsqrt.pop %v1232
    %v1291 = vmul.f32 %v1232, %v1290
    %vm1292 = vcmp.eq.f32.partialorder %v1232, inf
    %v1293 = vsel %vm1292, %v1232, %v1291
    %vm1294 = vcmp.eq.f32.partialorder %v1232, 0.0
    %v1295 = vand.u32 %v1232, 2147483648
    %v1296 = vsel %vm1294, %v1295, %v1293
    %v1297 = vrsqrt.pop %v1233
    %v1298 = vmul.f32 %v1233, %v1297
    %vm1299 = vcmp.eq.f32.partialorder %v1233, inf
    %v1300 = vsel %vm1299, %v1233, %v1298
    %vm1301 = vcmp.eq.f32.partialorder %v1233, 0.0
    %v1302 = vand.u32 %v1233, 2147483648
    %v1303 = vsel %vm1301, %v1302, %v1300
    %v1304 = vrsqrt.pop %v1234
    %v1305 = vmul.f32 %v1234, %v1304
    %vm1306 = vcmp.eq.f32.partialorder %v1234, inf
    %v1307 = vsel %vm1306, %v1234, %v1305
    %vm1308 = vcmp.eq.f32.partialorder %v1234, 0.0
    %v1309 = vand.u32 %v1234, 2147483648
    %v1310 = vsel %vm1308, %v1309, %v1307
    %v1311 = vrsqrt.pop %v1235
    %v1312 = vmul.f32 %v1235, %v1311
    %vm1313 = vcmp.eq.f32.partialorder %v1235, inf
    %v1314 = vsel %vm1313, %v1235, %v1312
    %vm1315 = vcmp.eq.f32.partialorder %v1235, 0.0
    %v1316 = vand.u32 %v1235, 2147483648
    %v1317 = vsel %vm1315, %v1316, %v1314
    %v1318 = vrsqrt.pop %v1236
    %v1319 = vmul.f32 %v1236, %v1318
    %vm1320 = vcmp.eq.f32.partialorder %v1236, inf
    %v1321 = vsel %vm1320, %v1236, %v1319
    %vm1322 = vcmp.eq.f32.partialorder %v1236, 0.0
    %v1323 = vand.u32 %v1236, 2147483648
    %v1324 = vsel %vm1322, %v1323, %v1321
    %v1325 = vrsqrt.pop %v1237
    %v1326 = vmul.f32 %v1237, %v1325
    %vm1327 = vcmp.eq.f32.partialorder %v1237, inf
    %v1328 = vsel %vm1327, %v1237, %v1326
    %vm1329 = vcmp.eq.f32.partialorder %v1237, 0.0
    %v1330 = vand.u32 %v1237, 2147483648
    %v1331 = vsel %vm1329, %v1330, %v1328
    %v1332 = vrsqrt.pop %v1238
    %v1333 = vmul.f32 %v1238, %v1332
    %vm1334 = vcmp.eq.f32.partialorder %v1238, inf
    %v1335 = vsel %vm1334, %v1238, %v1333
    %vm1336 = vcmp.eq.f32.partialorder %v1238, 0.0
    %v1337 = vand.u32 %v1238, 2147483648
    %v1338 = vsel %vm1336, %v1337, %v1335
    %v1339 = vrsqrt.pop %v1239
    %v1340 = vmul.f32 %v1239, %v1339
    %vm1341 = vcmp.eq.f32.partialorder %v1239, inf
    %v1342 = vsel %vm1341, %v1239, %v1340
    %vm1343 = vcmp.eq.f32.partialorder %v1239, 0.0
    %v1344 = vand.u32 %v1239, 2147483648
    %v1345 = vsel %vm1343, %v1344, %v1342
    %v1346 = vrsqrt.pop %v1240
    %v1347 = vmul.f32 %v1240, %v1346
    %vm1348 = vcmp.eq.f32.partialorder %v1240, inf
    %v1349 = vsel %vm1348, %v1240, %v1347
    %vm1350 = vcmp.eq.f32.partialorder %v1240, 0.0
    %v1351 = vand.u32 %v1240, 2147483648
    %v1352 = vsel %vm1350, %v1351, %v1349
    %v1353 = vadd.f32 %v1247, 1e-05
    %v1354 = vadd.f32 %v1254, 1e-05
    %v1355 = vadd.f32 %v1261, 1e-05
    %v1356 = vadd.f32 %v1268, 1e-05
    %v1357 = vadd.f32 %v1275, 1e-05
    %v1358 = vadd.f32 %v1282, 1e-05
    %v1359 = vadd.f32 %v1289, 1e-05
    %v1360 = vadd.f32 %v1296, 1e-05
    %v1361 = vadd.f32 %v1303, 1e-05
    %v1362 = vadd.f32 %v1310, 1e-05
    %v1363 = vadd.f32 %v1317, 1e-05
    %v1364 = vadd.f32 %v1324, 1e-05
    %v1365 = vadd.f32 %v1331, 1e-05
    %v1366 = vadd.f32 %v1338, 1e-05
    %v1367 = vadd.f32 %v1345, 1e-05
    %v1368 = vadd.f32 %v1352, 1e-05
    %v1369 = vrcp.pop %v1353
    %v1370 = vrcp.pop %v1354
    %v1371 = vrcp.pop %v1355
    %v1372 = vrcp.pop %v1356
    %v1373 = vrcp.pop %v1357
    %v1374 = vrcp.pop %v1358
    %v1375 = vrcp.pop %v1359
    %v1376 = vrcp.pop %v1360
    %v1377 = vrcp.pop %v1361
    %v1378 = vrcp.pop %v1362
    %v1379 = vrcp.pop %v1363
    %v1380 = vrcp.pop %v1364
    %v1381 = vrcp.pop %v1365
    %v1382 = vrcp.pop %v1366
    %v1383 = vrcp.pop %v1367
    %v1384 = vrcp.pop %v1368
    %v1385 = vmul.f32 %v851, %v1145
    %v1386 = vmul.f32 %v856, %v1146
    %v1387 = vmul.f32 %v861, %v1147
    %v1388 = vmul.f32 %v866, %v1148
    %v1389 = vmul.f32 %v871, %v1149
    %v1390 = vmul.f32 %v876, %v1150
    %v1391 = vmul.f32 %v881, %v1151
    %v1392 = vmul.f32 %v886, %v1152
    %v1393 = vmul.f32 %v891, %v1153
    %v1394 = vmul.f32 %v896, %v1154
    %v1395 = vmul.f32 %v901, %v1155
    %v1396 = vmul.f32 %v906, %v1156
    %v1397 = vmul.f32 %v911, %v1157
    %v1398 = vmul.f32 %v916, %v1158
    %v1399 = vmul.f32 %v921, %v1159
    %v1400 = vmul.f32 %v926, %v1160
    %v1401 = vmul.f32 %v1385, %v1369
    %v1402 = vmul.f32 %v1386, %v1370
    %v1403 = vmul.f32 %v1387, %v1371
    %v1404 = vmul.f32 %v1388, %v1372
    %v1405 = vmul.f32 %v1389, %v1373
    %v1406 = vmul.f32 %v1390, %v1374
    %v1407 = vmul.f32 %v1391, %v1375
    %v1408 = vmul.f32 %v1392, %v1376
    %v1409 = vmul.f32 %v1393, %v1377
    %v1410 = vmul.f32 %v1394, %v1378
    %v1411 = vmul.f32 %v1395, %v1379
    %v1412 = vmul.f32 %v1396, %v1380
    %v1413 = vmul.f32 %v1397, %v1381
    %v1414 = vmul.f32 %v1398, %v1382
    %v1415 = vmul.f32 %v1399, %v1383
    %v1416 = vmul.f32 %v1400, %v1384
    %v1417 = vadd.f32 %v1401, %v701
    %v1418 = vadd.f32 %v1402, %v706
    %v1419 = vadd.f32 %v1403, %v711
    %v1420 = vadd.f32 %v1404, %v716
    %v1421 = vadd.f32 %v1405, %v721
    %v1422 = vadd.f32 %v1406, %v726
    %v1423 = vadd.f32 %v1407, %v731
    %v1424 = vadd.f32 %v1408, %v736
    %v1425 = vadd.f32 %v1409, %v741
    %v1426 = vadd.f32 %v1410, %v746
    %v1427 = vadd.f32 %v1411, %v751
    %v1428 = vadd.f32 %v1412, %v756
    %v1429 = vadd.f32 %v1413, %v761
    %v1430 = vadd.f32 %v1414, %v766
    %v1431 = vadd.f32 %v1415, %v771
    %v1432 = vadd.f32 %v1416, %v776
    %vm1433 = vcmp.gt.f32.partialorder %v1417, 0.0
    %vm1434 = vcmp.gt.f32.partialorder %v1418, 0.0
    %vm1435 = vcmp.gt.f32.partialorder %v1419, 0.0
    %vm1436 = vcmp.gt.f32.partialorder %v1420, 0.0
    %vm1437 = vcmp.gt.f32.partialorder %v1421, 0.0
    %vm1438 = vcmp.gt.f32.partialorder %v1422, 0.0
    %vm1439 = vcmp.gt.f32.partialorder %v1423, 0.0
    %vm1440 = vcmp.gt.f32.partialorder %v1424, 0.0
    %vm1441 = vcmp.gt.f32.partialorder %v1425, 0.0
    %vm1442 = vcmp.gt.f32.partialorder %v1426, 0.0
    %vm1443 = vcmp.gt.f32.partialorder %v1427, 0.0
    %vm1444 = vcmp.gt.f32.partialorder %v1428, 0.0
    %vm1445 = vcmp.gt.f32.partialorder %v1429, 0.0
    %vm1446 = vcmp.gt.f32.partialorder %v1430, 0.0
    %vm1447 = vcmp.gt.f32.partialorder %v1431, 0.0
    %vm1448 = vcmp.gt.f32.partialorder %v1432, 0.0
    %v1449 = vmul.f32 %v1417, 0.01
    %v1450 = vmul.f32 %v1418, 0.01
    %v1451 = vmul.f32 %v1419, 0.01
    %v1452 = vmul.f32 %v1420, 0.01
    %v1453 = vmul.f32 %v1421, 0.01
    %v1454 = vmul.f32 %v1422, 0.01
    %v1455 = vmul.f32 %v1423, 0.01
    %v1456 = vmul.f32 %v1424, 0.01
    %v1457 = vmul.f32 %v1425, 0.01
    %v1458 = vmul.f32 %v1426, 0.01
    %v1459 = vmul.f32 %v1427, 0.01
    %v1460 = vmul.f32 %v1428, 0.01
    %v1461 = vmul.f32 %v1429, 0.01
    %v1462 = vmul.f32 %v1430, 0.01
    %v1463 = vmul.f32 %v1431, 0.01
    %v1464 = vmul.f32 %v1432, 0.01
    %v1465 = vsel %vm1433, %v1417, %v1449
    %v1466 = vsel %vm1434, %v1418, %v1450
    %v1467 = vsel %vm1435, %v1419, %v1451
    %v1468 = vsel %vm1436, %v1420, %v1452
    %v1469 = vsel %vm1437, %v1421, %v1453
    %v1470 = vsel %vm1438, %v1422, %v1454
    %v1471 = vsel %vm1439, %v1423, %v1455
    %v1472 = vsel %vm1440, %v1424, %v1456
    %v1473 = vsel %vm1441, %v1425, %v1457
    %v1474 = vsel %vm1442, %v1426, %v1458
    %v1475 = vsel %vm1443, %v1427, %v1459
    %v1476 = vsel %vm1444, %v1428, %v1460
    %v1477 = vsel %vm1445, %v1429, %v1461
    %v1478 = vsel %vm1446, %v1430, %v1462
    %v1479 = vsel %vm1447, %v1431, %v1463
    %v1480 = vsel %vm1448, %v1432, %v1464
    %v1481 = vld [vmem:[%s6] sm:$0xff]
    %v1482 = vld [vmem:[%s6 + $0x8] sm:$0xff]
    %v1483 = vld [vmem:[%s6 + $0x10] sm:$0xff]
    %v1484 = vld [vmem:[%s6 + $0x18] sm:$0xff]
    %v1485 = vld [vmem:[%s6 + $0x20] sm:$0xff]
    %v1486 = vld [vmem:[%s6 + $0x28] sm:$0xff]
    %v1487 = vld [vmem:[%s6 + $0x30] sm:$0xff]
    %v1488 = vld [vmem:[%s6 + $0x38] sm:$0xff]
    %v1489 = vld [vmem:[%s7] sm:$0x1]
    %v1491 = vlaneseq
    %v1492 = vshrl.u32 %v1491, 7
    %v1493 = vsub.s32 0, %v1492
    %v1494 = vrot.slane %v1489, %v1493
    %v1497 = vsel %vm1079, %v1465, 0
    %v1500 = vsel %vm1079, %v1466, 0
    %v1503 = vsel %vm1079, %v1467, 0
    %v1506 = vsel %vm1079, %v1468, 0
    %v1509 = vsel %vm1079, %v1469, 0
    %v1512 = vsel %vm1079, %v1470, 0
    %v1515 = vsel %vm1079, %v1471, 0
    %v1518 = vsel %vm1079, %v1472, 0
    %v1521 = vsel %vm1079, %v1473, 0
    %v1524 = vsel %vm1079, %v1474, 0
    %v1527 = vsel %vm1079, %v1475, 0
    %v1530 = vsel %vm1079, %v1476, 0
    %v1533 = vsel %vm1079, %v1477, 0
    %v1536 = vsel %vm1079, %v1478, 0
    %v1539 = vsel %vm1079, %v1479, 0
    %v1542 = vsel %vm1079, %v1480, 0
    %1544 = vmatprep.subr.mxu0 0.0
    %1545 = vmatpush1.msra.mxu0 %v1481
    %1546 = vmatprep.subr.mxu0 0.0
    %1547 = vmatpush1.msra.mxu0 %v1482
    %1548 = vmatprep.subr.mxu0 0.0
    %1549 = vmatpush1.msra.mxu0 %v1483
    %1550 = vmatprep.subr.mxu0 0.0
    %1551 = vmatpush1.msra.mxu0 %v1484
    %1552 = vmatprep.subr.mxu0 0.0
    %1553 = vmatpush1.msra.mxu0 %v1485
    %1554 = vmatprep.subr.mxu0 0.0
    %1555 = vmatpush1.msra.mxu0 %v1486
    %1556 = vmatprep.subr.mxu0 0.0
    %1557 = vmatpush1.msra.mxu0 %v1487
    %1558 = vmatprep.subr.mxu0 0.0
    %1559 = vmatpush1.msra.mxu0 %v1488
    %1560 = vmatprep.subr.mxu0 0.0
    %1561 = vmatpush1.msra.mxu0 0.0
    %1562 = vmatprep.subr.mxu0 0.0
    %1563 = vmatpush1.msra.mxu0 0.0
    %1564 = vmatprep.subr.mxu0 0.0
    %1565 = vmatpush1.msra.mxu0 0.0
    %1566 = vmatprep.subr.mxu0 0.0
    %1567 = vmatpush1.msra.mxu0 0.0
    %1568 = vmatprep.subr.mxu0 0.0
    %1569 = vmatpush1.msra.mxu0 0.0
    %1570 = vmatprep.subr.mxu0 0.0
    %1571 = vmatpush1.msra.mxu0 0.0
    %1572 = vmatprep.subr.mxu0 0.0
    %1573 = vmatpush1.msra.mxu0 0.0
    %1574 = vmatprep.subr.mxu0 0.0
    %1575 = vmatpush1.msra.mxu0 0.0
    %1576 = vmatprep.subr.mxu0 0.0
    %1577 = vmatpush1.msra.mxu0 0.0
    %1578 = vmatprep.subr.mxu0 0.0
    %1579 = vmatpush1.msra.mxu0 0.0
    %1580 = vmatprep.subr.mxu0 0.0
    %1581 = vmatpush1.msra.mxu0 0.0
    %1582 = vmatprep.subr.mxu0 0.0
    %1583 = vmatpush1.msra.mxu0 0.0
    %1584 = vmatprep.subr.mxu0 0.0
    %1585 = vmatpush1.msra.mxu0 0.0
    %1586 = vmatprep.subr.mxu0 0.0
    %1587 = vmatpush1.msra.mxu0 0.0
    %1588 = vmatprep.subr.mxu0 0.0
    %1589 = vmatpush1.msra.mxu0 0.0
    %1590 = vmatprep.subr.mxu0 0.0
    %1591 = vmatpush1.msra.mxu0 0.0
    %1592 = vmatprep.subr.mxu0 0.0
    %1593 = vmatpush1.msra.mxu0 0.0
    %1594 = vmatprep.subr.mxu0 0.0
    %1595 = vmatpush1.msra.mxu0 0.0
    %1596 = vmatprep.subr.mxu0 0.0
    %1597 = vmatpush1.msra.mxu0 0.0
    %1598 = vmatprep.subr.mxu0 0.0
    %1599 = vmatpush1.msra.mxu0 0.0
    %1600 = vmatprep.subr.mxu0 0.0
    %1601 = vmatpush1.msra.mxu0 0.0
    %1602 = vmatprep.subr.mxu0 0.0
    %1603 = vmatpush1.msra.mxu0 0.0
    %1604 = vmatprep.subr.mxu0 0.0
    %1605 = vmatpush1.msra.mxu0 0.0
    %1606 = vmatprep.subr.mxu0 0.0
    %1607 = vmatpush1.msra.mxu0 0.0
    %1608 = vmatprep.mubr.f32.mxu0 0.0
    %1609 = vmatmul.mubr.f32.gmra.mrb[0].mxu0 %v1497
    %v1610 = vpop.f32.mrb[0].mxu0
    %v1611 = vadd.f32 %v1494, %v1610
    %v1612 = vpop.f32.mrb[0].mxu0
    %1613 = vmatprep.mubr.f32.mxu0 0.0
    %1614 = vmatmul.mubr.f32.gmra.mrb[0].mxu0 %v1500
    %v1615 = vpop.f32.mrb[0].mxu0
    %v1616 = vadd.f32 %v1494, %v1615
    %v1617 = vpop.f32.mrb[0].mxu0
    %1618 = vmatprep.mubr.f32.mxu0 0.0
    %1619 = vmatmul.mubr.f32.gmra.mrb[0].mxu0 %v1503
    %v1620 = vpop.f32.mrb[0].mxu0
    %v1621 = vadd.f32 %v1494, %v1620
    %v1622 = vpop.f32.mrb[0].mxu0
    %1623 = vmatprep.mubr.f32.mxu0 0.0
    %1624 = vmatmul.mubr.f32.gmra.mrb[0].mxu0 %v1506
    %v1625 = vpop.f32.mrb[0].mxu0
    %v1626 = vadd.f32 %v1494, %v1625
    %v1627 = vpop.f32.mrb[0].mxu0
    %1628 = vmatprep.mubr.f32.mxu0 0.0
    %1629 = vmatmul.mubr.f32.gmra.mrb[0].mxu0 %v1509
    %v1630 = vpop.f32.mrb[0].mxu0
    %v1631 = vadd.f32 %v1494, %v1630
    %v1632 = vpop.f32.mrb[0].mxu0
    %1633 = vmatprep.mubr.f32.mxu0 0.0
    %1634 = vmatmul.mubr.f32.gmra.mrb[0].mxu0 %v1512
    %v1635 = vpop.f32.mrb[0].mxu0
    %v1636 = vadd.f32 %v1494, %v1635
    %v1637 = vpop.f32.mrb[0].mxu0
    %1638 = vmatprep.mubr.f32.mxu0 0.0
    %1639 = vmatmul.mubr.f32.gmra.mrb[0].mxu0 %v1515
    %v1640 = vpop.f32.mrb[0].mxu0
    %v1641 = vadd.f32 %v1494, %v1640
    %v1642 = vpop.f32.mrb[0].mxu0
    %1643 = vmatprep.mubr.f32.mxu0 0.0
    %1644 = vmatmul.mubr.f32.gmra.mrb[0].mxu0 %v1518
    %v1645 = vpop.f32.mrb[0].mxu0
    %v1646 = vadd.f32 %v1494, %v1645
    %v1647 = vpop.f32.mrb[0].mxu0
    %1648 = vmatprep.mubr.f32.mxu0 0.0
    %1649 = vmatmul.mubr.f32.gmra.mrb[0].mxu0 %v1521
    %v1650 = vpop.f32.mrb[0].mxu0
    %v1651 = vadd.f32 %v1494, %v1650
    %v1652 = vpop.f32.mrb[0].mxu0
    %1653 = vmatprep.mubr.f32.mxu0 0.0
    %1654 = vmatmul.mubr.f32.gmra.mrb[0].mxu0 %v1524
    %v1655 = vpop.f32.mrb[0].mxu0
    %v1656 = vadd.f32 %v1494, %v1655
    %v1657 = vpop.f32.mrb[0].mxu0
    %1658 = vmatprep.mubr.f32.mxu0 0.0
    %1659 = vmatmul.mubr.f32.gmra.mrb[0].mxu0 %v1527
    %v1660 = vpop.f32.mrb[0].mxu0
    %v1661 = vadd.f32 %v1494, %v1660
    %v1662 = vpop.f32.mrb[0].mxu0
    %1663 = vmatprep.mubr.f32.mxu0 0.0
    %1664 = vmatmul.mubr.f32.gmra.mrb[0].mxu0 %v1530
    %v1665 = vpop.f32.mrb[0].mxu0
    %v1666 = vadd.f32 %v1494, %v1665
    %v1667 = vpop.f32.mrb[0].mxu0
    %1668 = vmatprep.mubr.f32.mxu0 0.0
    %1669 = vmatmul.mubr.f32.gmra.mrb[0].mxu0 %v1533
    %v1670 = vpop.f32.mrb[0].mxu0
    %v1671 = vadd.f32 %v1494, %v1670
    %v1672 = vpop.f32.mrb[0].mxu0
    %1673 = vmatprep.mubr.f32.mxu0 0.0
    %1674 = vmatmul.mubr.f32.gmra.mrb[0].mxu0 %v1536
    %v1675 = vpop.f32.mrb[0].mxu0
    %v1676 = vadd.f32 %v1494, %v1675
    %v1677 = vpop.f32.mrb[0].mxu0
    %1678 = vmatprep.mubr.f32.mxu0 0.0
    %1679 = vmatmul.mubr.f32.gmra.mrb[0].mxu0 %v1539
    %v1680 = vpop.f32.mrb[0].mxu0
    %v1681 = vadd.f32 %v1494, %v1680
    %v1682 = vpop.f32.mrb[0].mxu0
    %1683 = vmatprep.mubr.f32.mxu0 0.0
    %1684 = vmatmul.mubr.f32.gmra.mrb[0].mxu0 %v1542
    %v1685 = vpop.f32.mrb[0].mxu0
    %v1686 = vadd.f32 %v1494, %v1685
    %v1687 = vpop.f32.mrb[0].mxu0
    %1688 = vdwg.mxu0
    %v1689 = vsel %vm1079, %v1611, 0.0
    %1690 = vadd.xlane.f32.xlu0 %v1689
    %v1691 = vpop.xlane.xlu0 %1690
    %v1692 = vsel %vm1079, %v1616, 0.0
    %1693 = vadd.xlane.f32.xlu0 %v1692
    %v1694 = vpop.xlane.xlu0 %1693
    %v1695 = vsel %vm1079, %v1621, 0.0
    %1696 = vadd.xlane.f32.xlu0 %v1695
    %v1697 = vpop.xlane.xlu0 %1696
    %v1698 = vsel %vm1079, %v1626, 0.0
    %1699 = vadd.xlane.f32.xlu0 %v1698
    %v1700 = vpop.xlane.xlu0 %1699
    %v1701 = vsel %vm1079, %v1631, 0.0
    %1702 = vadd.xlane.f32.xlu0 %v1701
    %v1703 = vpop.xlane.xlu0 %1702
    %v1704 = vsel %vm1079, %v1636, 0.0
    %1705 = vadd.xlane.f32.xlu0 %v1704
    %v1706 = vpop.xlane.xlu0 %1705
    %v1707 = vsel %vm1079, %v1641, 0.0
    %1708 = vadd.xlane.f32.xlu0 %v1707
    %v1709 = vpop.xlane.xlu0 %1708
    %v1710 = vsel %vm1079, %v1646, 0.0
    %1711 = vadd.xlane.f32.xlu0 %v1710
    %v1712 = vpop.xlane.xlu0 %1711
    %v1713 = vsel %vm1079, %v1651, 0.0
    %1714 = vadd.xlane.f32.xlu0 %v1713
    %v1715 = vpop.xlane.xlu0 %1714
    %v1716 = vsel %vm1079, %v1656, 0.0
    %1717 = vadd.xlane.f32.xlu0 %v1716
    %v1718 = vpop.xlane.xlu0 %1717
    %v1719 = vsel %vm1079, %v1661, 0.0
    %1720 = vadd.xlane.f32.xlu0 %v1719
    %v1721 = vpop.xlane.xlu0 %1720
    %v1722 = vsel %vm1079, %v1666, 0.0
    %1723 = vadd.xlane.f32.xlu0 %v1722
    %v1724 = vpop.xlane.xlu0 %1723
    %v1725 = vsel %vm1079, %v1671, 0.0
    %1726 = vadd.xlane.f32.xlu0 %v1725
    %v1727 = vpop.xlane.xlu0 %1726
    %v1728 = vsel %vm1079, %v1676, 0.0
    %1729 = vadd.xlane.f32.xlu0 %v1728
    %v1730 = vpop.xlane.xlu0 %1729
    %v1731 = vsel %vm1079, %v1681, 0.0
    %1732 = vadd.xlane.f32.xlu0 %v1731
    %v1733 = vpop.xlane.xlu0 %1732
    %v1734 = vsel %vm1079, %v1686, 0.0
    %1735 = vadd.xlane.f32.xlu0 %v1734
    %v1736 = vpop.xlane.xlu0 %1735
    %v1737 = vmul.f32 %v1691, %v1128
    %v1738 = vmul.f32 %v1694, %v1128
    %v1739 = vmul.f32 %v1697, %v1128
    %v1740 = vmul.f32 %v1700, %v1128
    %v1741 = vmul.f32 %v1703, %v1128
    %v1742 = vmul.f32 %v1706, %v1128
    %v1743 = vmul.f32 %v1709, %v1128
    %v1744 = vmul.f32 %v1712, %v1128
    %v1745 = vmul.f32 %v1715, %v1128
    %v1746 = vmul.f32 %v1718, %v1128
    %v1747 = vmul.f32 %v1721, %v1128
    %v1748 = vmul.f32 %v1724, %v1128
    %v1749 = vmul.f32 %v1727, %v1128
    %v1750 = vmul.f32 %v1730, %v1128
    %v1751 = vmul.f32 %v1733, %v1128
    %v1752 = vmul.f32 %v1736, %v1128
    %v1753 = vsub.f32 %v1611, %v1737
    %v1754 = vsub.f32 %v1616, %v1738
    %v1755 = vsub.f32 %v1621, %v1739
    %v1756 = vsub.f32 %v1626, %v1740
    %v1757 = vsub.f32 %v1631, %v1741
    %v1758 = vsub.f32 %v1636, %v1742
    %v1759 = vsub.f32 %v1641, %v1743
    %v1760 = vsub.f32 %v1646, %v1744
    %v1761 = vsub.f32 %v1651, %v1745
    %v1762 = vsub.f32 %v1656, %v1746
    %v1763 = vsub.f32 %v1661, %v1747
    %v1764 = vsub.f32 %v1666, %v1748
    %v1765 = vsub.f32 %v1671, %v1749
    %v1766 = vsub.f32 %v1676, %v1750
    %v1767 = vsub.f32 %v1681, %v1751
    %v1768 = vsub.f32 %v1686, %v1752
    %v1769 = vmul.f32 %v1753, %v1753
    %v1770 = vmul.f32 %v1754, %v1754
    %v1771 = vmul.f32 %v1755, %v1755
    %v1772 = vmul.f32 %v1756, %v1756
    %v1773 = vmul.f32 %v1757, %v1757
    %v1774 = vmul.f32 %v1758, %v1758
    %v1775 = vmul.f32 %v1759, %v1759
    %v1776 = vmul.f32 %v1760, %v1760
    %v1777 = vmul.f32 %v1761, %v1761
    %v1778 = vmul.f32 %v1762, %v1762
    %v1779 = vmul.f32 %v1763, %v1763
    %v1780 = vmul.f32 %v1764, %v1764
    %v1781 = vmul.f32 %v1765, %v1765
    %v1782 = vmul.f32 %v1766, %v1766
    %v1783 = vmul.f32 %v1767, %v1767
    %v1784 = vmul.f32 %v1768, %v1768
    %v1785 = vsel %vm1079, %v1769, 0.0
    %1786 = vadd.xlane.f32.xlu0 %v1785
    %v1787 = vpop.xlane.xlu0 %1786
    %v1788 = vsel %vm1079, %v1770, 0.0
    %1789 = vadd.xlane.f32.xlu0 %v1788
    %v1790 = vpop.xlane.xlu0 %1789
    %v1791 = vsel %vm1079, %v1771, 0.0
    %1792 = vadd.xlane.f32.xlu0 %v1791
    %v1793 = vpop.xlane.xlu0 %1792
    %v1794 = vsel %vm1079, %v1772, 0.0
    %1795 = vadd.xlane.f32.xlu0 %v1794
    %v1796 = vpop.xlane.xlu0 %1795
    %v1797 = vsel %vm1079, %v1773, 0.0
    %1798 = vadd.xlane.f32.xlu0 %v1797
    %v1799 = vpop.xlane.xlu0 %1798
    %v1800 = vsel %vm1079, %v1774, 0.0
    %1801 = vadd.xlane.f32.xlu0 %v1800
    %v1802 = vpop.xlane.xlu0 %1801
    %v1803 = vsel %vm1079, %v1775, 0.0
    %1804 = vadd.xlane.f32.xlu0 %v1803
    %v1805 = vpop.xlane.xlu0 %1804
    %v1806 = vsel %vm1079, %v1776, 0.0
    %1807 = vadd.xlane.f32.xlu0 %v1806
    %v1808 = vpop.xlane.xlu0 %1807
    %v1809 = vsel %vm1079, %v1777, 0.0
    %1810 = vadd.xlane.f32.xlu0 %v1809
    %v1811 = vpop.xlane.xlu0 %1810
    %v1812 = vsel %vm1079, %v1778, 0.0
    %1813 = vadd.xlane.f32.xlu0 %v1812
    %v1814 = vpop.xlane.xlu0 %1813
    %v1815 = vsel %vm1079, %v1779, 0.0
    %1816 = vadd.xlane.f32.xlu0 %v1815
    %v1817 = vpop.xlane.xlu0 %1816
    %v1818 = vsel %vm1079, %v1780, 0.0
    %1819 = vadd.xlane.f32.xlu0 %v1818
    %v1820 = vpop.xlane.xlu0 %1819
    %v1821 = vsel %vm1079, %v1781, 0.0
    %1822 = vadd.xlane.f32.xlu0 %v1821
    %v1823 = vpop.xlane.xlu0 %1822
    %v1824 = vsel %vm1079, %v1782, 0.0
    %1825 = vadd.xlane.f32.xlu0 %v1824
    %v1826 = vpop.xlane.xlu0 %1825
    %v1827 = vsel %vm1079, %v1783, 0.0
    %1828 = vadd.xlane.f32.xlu0 %v1827
    %v1829 = vpop.xlane.xlu0 %1828
    %v1830 = vsel %vm1079, %v1784, 0.0
    %1831 = vadd.xlane.f32.xlu0 %v1830
    %v1832 = vpop.xlane.xlu0 %1831
    %v1833 = vmul.f32 %v1787, 0.015873017
    %v1834 = vmul.f32 %v1790, 0.015873017
    %v1835 = vmul.f32 %v1793, 0.015873017
    %v1836 = vmul.f32 %v1796, 0.015873017
    %v1837 = vmul.f32 %v1799, 0.015873017
    %v1838 = vmul.f32 %v1802, 0.015873017
    %v1839 = vmul.f32 %v1805, 0.015873017
    %v1840 = vmul.f32 %v1808, 0.015873017
    %v1841 = vmul.f32 %v1811, 0.015873017
    %v1842 = vmul.f32 %v1814, 0.015873017
    %v1843 = vmul.f32 %v1817, 0.015873017
    %v1844 = vmul.f32 %v1820, 0.015873017
    %v1845 = vmul.f32 %v1823, 0.015873017
    %v1846 = vmul.f32 %v1826, 0.015873017
    %v1847 = vmul.f32 %v1829, 0.015873017
    %v1848 = vmul.f32 %v1832, 0.015873017
    %v1849 = vrsqrt.pop %v1833
    %v1850 = vmul.f32 %v1833, %v1849
    %vm1851 = vcmp.eq.f32.partialorder %v1833, inf
    %v1852 = vsel %vm1851, %v1833, %v1850
    %vm1853 = vcmp.eq.f32.partialorder %v1833, 0.0
    %v1854 = vand.u32 %v1833, 2147483648
    %v1855 = vsel %vm1853, %v1854, %v1852
    %v1856 = vrsqrt.pop %v1834
    %v1857 = vmul.f32 %v1834, %v1856
    %vm1858 = vcmp.eq.f32.partialorder %v1834, inf
    %v1859 = vsel %vm1858, %v1834, %v1857
    %vm1860 = vcmp.eq.f32.partialorder %v1834, 0.0
    %v1861 = vand.u32 %v1834, 2147483648
    %v1862 = vsel %vm1860, %v1861, %v1859
    %v1863 = vrsqrt.pop %v1835
    %v1864 = vmul.f32 %v1835, %v1863
    %vm1865 = vcmp.eq.f32.partialorder %v1835, inf
    %v1866 = vsel %vm1865, %v1835, %v1864
    %vm1867 = vcmp.eq.f32.partialorder %v1835, 0.0
    %v1868 = vand.u32 %v1835, 2147483648
    %v1869 = vsel %vm1867, %v1868, %v1866
    %v1870 = vrsqrt.pop %v1836
    %v1871 = vmul.f32 %v1836, %v1870
    %vm1872 = vcmp.eq.f32.partialorder %v1836, inf
    %v1873 = vsel %vm1872, %v1836, %v1871
    %vm1874 = vcmp.eq.f32.partialorder %v1836, 0.0
    %v1875 = vand.u32 %v1836, 2147483648
    %v1876 = vsel %vm1874, %v1875, %v1873
    %v1877 = vrsqrt.pop %v1837
    %v1878 = vmul.f32 %v1837, %v1877
    %vm1879 = vcmp.eq.f32.partialorder %v1837, inf
    %v1880 = vsel %vm1879, %v1837, %v1878
    %vm1881 = vcmp.eq.f32.partialorder %v1837, 0.0
    %v1882 = vand.u32 %v1837, 2147483648
    %v1883 = vsel %vm1881, %v1882, %v1880
    %v1884 = vrsqrt.pop %v1838
    %v1885 = vmul.f32 %v1838, %v1884
    %vm1886 = vcmp.eq.f32.partialorder %v1838, inf
    %v1887 = vsel %vm1886, %v1838, %v1885
    %vm1888 = vcmp.eq.f32.partialorder %v1838, 0.0
    %v1889 = vand.u32 %v1838, 2147483648
    %v1890 = vsel %vm1888, %v1889, %v1887
    %v1891 = vrsqrt.pop %v1839
    %v1892 = vmul.f32 %v1839, %v1891
    %vm1893 = vcmp.eq.f32.partialorder %v1839, inf
    %v1894 = vsel %vm1893, %v1839, %v1892
    %vm1895 = vcmp.eq.f32.partialorder %v1839, 0.0
    %v1896 = vand.u32 %v1839, 2147483648
    %v1897 = vsel %vm1895, %v1896, %v1894
    %v1898 = vrsqrt.pop %v1840
    %v1899 = vmul.f32 %v1840, %v1898
    %vm1900 = vcmp.eq.f32.partialorder %v1840, inf
    %v1901 = vsel %vm1900, %v1840, %v1899
    %vm1902 = vcmp.eq.f32.partialorder %v1840, 0.0
    %v1903 = vand.u32 %v1840, 2147483648
    %v1904 = vsel %vm1902, %v1903, %v1901
    %v1905 = vrsqrt.pop %v1841
    %v1906 = vmul.f32 %v1841, %v1905
    %vm1907 = vcmp.eq.f32.partialorder %v1841, inf
    %v1908 = vsel %vm1907, %v1841, %v1906
    %vm1909 = vcmp.eq.f32.partialorder %v1841, 0.0
    %v1910 = vand.u32 %v1841, 2147483648
    %v1911 = vsel %vm1909, %v1910, %v1908
    %v1912 = vrsqrt.pop %v1842
    %v1913 = vmul.f32 %v1842, %v1912
    %vm1914 = vcmp.eq.f32.partialorder %v1842, inf
    %v1915 = vsel %vm1914, %v1842, %v1913
    %vm1916 = vcmp.eq.f32.partialorder %v1842, 0.0
    %v1917 = vand.u32 %v1842, 2147483648
    %v1918 = vsel %vm1916, %v1917, %v1915
    %v1919 = vrsqrt.pop %v1843
    %v1920 = vmul.f32 %v1843, %v1919
    %vm1921 = vcmp.eq.f32.partialorder %v1843, inf
    %v1922 = vsel %vm1921, %v1843, %v1920
    %vm1923 = vcmp.eq.f32.partialorder %v1843, 0.0
    %v1924 = vand.u32 %v1843, 2147483648
    %v1925 = vsel %vm1923, %v1924, %v1922
    %v1926 = vrsqrt.pop %v1844
    %v1927 = vmul.f32 %v1844, %v1926
    %vm1928 = vcmp.eq.f32.partialorder %v1844, inf
    %v1929 = vsel %vm1928, %v1844, %v1927
    %vm1930 = vcmp.eq.f32.partialorder %v1844, 0.0
    %v1931 = vand.u32 %v1844, 2147483648
    %v1932 = vsel %vm1930, %v1931, %v1929
    %v1933 = vrsqrt.pop %v1845
    %v1934 = vmul.f32 %v1845, %v1933
    %vm1935 = vcmp.eq.f32.partialorder %v1845, inf
    %v1936 = vsel %vm1935, %v1845, %v1934
    %vm1937 = vcmp.eq.f32.partialorder %v1845, 0.0
    %v1938 = vand.u32 %v1845, 2147483648
    %v1939 = vsel %vm1937, %v1938, %v1936
    %v1940 = vrsqrt.pop %v1846
    %v1941 = vmul.f32 %v1846, %v1940
    %vm1942 = vcmp.eq.f32.partialorder %v1846, inf
    %v1943 = vsel %vm1942, %v1846, %v1941
    %vm1944 = vcmp.eq.f32.partialorder %v1846, 0.0
    %v1945 = vand.u32 %v1846, 2147483648
    %v1946 = vsel %vm1944, %v1945, %v1943
    %v1947 = vrsqrt.pop %v1847
    %v1948 = vmul.f32 %v1847, %v1947
    %vm1949 = vcmp.eq.f32.partialorder %v1847, inf
    %v1950 = vsel %vm1949, %v1847, %v1948
    %vm1951 = vcmp.eq.f32.partialorder %v1847, 0.0
    %v1952 = vand.u32 %v1847, 2147483648
    %v1953 = vsel %vm1951, %v1952, %v1950
    %v1954 = vrsqrt.pop %v1848
    %v1955 = vmul.f32 %v1848, %v1954
    %vm1956 = vcmp.eq.f32.partialorder %v1848, inf
    %v1957 = vsel %vm1956, %v1848, %v1955
    %vm1958 = vcmp.eq.f32.partialorder %v1848, 0.0
    %v1959 = vand.u32 %v1848, 2147483648
    %v1960 = vsel %vm1958, %v1959, %v1957
    %v1961 = vadd.f32 %v1855, 1e-05
    %v1962 = vadd.f32 %v1862, 1e-05
    %v1963 = vadd.f32 %v1869, 1e-05
    %v1964 = vadd.f32 %v1876, 1e-05
    %v1965 = vadd.f32 %v1883, 1e-05
    %v1966 = vadd.f32 %v1890, 1e-05
    %v1967 = vadd.f32 %v1897, 1e-05
    %v1968 = vadd.f32 %v1904, 1e-05
    %v1969 = vadd.f32 %v1911, 1e-05
    %v1970 = vadd.f32 %v1918, 1e-05
    %v1971 = vadd.f32 %v1925, 1e-05
    %v1972 = vadd.f32 %v1932, 1e-05
    %v1973 = vadd.f32 %v1939, 1e-05
    %v1974 = vadd.f32 %v1946, 1e-05
    %v1975 = vadd.f32 %v1953, 1e-05
    %v1976 = vadd.f32 %v1960, 1e-05
    %v1977 = vrcp.pop %v1961
    %v1978 = vrcp.pop %v1962
    %v1979 = vrcp.pop %v1963
    %v1980 = vrcp.pop %v1964
    %v1981 = vrcp.pop %v1965
    %v1982 = vrcp.pop %v1966
    %v1983 = vrcp.pop %v1967
    %v1984 = vrcp.pop %v1968
    %v1985 = vrcp.pop %v1969
    %v1986 = vrcp.pop %v1970
    %v1987 = vrcp.pop %v1971
    %v1988 = vrcp.pop %v1972
    %v1989 = vrcp.pop %v1973
    %v1990 = vrcp.pop %v1974
    %v1991 = vrcp.pop %v1975
    %v1992 = vrcp.pop %v1976
    %v1993 = vmul.f32 %v701, %v1753
    %v1994 = vmul.f32 %v706, %v1754
    %v1995 = vmul.f32 %v711, %v1755
    %v1996 = vmul.f32 %v716, %v1756
    %v1997 = vmul.f32 %v721, %v1757
    %v1998 = vmul.f32 %v726, %v1758
    %v1999 = vmul.f32 %v731, %v1759
    %v2000 = vmul.f32 %v736, %v1760
    %v2001 = vmul.f32 %v741, %v1761
    %v2002 = vmul.f32 %v746, %v1762
    %v2003 = vmul.f32 %v751, %v1763
    %v2004 = vmul.f32 %v756, %v1764
    %v2005 = vmul.f32 %v761, %v1765
    %v2006 = vmul.f32 %v766, %v1766
    %v2007 = vmul.f32 %v771, %v1767
    %v2008 = vmul.f32 %v776, %v1768
    %v2009 = vmul.f32 %v1993, %v1977
    %v2010 = vmul.f32 %v1994, %v1978
    %v2011 = vmul.f32 %v1995, %v1979
    %v2012 = vmul.f32 %v1996, %v1980
    %v2013 = vmul.f32 %v1997, %v1981
    %v2014 = vmul.f32 %v1998, %v1982
    %v2015 = vmul.f32 %v1999, %v1983
    %v2016 = vmul.f32 %v2000, %v1984
    %v2017 = vmul.f32 %v2001, %v1985
    %v2018 = vmul.f32 %v2002, %v1986
    %v2019 = vmul.f32 %v2003, %v1987
    %v2020 = vmul.f32 %v2004, %v1988
    %v2021 = vmul.f32 %v2005, %v1989
    %v2022 = vmul.f32 %v2006, %v1990
    %v2023 = vmul.f32 %v2007, %v1991
    %v2024 = vmul.f32 %v2008, %v1992
    %v2025 = vadd.f32 %v2009, %v1001
    %v2026 = vadd.f32 %v2010, %v1006
    %v2027 = vadd.f32 %v2011, %v1011
    %v2028 = vadd.f32 %v2012, %v1016
    %v2029 = vadd.f32 %v2013, %v1021
    %v2030 = vadd.f32 %v2014, %v1026
    %v2031 = vadd.f32 %v2015, %v1031
    %v2032 = vadd.f32 %v2016, %v1036
    %v2033 = vadd.f32 %v2017, %v1041
    %v2034 = vadd.f32 %v2018, %v1046
    %v2035 = vadd.f32 %v2019, %v1051
    %v2036 = vadd.f32 %v2020, %v1056
    %v2037 = vadd.f32 %v2021, %v1061
    %v2038 = vadd.f32 %v2022, %v1066
    %v2039 = vadd.f32 %v2023, %v1071
    %v2040 = vadd.f32 %v2024, %v1076
    %vm2041 = vcmp.gt.f32.partialorder %v2025, 0.0
    %vm2042 = vcmp.gt.f32.partialorder %v2026, 0.0
    %vm2043 = vcmp.gt.f32.partialorder %v2027, 0.0
    %vm2044 = vcmp.gt.f32.partialorder %v2028, 0.0
    %vm2045 = vcmp.gt.f32.partialorder %v2029, 0.0
    %vm2046 = vcmp.gt.f32.partialorder %v2030, 0.0
    %vm2047 = vcmp.gt.f32.partialorder %v2031, 0.0
    %vm2048 = vcmp.gt.f32.partialorder %v2032, 0.0
    %vm2049 = vcmp.gt.f32.partialorder %v2033, 0.0
    %vm2050 = vcmp.gt.f32.partialorder %v2034, 0.0
    %vm2051 = vcmp.gt.f32.partialorder %v2035, 0.0
    %vm2052 = vcmp.gt.f32.partialorder %v2036, 0.0
    %vm2053 = vcmp.gt.f32.partialorder %v2037, 0.0
    %vm2054 = vcmp.gt.f32.partialorder %v2038, 0.0
    %vm2055 = vcmp.gt.f32.partialorder %v2039, 0.0
    %vm2056 = vcmp.gt.f32.partialorder %v2040, 0.0
    %v2057 = vmul.f32 %v2025, 0.01
    %v2058 = vmul.f32 %v2026, 0.01
    %v2059 = vmul.f32 %v2027, 0.01
    %v2060 = vmul.f32 %v2028, 0.01
    %v2061 = vmul.f32 %v2029, 0.01
    %v2062 = vmul.f32 %v2030, 0.01
    %v2063 = vmul.f32 %v2031, 0.01
    %v2064 = vmul.f32 %v2032, 0.01
    %v2065 = vmul.f32 %v2033, 0.01
    %v2066 = vmul.f32 %v2034, 0.01
    %v2067 = vmul.f32 %v2035, 0.01
    %v2068 = vmul.f32 %v2036, 0.01
    %v2069 = vmul.f32 %v2037, 0.01
    %v2070 = vmul.f32 %v2038, 0.01
    %v2071 = vmul.f32 %v2039, 0.01
    %v2072 = vmul.f32 %v2040, 0.01
    %v2073 = vsel %vm2041, %v2025, %v2057
    %v2074 = vsel %vm2042, %v2026, %v2058
    %v2075 = vsel %vm2043, %v2027, %v2059
    %v2076 = vsel %vm2044, %v2028, %v2060
    %v2077 = vsel %vm2045, %v2029, %v2061
    %v2078 = vsel %vm2046, %v2030, %v2062
    %v2079 = vsel %vm2047, %v2031, %v2063
    %v2080 = vsel %vm2048, %v2032, %v2064
    %v2081 = vsel %vm2049, %v2033, %v2065
    %v2082 = vsel %vm2050, %v2034, %v2066
    %v2083 = vsel %vm2051, %v2035, %v2067
    %v2084 = vsel %vm2052, %v2036, %v2068
    %v2085 = vsel %vm2053, %v2037, %v2069
    %v2086 = vsel %vm2054, %v2038, %v2070
    %v2087 = vsel %vm2055, %v2039, %v2071
    %v2088 = vsel %vm2056, %v2040, %v2072
    %v2089 = vld [vmem:[%s8] sm:$0xff]
    %v2090 = vld [vmem:[%s8 + $0x8] sm:$0xff]
    %v2091 = vld [vmem:[%s8 + $0x10] sm:$0xff]
    %v2092 = vld [vmem:[%s8 + $0x18] sm:$0xff]
    %v2093 = vld [vmem:[%s8 + $0x20] sm:$0xff]
    %v2094 = vld [vmem:[%s8 + $0x28] sm:$0xff]
    %v2095 = vld [vmem:[%s8 + $0x30] sm:$0xff]
    %v2096 = vld [vmem:[%s8 + $0x38] sm:$0xff]
    %v2097 = vld [vmem:[%s9] sm:$0x1]
    %v2099 = vlaneseq
    %v2100 = vshrl.u32 %v2099, 7
    %v2101 = vsub.s32 0, %v2100
    %v2102 = vrot.slane %v2097, %v2101
    %v2105 = vsel %vm1079, %v2073, 0
    %v2108 = vsel %vm1079, %v2074, 0
    %v2111 = vsel %vm1079, %v2075, 0
    %v2114 = vsel %vm1079, %v2076, 0
    %v2117 = vsel %vm1079, %v2077, 0
    %v2120 = vsel %vm1079, %v2078, 0
    %v2123 = vsel %vm1079, %v2079, 0
    %v2126 = vsel %vm1079, %v2080, 0
    %v2129 = vsel %vm1079, %v2081, 0
    %v2132 = vsel %vm1079, %v2082, 0
    %v2135 = vsel %vm1079, %v2083, 0
    %v2138 = vsel %vm1079, %v2084, 0
    %v2141 = vsel %vm1079, %v2085, 0
    %v2144 = vsel %vm1079, %v2086, 0
    %v2147 = vsel %vm1079, %v2087, 0
    %v2150 = vsel %vm1079, %v2088, 0
    %2152 = vmatprep.subr.mxu0 0.0
    %2153 = vmatpush1.msra.mxu0 %v2089
    %2154 = vmatprep.subr.mxu0 0.0
    %2155 = vmatpush1.msra.mxu0 %v2090
    %2156 = vmatprep.subr.mxu0 0.0
    %2157 = vmatpush1.msra.mxu0 %v2091
    %2158 = vmatprep.subr.mxu0 0.0
    %2159 = vmatpush1.msra.mxu0 %v2092
    %2160 = vmatprep.subr.mxu0 0.0
    %2161 = vmatpush1.msra.mxu0 %v2093
    %2162 = vmatprep.subr.mxu0 0.0
    %2163 = vmatpush1.msra.mxu0 %v2094
    %2164 = vmatprep.subr.mxu0 0.0
    %2165 = vmatpush1.msra.mxu0 %v2095
    %2166 = vmatprep.subr.mxu0 0.0
    %2167 = vmatpush1.msra.mxu0 %v2096
    %2168 = vmatprep.subr.mxu0 0.0
    %2169 = vmatpush1.msra.mxu0 0.0
    %2170 = vmatprep.subr.mxu0 0.0
    %2171 = vmatpush1.msra.mxu0 0.0
    %2172 = vmatprep.subr.mxu0 0.0
    %2173 = vmatpush1.msra.mxu0 0.0
    %2174 = vmatprep.subr.mxu0 0.0
    %2175 = vmatpush1.msra.mxu0 0.0
    %2176 = vmatprep.subr.mxu0 0.0
    %2177 = vmatpush1.msra.mxu0 0.0
    %2178 = vmatprep.subr.mxu0 0.0
    %2179 = vmatpush1.msra.mxu0 0.0
    %2180 = vmatprep.subr.mxu0 0.0
    %2181 = vmatpush1.msra.mxu0 0.0
    %2182 = vmatprep.subr.mxu0 0.0
    %2183 = vmatpush1.msra.mxu0 0.0
    %2184 = vmatprep.subr.mxu0 0.0
    %2185 = vmatpush1.msra.mxu0 0.0
    %2186 = vmatprep.subr.mxu0 0.0
    %2187 = vmatpush1.msra.mxu0 0.0
    %2188 = vmatprep.subr.mxu0 0.0
    %2189 = vmatpush1.msra.mxu0 0.0
    %2190 = vmatprep.subr.mxu0 0.0
    %2191 = vmatpush1.msra.mxu0 0.0
    %2192 = vmatprep.subr.mxu0 0.0
    %2193 = vmatpush1.msra.mxu0 0.0
    %2194 = vmatprep.subr.mxu0 0.0
    %2195 = vmatpush1.msra.mxu0 0.0
    %2196 = vmatprep.subr.mxu0 0.0
    %2197 = vmatpush1.msra.mxu0 0.0
    %2198 = vmatprep.subr.mxu0 0.0
    %2199 = vmatpush1.msra.mxu0 0.0
    %2200 = vmatprep.subr.mxu0 0.0
    %2201 = vmatpush1.msra.mxu0 0.0
    %2202 = vmatprep.subr.mxu0 0.0
    %2203 = vmatpush1.msra.mxu0 0.0
    %2204 = vmatprep.subr.mxu0 0.0
    %2205 = vmatpush1.msra.mxu0 0.0
    %2206 = vmatprep.subr.mxu0 0.0
    %2207 = vmatpush1.msra.mxu0 0.0
    %2208 = vmatprep.subr.mxu0 0.0
    %2209 = vmatpush1.msra.mxu0 0.0
    %2210 = vmatprep.subr.mxu0 0.0
    %2211 = vmatpush1.msra.mxu0 0.0
    %2212 = vmatprep.subr.mxu0 0.0
    %2213 = vmatpush1.msra.mxu0 0.0
    %2214 = vmatprep.subr.mxu0 0.0
    %2215 = vmatpush1.msra.mxu0 0.0
    %2216 = vmatprep.mubr.f32.mxu0 0.0
    %2217 = vmatmul.mubr.f32.gmra.mrb[0].mxu0 %v2105
    %v2218 = vpop.f32.mrb[0].mxu0
    %v2219 = vadd.f32 %v2102, %v2218
    %v2220 = vpop.f32.mrb[0].mxu0
    %2221 = vmatprep.mubr.f32.mxu0 0.0
    %2222 = vmatmul.mubr.f32.gmra.mrb[0].mxu0 %v2108
    %v2223 = vpop.f32.mrb[0].mxu0
    %v2224 = vadd.f32 %v2102, %v2223
    %v2225 = vpop.f32.mrb[0].mxu0
    %2226 = vmatprep.mubr.f32.mxu0 0.0
    %2227 = vmatmul.mubr.f32.gmra.mrb[0].mxu0 %v2111
    %v2228 = vpop.f32.mrb[0].mxu0
    %v2229 = vadd.f32 %v2102, %v2228
    %v2230 = vpop.f32.mrb[0].mxu0
    %2231 = vmatprep.mubr.f32.mxu0 0.0
    %2232 = vmatmul.mubr.f32.gmra.mrb[0].mxu0 %v2114
    %v2233 = vpop.f32.mrb[0].mxu0
    %v2234 = vadd.f32 %v2102, %v2233
    %v2235 = vpop.f32.mrb[0].mxu0
    %2236 = vmatprep.mubr.f32.mxu0 0.0
    %2237 = vmatmul.mubr.f32.gmra.mrb[0].mxu0 %v2117
    %v2238 = vpop.f32.mrb[0].mxu0
    %v2239 = vadd.f32 %v2102, %v2238
    %v2240 = vpop.f32.mrb[0].mxu0
    %2241 = vmatprep.mubr.f32.mxu0 0.0
    %2242 = vmatmul.mubr.f32.gmra.mrb[0].mxu0 %v2120
    %v2243 = vpop.f32.mrb[0].mxu0
    %v2244 = vadd.f32 %v2102, %v2243
    %v2245 = vpop.f32.mrb[0].mxu0
    %2246 = vmatprep.mubr.f32.mxu0 0.0
    %2247 = vmatmul.mubr.f32.gmra.mrb[0].mxu0 %v2123
    %v2248 = vpop.f32.mrb[0].mxu0
    %v2249 = vadd.f32 %v2102, %v2248
    %v2250 = vpop.f32.mrb[0].mxu0
    %2251 = vmatprep.mubr.f32.mxu0 0.0
    %2252 = vmatmul.mubr.f32.gmra.mrb[0].mxu0 %v2126
    %v2253 = vpop.f32.mrb[0].mxu0
    %v2254 = vadd.f32 %v2102, %v2253
    %v2255 = vpop.f32.mrb[0].mxu0
    %2256 = vmatprep.mubr.f32.mxu0 0.0
    %2257 = vmatmul.mubr.f32.gmra.mrb[0].mxu0 %v2129
    %v2258 = vpop.f32.mrb[0].mxu0
    %v2259 = vadd.f32 %v2102, %v2258
    %v2260 = vpop.f32.mrb[0].mxu0
    %2261 = vmatprep.mubr.f32.mxu0 0.0
    %2262 = vmatmul.mubr.f32.gmra.mrb[0].mxu0 %v2132
    %v2263 = vpop.f32.mrb[0].mxu0
    %v2264 = vadd.f32 %v2102, %v2263
    %v2265 = vpop.f32.mrb[0].mxu0
    %2266 = vmatprep.mubr.f32.mxu0 0.0
    %2267 = vmatmul.mubr.f32.gmra.mrb[0].mxu0 %v2135
    %v2268 = vpop.f32.mrb[0].mxu0
    %v2269 = vadd.f32 %v2102, %v2268
    %v2270 = vpop.f32.mrb[0].mxu0
    %2271 = vmatprep.mubr.f32.mxu0 0.0
    %2272 = vmatmul.mubr.f32.gmra.mrb[0].mxu0 %v2138
    %v2273 = vpop.f32.mrb[0].mxu0
    %v2274 = vadd.f32 %v2102, %v2273
    %v2275 = vpop.f32.mrb[0].mxu0
    %2276 = vmatprep.mubr.f32.mxu0 0.0
    %2277 = vmatmul.mubr.f32.gmra.mrb[0].mxu0 %v2141
    %v2278 = vpop.f32.mrb[0].mxu0
    %v2279 = vadd.f32 %v2102, %v2278
    %v2280 = vpop.f32.mrb[0].mxu0
    %2281 = vmatprep.mubr.f32.mxu0 0.0
    %2282 = vmatmul.mubr.f32.gmra.mrb[0].mxu0 %v2144
    %v2283 = vpop.f32.mrb[0].mxu0
    %v2284 = vadd.f32 %v2102, %v2283
    %v2285 = vpop.f32.mrb[0].mxu0
    %2286 = vmatprep.mubr.f32.mxu0 0.0
    %2287 = vmatmul.mubr.f32.gmra.mrb[0].mxu0 %v2147
    %v2288 = vpop.f32.mrb[0].mxu0
    %v2289 = vadd.f32 %v2102, %v2288
    %v2290 = vpop.f32.mrb[0].mxu0
    %2291 = vmatprep.mubr.f32.mxu0 0.0
    %2292 = vmatmul.mubr.f32.gmra.mrb[0].mxu0 %v2150
    %v2293 = vpop.f32.mrb[0].mxu0
    %v2294 = vadd.f32 %v2102, %v2293
    %v2295 = vpop.f32.mrb[0].mxu0
    %2296 = vdwg.mxu0
    %v2297 = vadd.f32 %v2219, %v565
    %v2298 = vadd.f32 %v2224, %v566
    %v2299 = vadd.f32 %v2229, %v567
    %v2300 = vadd.f32 %v2234, %v568
    %v2301 = vadd.f32 %v2239, %v569
    %v2302 = vadd.f32 %v2244, %v570
    %v2303 = vadd.f32 %v2249, %v571
    %v2304 = vadd.f32 %v2254, %v572
    %v2305 = vadd.f32 %v2259, %v573
    %v2306 = vadd.f32 %v2264, %v574
    %v2307 = vadd.f32 %v2269, %v575
    %v2308 = vadd.f32 %v2274, %v576
    %v2309 = vadd.f32 %v2279, %v577
    %v2310 = vadd.f32 %v2284, %v578
    %v2311 = vadd.f32 %v2289, %v579
    %v2312 = vadd.f32 %v2294, %v580
    %s2313 = scalar_lea.vmem %s3, 96
    %v2314 = vld [vmem:[%s2313] sm:$0xff]
    %v2315 = vld [vmem:[%s2313 + $0x8] sm:$0xff]
    %v2316 = vld [vmem:[%s2313 + $0x10] sm:$0xff]
    %v2317 = vld [vmem:[%s2313 + $0x18] sm:$0xff]
    %2318 = vmatprep.subr.mxu0 0.0
    %2319 = vmatpush1.msra.mxu0 %v2314
    %2320 = vmatprep.subr.mxu0 0.0
    %2321 = vmatpush1.msra.mxu0 %v2315
    %2322 = vmatprep.subr.mxu0 0.0
    %2323 = vmatpush1.msra.mxu0 %v2316
    %2324 = vmatprep.subr.mxu0 0.0
    %2325 = vmatpush1.msra.mxu0 %v2317
    %2326 = vmatprep.subr.mxu0 0.0
    %2327 = vmatpush1.msra.mxu0 0.0
    %2328 = vmatprep.subr.mxu0 0.0
    %2329 = vmatpush1.msra.mxu0 0.0
    %2330 = vmatprep.subr.mxu0 0.0
    %2331 = vmatpush1.msra.mxu0 0.0
    %2332 = vmatprep.subr.mxu0 0.0
    %2333 = vmatpush1.msra.mxu0 0.0
    %2334 = vmatprep.subr.mxu0 0.0
    %2335 = vmatpush1.msra.mxu0 0.0
    %2336 = vmatprep.subr.mxu0 0.0
    %2337 = vmatpush1.msra.mxu0 0.0
    %2338 = vmatprep.subr.mxu0 0.0
    %2339 = vmatpush1.msra.mxu0 0.0
    %2340 = vmatprep.subr.mxu0 0.0
    %2341 = vmatpush1.msra.mxu0 0.0
    %2342 = vmatprep.subr.mxu0 0.0
    %2343 = vmatpush1.msra.mxu0 0.0
    %2344 = vmatprep.subr.mxu0 0.0
    %2345 = vmatpush1.msra.mxu0 0.0
    %2346 = vmatprep.subr.mxu0 0.0
    %2347 = vmatpush1.msra.mxu0 0.0
    %2348 = vmatprep.subr.mxu0 0.0
    %2349 = vmatpush1.msra.mxu0 0.0
    %2350 = vmatprep.subr.mxu0 0.0
    %2351 = vmatpush1.msra.mxu0 0.0
    %2352 = vmatprep.subr.mxu0 0.0
    %2353 = vmatpush1.msra.mxu0 0.0
    %2354 = vmatprep.subr.mxu0 0.0
    %2355 = vmatpush1.msra.mxu0 0.0
    %2356 = vmatprep.subr.mxu0 0.0
    %2357 = vmatpush1.msra.mxu0 0.0
    %2358 = vmatprep.subr.mxu0 0.0
    %2359 = vmatpush1.msra.mxu0 0.0
    %2360 = vmatprep.subr.mxu0 0.0
    %2361 = vmatpush1.msra.mxu0 0.0
    %2362 = vmatprep.subr.mxu0 0.0
    %2363 = vmatpush1.msra.mxu0 0.0
    %2364 = vmatprep.subr.mxu0 0.0
    %2365 = vmatpush1.msra.mxu0 0.0
    %2366 = vmatprep.subr.mxu0 0.0
    %2367 = vmatpush1.msra.mxu0 0.0
    %2368 = vmatprep.subr.mxu0 0.0
    %2369 = vmatpush1.msra.mxu0 0.0
    %2370 = vmatprep.subr.mxu0 0.0
    %2371 = vmatpush1.msra.mxu0 0.0
    %2372 = vmatprep.subr.mxu0 0.0
    %2373 = vmatpush1.msra.mxu0 0.0
    %2374 = vmatprep.subr.mxu0 0.0
    %2375 = vmatpush1.msra.mxu0 0.0
    %2376 = vmatprep.subr.mxu0 0.0
    %2377 = vmatpush1.msra.mxu0 0.0
    %2378 = vmatprep.subr.mxu0 0.0
    %2379 = vmatpush1.msra.mxu0 0.0
    %2380 = vmatprep.subr.mxu0 0.0
    %2381 = vmatpush1.msra.mxu0 0.0
    %2382 = vmatprep.mubr.f32.mxu0 0.0
    %2383 = vmatmul.mubr.f32.gmra.mrb[0].mxu0 %v587
    %v2384 = vpop.f32.mrb[0].mxu0
    %v2385 = vadd.f32 0.0, %v2384
    %v2386 = vpop.f32.mrb[0].mxu0
    %2387 = vmatprep.mubr.f32.mxu0 0.0
    %2388 = vmatmul.mubr.f32.gmra.mrb[0].mxu0 %v590
    %v2389 = vpop.f32.mrb[0].mxu0
    %v2390 = vadd.f32 0.0, %v2389
    %v2391 = vpop.f32.mrb[0].mxu0
    %2392 = vmatprep.mubr.f32.mxu0 0.0
    %2393 = vmatmul.mubr.f32.gmra.mrb[0].mxu0 %v593
    %v2394 = vpop.f32.mrb[0].mxu0
    %v2395 = vadd.f32 0.0, %v2394
    %v2396 = vpop.f32.mrb[0].mxu0
    %2397 = vmatprep.mubr.f32.mxu0 0.0
    %2398 = vmatmul.mubr.f32.gmra.mrb[0].mxu0 %v596
    %v2399 = vpop.f32.mrb[0].mxu0
    %v2400 = vadd.f32 0.0, %v2399
    %v2401 = vpop.f32.mrb[0].mxu0
    %2402 = vmatprep.mubr.f32.mxu0 0.0
    %2403 = vmatmul.mubr.f32.gmra.mrb[0].mxu0 %v599
    %v2404 = vpop.f32.mrb[0].mxu0
    %v2405 = vadd.f32 0.0, %v2404
    %v2406 = vpop.f32.mrb[0].mxu0
    %2407 = vmatprep.mubr.f32.mxu0 0.0
    %2408 = vmatmul.mubr.f32.gmra.mrb[0].mxu0 %v602
    %v2409 = vpop.f32.mrb[0].mxu0
    %v2410 = vadd.f32 0.0, %v2409
    %v2411 = vpop.f32.mrb[0].mxu0
    %2412 = vmatprep.mubr.f32.mxu0 0.0
    %2413 = vmatmul.mubr.f32.gmra.mrb[0].mxu0 %v605
    %v2414 = vpop.f32.mrb[0].mxu0
    %v2415 = vadd.f32 0.0, %v2414
    %v2416 = vpop.f32.mrb[0].mxu0
    %2417 = vmatprep.mubr.f32.mxu0 0.0
    %2418 = vmatmul.mubr.f32.gmra.mrb[0].mxu0 %v608
    %v2419 = vpop.f32.mrb[0].mxu0
    %v2420 = vadd.f32 0.0, %v2419
    %v2421 = vpop.f32.mrb[0].mxu0
    %2422 = vmatprep.mubr.f32.mxu0 0.0
    %2423 = vmatmul.mubr.f32.gmra.mrb[0].mxu0 %v611
    %v2424 = vpop.f32.mrb[0].mxu0
    %v2425 = vadd.f32 0.0, %v2424
    %v2426 = vpop.f32.mrb[0].mxu0
    %2427 = vmatprep.mubr.f32.mxu0 0.0
    %2428 = vmatmul.mubr.f32.gmra.mrb[0].mxu0 %v614
    %v2429 = vpop.f32.mrb[0].mxu0
    %v2430 = vadd.f32 0.0, %v2429
    %v2431 = vpop.f32.mrb[0].mxu0
    %2432 = vmatprep.mubr.f32.mxu0 0.0
    %2433 = vmatmul.mubr.f32.gmra.mrb[0].mxu0 %v617
    %v2434 = vpop.f32.mrb[0].mxu0
    %v2435 = vadd.f32 0.0, %v2434
    %v2436 = vpop.f32.mrb[0].mxu0
    %2437 = vmatprep.mubr.f32.mxu0 0.0
    %2438 = vmatmul.mubr.f32.gmra.mrb[0].mxu0 %v620
    %v2439 = vpop.f32.mrb[0].mxu0
    %v2440 = vadd.f32 0.0, %v2439
    %v2441 = vpop.f32.mrb[0].mxu0
    %2442 = vmatprep.mubr.f32.mxu0 0.0
    %2443 = vmatmul.mubr.f32.gmra.mrb[0].mxu0 %v623
    %v2444 = vpop.f32.mrb[0].mxu0
    %v2445 = vadd.f32 0.0, %v2444
    %v2446 = vpop.f32.mrb[0].mxu0
    %2447 = vmatprep.mubr.f32.mxu0 0.0
    %2448 = vmatmul.mubr.f32.gmra.mrb[0].mxu0 %v626
    %v2449 = vpop.f32.mrb[0].mxu0
    %v2450 = vadd.f32 0.0, %v2449
    %v2451 = vpop.f32.mrb[0].mxu0
    %2452 = vmatprep.mubr.f32.mxu0 0.0
    %2453 = vmatmul.mubr.f32.gmra.mrb[0].mxu0 %v629
    %v2454 = vpop.f32.mrb[0].mxu0
    %v2455 = vadd.f32 0.0, %v2454
    %v2456 = vpop.f32.mrb[0].mxu0
    %2457 = vmatprep.mubr.f32.mxu0 0.0
    %2458 = vmatmul.mubr.f32.gmra.mrb[0].mxu0 %v632
    %v2459 = vpop.f32.mrb[0].mxu0
    %v2460 = vadd.f32 0.0, %v2459
    %v2461 = vpop.f32.mrb[0].mxu0
    %2462 = vdwg.mxu0
    %s2463 = scalar_lea.vmem %s3, 128
    %v2464 = vld [vmem:[%s2463] sm:$0xff]
    %v2465 = vld [vmem:[%s2463 + $0x8] sm:$0xff]
    %v2466 = vld [vmem:[%s2463 + $0x10] sm:$0xff]
    %v2467 = vld [vmem:[%s2463 + $0x18] sm:$0xff]
    %2468 = vmatprep.subr.mxu0 0.0
    %2469 = vmatpush1.msra.mxu0 %v2464
    %2470 = vmatprep.subr.mxu0 0.0
    %2471 = vmatpush1.msra.mxu0 %v2465
    %2472 = vmatprep.subr.mxu0 0.0
    %2473 = vmatpush1.msra.mxu0 %v2466
    %2474 = vmatprep.subr.mxu0 0.0
    %2475 = vmatpush1.msra.mxu0 %v2467
    %2476 = vmatprep.subr.mxu0 0.0
    %2477 = vmatpush1.msra.mxu0 0.0
    %2478 = vmatprep.subr.mxu0 0.0
    %2479 = vmatpush1.msra.mxu0 0.0
    %2480 = vmatprep.subr.mxu0 0.0
    %2481 = vmatpush1.msra.mxu0 0.0
    %2482 = vmatprep.subr.mxu0 0.0
    %2483 = vmatpush1.msra.mxu0 0.0
    %2484 = vmatprep.subr.mxu0 0.0
    %2485 = vmatpush1.msra.mxu0 0.0
    %2486 = vmatprep.subr.mxu0 0.0
    %2487 = vmatpush1.msra.mxu0 0.0
    %2488 = vmatprep.subr.mxu0 0.0
    %2489 = vmatpush1.msra.mxu0 0.0
    %2490 = vmatprep.subr.mxu0 0.0
    %2491 = vmatpush1.msra.mxu0 0.0
    %2492 = vmatprep.subr.mxu0 0.0
    %2493 = vmatpush1.msra.mxu0 0.0
    %2494 = vmatprep.subr.mxu0 0.0
    %2495 = vmatpush1.msra.mxu0 0.0
    %2496 = vmatprep.subr.mxu0 0.0
    %2497 = vmatpush1.msra.mxu0 0.0
    %2498 = vmatprep.subr.mxu0 0.0
    %2499 = vmatpush1.msra.mxu0 0.0
    %2500 = vmatprep.subr.mxu0 0.0
    %2501 = vmatpush1.msra.mxu0 0.0
    %2502 = vmatprep.subr.mxu0 0.0
    %2503 = vmatpush1.msra.mxu0 0.0
    %2504 = vmatprep.subr.mxu0 0.0
    %2505 = vmatpush1.msra.mxu0 0.0
    %2506 = vmatprep.subr.mxu0 0.0
    %2507 = vmatpush1.msra.mxu0 0.0
    %2508 = vmatprep.subr.mxu0 0.0
    %2509 = vmatpush1.msra.mxu0 0.0
    %2510 = vmatprep.subr.mxu0 0.0
    %2511 = vmatpush1.msra.mxu0 0.0
    %2512 = vmatprep.subr.mxu0 0.0
    %2513 = vmatpush1.msra.mxu0 0.0
    %2514 = vmatprep.subr.mxu0 0.0
    %2515 = vmatpush1.msra.mxu0 0.0
    %2516 = vmatprep.subr.mxu0 0.0
    %2517 = vmatpush1.msra.mxu0 0.0
    %2518 = vmatprep.subr.mxu0 0.0
    %2519 = vmatpush1.msra.mxu0 0.0
    %2520 = vmatprep.subr.mxu0 0.0
    %2521 = vmatpush1.msra.mxu0 0.0
    %2522 = vmatprep.subr.mxu0 0.0
    %2523 = vmatpush1.msra.mxu0 0.0
    %2524 = vmatprep.subr.mxu0 0.0
    %2525 = vmatpush1.msra.mxu0 0.0
    %2526 = vmatprep.subr.mxu0 0.0
    %2527 = vmatpush1.msra.mxu0 0.0
    %2528 = vmatprep.subr.mxu0 0.0
    %2529 = vmatpush1.msra.mxu0 0.0
    %2530 = vmatprep.subr.mxu0 0.0
    %2531 = vmatpush1.msra.mxu0 0.0
    %2532 = vmatprep.mubr.f32.mxu0 0.0
    %2533 = vmatmul.mubr.f32.gmra.mrb[0].mxu0 %v587
    %v2534 = vpop.f32.mrb[0].mxu0
    %v2535 = vadd.f32 0.0, %v2534
    %v2536 = vpop.f32.mrb[0].mxu0
    %2537 = vmatprep.mubr.f32.mxu0 0.0
    %2538 = vmatmul.mubr.f32.gmra.mrb[0].mxu0 %v590
    %v2539 = vpop.f32.mrb[0].mxu0
    %v2540 = vadd.f32 0.0, %v2539
    %v2541 = vpop.f32.mrb[0].mxu0
    %2542 = vmatprep.mubr.f32.mxu0 0.0
    %2543 = vmatmul.mubr.f32.gmra.mrb[0].mxu0 %v593
    %v2544 = vpop.f32.mrb[0].mxu0
    %v2545 = vadd.f32 0.0, %v2544
    %v2546 = vpop.f32.mrb[0].mxu0
    %2547 = vmatprep.mubr.f32.mxu0 0.0
    %2548 = vmatmul.mubr.f32.gmra.mrb[0].mxu0 %v596
    %v2549 = vpop.f32.mrb[0].mxu0
    %v2550 = vadd.f32 0.0, %v2549
    %v2551 = vpop.f32.mrb[0].mxu0
    %2552 = vmatprep.mubr.f32.mxu0 0.0
    %2553 = vmatmul.mubr.f32.gmra.mrb[0].mxu0 %v599
    %v2554 = vpop.f32.mrb[0].mxu0
    %v2555 = vadd.f32 0.0, %v2554
    %v2556 = vpop.f32.mrb[0].mxu0
    %2557 = vmatprep.mubr.f32.mxu0 0.0
    %2558 = vmatmul.mubr.f32.gmra.mrb[0].mxu0 %v602
    %v2559 = vpop.f32.mrb[0].mxu0
    %v2560 = vadd.f32 0.0, %v2559
    %v2561 = vpop.f32.mrb[0].mxu0
    %2562 = vmatprep.mubr.f32.mxu0 0.0
    %2563 = vmatmul.mubr.f32.gmra.mrb[0].mxu0 %v605
    %v2564 = vpop.f32.mrb[0].mxu0
    %v2565 = vadd.f32 0.0, %v2564
    %v2566 = vpop.f32.mrb[0].mxu0
    %2567 = vmatprep.mubr.f32.mxu0 0.0
    %2568 = vmatmul.mubr.f32.gmra.mrb[0].mxu0 %v608
    %v2569 = vpop.f32.mrb[0].mxu0
    %v2570 = vadd.f32 0.0, %v2569
    %v2571 = vpop.f32.mrb[0].mxu0
    %2572 = vmatprep.mubr.f32.mxu0 0.0
    %2573 = vmatmul.mubr.f32.gmra.mrb[0].mxu0 %v611
    %v2574 = vpop.f32.mrb[0].mxu0
    %v2575 = vadd.f32 0.0, %v2574
    %v2576 = vpop.f32.mrb[0].mxu0
    %2577 = vmatprep.mubr.f32.mxu0 0.0
    %2578 = vmatmul.mubr.f32.gmra.mrb[0].mxu0 %v614
    %v2579 = vpop.f32.mrb[0].mxu0
    %v2580 = vadd.f32 0.0, %v2579
    %v2581 = vpop.f32.mrb[0].mxu0
    %2582 = vmatprep.mubr.f32.mxu0 0.0
    %2583 = vmatmul.mubr.f32.gmra.mrb[0].mxu0 %v617
    %v2584 = vpop.f32.mrb[0].mxu0
    %v2585 = vadd.f32 0.0, %v2584
    %v2586 = vpop.f32.mrb[0].mxu0
    %2587 = vmatprep.mubr.f32.mxu0 0.0
    %2588 = vmatmul.mubr.f32.gmra.mrb[0].mxu0 %v620
    %v2589 = vpop.f32.mrb[0].mxu0
    %v2590 = vadd.f32 0.0, %v2589
    %v2591 = vpop.f32.mrb[0].mxu0
    %2592 = vmatprep.mubr.f32.mxu0 0.0
    %2593 = vmatmul.mubr.f32.gmra.mrb[0].mxu0 %v623
    %v2594 = vpop.f32.mrb[0].mxu0
    %v2595 = vadd.f32 0.0, %v2594
    %v2596 = vpop.f32.mrb[0].mxu0
    %2597 = vmatprep.mubr.f32.mxu0 0.0
    %2598 = vmatmul.mubr.f32.gmra.mrb[0].mxu0 %v626
    %v2599 = vpop.f32.mrb[0].mxu0
    %v2600 = vadd.f32 0.0, %v2599
    %v2601 = vpop.f32.mrb[0].mxu0
    %2602 = vmatprep.mubr.f32.mxu0 0.0
    %2603 = vmatmul.mubr.f32.gmra.mrb[0].mxu0 %v629
    %v2604 = vpop.f32.mrb[0].mxu0
    %v2605 = vadd.f32 0.0, %v2604
    %v2606 = vpop.f32.mrb[0].mxu0
    %2607 = vmatprep.mubr.f32.mxu0 0.0
    %2608 = vmatmul.mubr.f32.gmra.mrb[0].mxu0 %v632
    %v2609 = vpop.f32.mrb[0].mxu0
    %v2610 = vadd.f32 0.0, %v2609
    %v2611 = vpop.f32.mrb[0].mxu0
    %2612 = vdwg.mxu0
    %s2613 = scalar_lea.vmem %s3, 160
    %v2614 = vld [vmem:[%s2613] sm:$0xff]
    %v2615 = vld [vmem:[%s2613 + $0x8] sm:$0xff]
    %v2616 = vld [vmem:[%s2613 + $0x10] sm:$0xff]
    %v2617 = vld [vmem:[%s2613 + $0x18] sm:$0xff]
    %2618 = vmatprep.subr.mxu0 0.0
    %2619 = vmatpush1.msra.mxu0 %v2614
    %2620 = vmatprep.subr.mxu0 0.0
    %2621 = vmatpush1.msra.mxu0 %v2615
    %2622 = vmatprep.subr.mxu0 0.0
    %2623 = vmatpush1.msra.mxu0 %v2616
    %2624 = vmatprep.subr.mxu0 0.0
    %2625 = vmatpush1.msra.mxu0 %v2617
    %2626 = vmatprep.subr.mxu0 0.0
    %2627 = vmatpush1.msra.mxu0 0.0
    %2628 = vmatprep.subr.mxu0 0.0
    %2629 = vmatpush1.msra.mxu0 0.0
    %2630 = vmatprep.subr.mxu0 0.0
    %2631 = vmatpush1.msra.mxu0 0.0
    %2632 = vmatprep.subr.mxu0 0.0
    %2633 = vmatpush1.msra.mxu0 0.0
    %2634 = vmatprep.subr.mxu0 0.0
    %2635 = vmatpush1.msra.mxu0 0.0
    %2636 = vmatprep.subr.mxu0 0.0
    %2637 = vmatpush1.msra.mxu0 0.0
    %2638 = vmatprep.subr.mxu0 0.0
    %2639 = vmatpush1.msra.mxu0 0.0
    %2640 = vmatprep.subr.mxu0 0.0
    %2641 = vmatpush1.msra.mxu0 0.0
    %2642 = vmatprep.subr.mxu0 0.0
    %2643 = vmatpush1.msra.mxu0 0.0
    %2644 = vmatprep.subr.mxu0 0.0
    %2645 = vmatpush1.msra.mxu0 0.0
    %2646 = vmatprep.subr.mxu0 0.0
    %2647 = vmatpush1.msra.mxu0 0.0
    %2648 = vmatprep.subr.mxu0 0.0
    %2649 = vmatpush1.msra.mxu0 0.0
    %2650 = vmatprep.subr.mxu0 0.0
    %2651 = vmatpush1.msra.mxu0 0.0
    %2652 = vmatprep.subr.mxu0 0.0
    %2653 = vmatpush1.msra.mxu0 0.0
    %2654 = vmatprep.subr.mxu0 0.0
    %2655 = vmatpush1.msra.mxu0 0.0
    %2656 = vmatprep.subr.mxu0 0.0
    %2657 = vmatpush1.msra.mxu0 0.0
    %2658 = vmatprep.subr.mxu0 0.0
    %2659 = vmatpush1.msra.mxu0 0.0
    %2660 = vmatprep.subr.mxu0 0.0
    %2661 = vmatpush1.msra.mxu0 0.0
    %2662 = vmatprep.subr.mxu0 0.0
    %2663 = vmatpush1.msra.mxu0 0.0
    %2664 = vmatprep.subr.mxu0 0.0
    %2665 = vmatpush1.msra.mxu0 0.0
    %2666 = vmatprep.subr.mxu0 0.0
    %2667 = vmatpush1.msra.mxu0 0.0
    %2668 = vmatprep.subr.mxu0 0.0
    %2669 = vmatpush1.msra.mxu0 0.0
    %2670 = vmatprep.subr.mxu0 0.0
    %2671 = vmatpush1.msra.mxu0 0.0
    %2672 = vmatprep.subr.mxu0 0.0
    %2673 = vmatpush1.msra.mxu0 0.0
    %2674 = vmatprep.subr.mxu0 0.0
    %2675 = vmatpush1.msra.mxu0 0.0
    %2676 = vmatprep.subr.mxu0 0.0
    %2677 = vmatpush1.msra.mxu0 0.0
    %2678 = vmatprep.subr.mxu0 0.0
    %2679 = vmatpush1.msra.mxu0 0.0
    %2680 = vmatprep.subr.mxu0 0.0
    %2681 = vmatpush1.msra.mxu0 0.0
    %2682 = vmatprep.mubr.f32.mxu0 0.0
    %2683 = vmatmul.mubr.f32.gmra.mrb[0].mxu0 %v587
    %v2684 = vpop.f32.mrb[0].mxu0
    %v2685 = vadd.f32 0.0, %v2684
    %v2686 = vpop.f32.mrb[0].mxu0
    %2687 = vmatprep.mubr.f32.mxu0 0.0
    %2688 = vmatmul.mubr.f32.gmra.mrb[0].mxu0 %v590
    %v2689 = vpop.f32.mrb[0].mxu0
    %v2690 = vadd.f32 0.0, %v2689
    %v2691 = vpop.f32.mrb[0].mxu0
    %2692 = vmatprep.mubr.f32.mxu0 0.0
    %2693 = vmatmul.mubr.f32.gmra.mrb[0].mxu0 %v593
    %v2694 = vpop.f32.mrb[0].mxu0
    %v2695 = vadd.f32 0.0, %v2694
    %v2696 = vpop.f32.mrb[0].mxu0
    %2697 = vmatprep.mubr.f32.mxu0 0.0
    %2698 = vmatmul.mubr.f32.gmra.mrb[0].mxu0 %v596
    %v2699 = vpop.f32.mrb[0].mxu0
    %v2700 = vadd.f32 0.0, %v2699
    %v2701 = vpop.f32.mrb[0].mxu0
    %2702 = vmatprep.mubr.f32.mxu0 0.0
    %2703 = vmatmul.mubr.f32.gmra.mrb[0].mxu0 %v599
    %v2704 = vpop.f32.mrb[0].mxu0
    %v2705 = vadd.f32 0.0, %v2704
    %v2706 = vpop.f32.mrb[0].mxu0
    %2707 = vmatprep.mubr.f32.mxu0 0.0
    %2708 = vmatmul.mubr.f32.gmra.mrb[0].mxu0 %v602
    %v2709 = vpop.f32.mrb[0].mxu0
    %v2710 = vadd.f32 0.0, %v2709
    %v2711 = vpop.f32.mrb[0].mxu0
    %2712 = vmatprep.mubr.f32.mxu0 0.0
    %2713 = vmatmul.mubr.f32.gmra.mrb[0].mxu0 %v605
    %v2714 = vpop.f32.mrb[0].mxu0
    %v2715 = vadd.f32 0.0, %v2714
    %v2716 = vpop.f32.mrb[0].mxu0
    %2717 = vmatprep.mubr.f32.mxu0 0.0
    %2718 = vmatmul.mubr.f32.gmra.mrb[0].mxu0 %v608
    %v2719 = vpop.f32.mrb[0].mxu0
    %v2720 = vadd.f32 0.0, %v2719
    %v2721 = vpop.f32.mrb[0].mxu0
    %2722 = vmatprep.mubr.f32.mxu0 0.0
    %2723 = vmatmul.mubr.f32.gmra.mrb[0].mxu0 %v611
    %v2724 = vpop.f32.mrb[0].mxu0
    %v2725 = vadd.f32 0.0, %v2724
    %v2726 = vpop.f32.mrb[0].mxu0
    %2727 = vmatprep.mubr.f32.mxu0 0.0
    %2728 = vmatmul.mubr.f32.gmra.mrb[0].mxu0 %v614
    %v2729 = vpop.f32.mrb[0].mxu0
    %v2730 = vadd.f32 0.0, %v2729
    %v2731 = vpop.f32.mrb[0].mxu0
    %2732 = vmatprep.mubr.f32.mxu0 0.0
    %2733 = vmatmul.mubr.f32.gmra.mrb[0].mxu0 %v617
    %v2734 = vpop.f32.mrb[0].mxu0
    %v2735 = vadd.f32 0.0, %v2734
    %v2736 = vpop.f32.mrb[0].mxu0
    %2737 = vmatprep.mubr.f32.mxu0 0.0
    %2738 = vmatmul.mubr.f32.gmra.mrb[0].mxu0 %v620
    %v2739 = vpop.f32.mrb[0].mxu0
    %v2740 = vadd.f32 0.0, %v2739
    %v2741 = vpop.f32.mrb[0].mxu0
    %2742 = vmatprep.mubr.f32.mxu0 0.0
    %2743 = vmatmul.mubr.f32.gmra.mrb[0].mxu0 %v623
    %v2744 = vpop.f32.mrb[0].mxu0
    %v2745 = vadd.f32 0.0, %v2744
    %v2746 = vpop.f32.mrb[0].mxu0
    %2747 = vmatprep.mubr.f32.mxu0 0.0
    %2748 = vmatmul.mubr.f32.gmra.mrb[0].mxu0 %v626
    %v2749 = vpop.f32.mrb[0].mxu0
    %v2750 = vadd.f32 0.0, %v2749
    %v2751 = vpop.f32.mrb[0].mxu0
    %2752 = vmatprep.mubr.f32.mxu0 0.0
    %2753 = vmatmul.mubr.f32.gmra.mrb[0].mxu0 %v629
    %v2754 = vpop.f32.mrb[0].mxu0
    %v2755 = vadd.f32 0.0, %v2754
    %v2756 = vpop.f32.mrb[0].mxu0
    %2757 = vmatprep.mubr.f32.mxu0 0.0
    %2758 = vmatmul.mubr.f32.gmra.mrb[0].mxu0 %v632
    %v2759 = vpop.f32.mrb[0].mxu0
    %v2760 = vadd.f32 0.0, %v2759
    %v2761 = vpop.f32.mrb[0].mxu0
    %2762 = vdwg.mxu0
    %v2763 = vsel %vm1079, %v2297, 0.0
    %2764 = vadd.xlane.f32.xlu0 %v2763
    %v2765 = vpop.xlane.xlu0 %2764
    %v2766 = vsel %vm1079, %v2298, 0.0
    %2767 = vadd.xlane.f32.xlu0 %v2766
    %v2768 = vpop.xlane.xlu0 %2767
    %v2769 = vsel %vm1079, %v2299, 0.0
    %2770 = vadd.xlane.f32.xlu0 %v2769
    %v2771 = vpop.xlane.xlu0 %2770
    %v2772 = vsel %vm1079, %v2300, 0.0
    %2773 = vadd.xlane.f32.xlu0 %v2772
    %v2774 = vpop.xlane.xlu0 %2773
    %v2775 = vsel %vm1079, %v2301, 0.0
    %2776 = vadd.xlane.f32.xlu0 %v2775
    %v2777 = vpop.xlane.xlu0 %2776
    %v2778 = vsel %vm1079, %v2302, 0.0
    %2779 = vadd.xlane.f32.xlu0 %v2778
    %v2780 = vpop.xlane.xlu0 %2779
    %v2781 = vsel %vm1079, %v2303, 0.0
    %2782 = vadd.xlane.f32.xlu0 %v2781
    %v2783 = vpop.xlane.xlu0 %2782
    %v2784 = vsel %vm1079, %v2304, 0.0
    %2785 = vadd.xlane.f32.xlu0 %v2784
    %v2786 = vpop.xlane.xlu0 %2785
    %v2787 = vsel %vm1079, %v2305, 0.0
    %2788 = vadd.xlane.f32.xlu0 %v2787
    %v2789 = vpop.xlane.xlu0 %2788
    %v2790 = vsel %vm1079, %v2306, 0.0
    %2791 = vadd.xlane.f32.xlu0 %v2790
    %v2792 = vpop.xlane.xlu0 %2791
    %v2793 = vsel %vm1079, %v2307, 0.0
    %2794 = vadd.xlane.f32.xlu0 %v2793
    %v2795 = vpop.xlane.xlu0 %2794
    %v2796 = vsel %vm1079, %v2308, 0.0
    %2797 = vadd.xlane.f32.xlu0 %v2796
    %v2798 = vpop.xlane.xlu0 %2797
    %v2799 = vsel %vm1079, %v2309, 0.0
    %2800 = vadd.xlane.f32.xlu0 %v2799
    %v2801 = vpop.xlane.xlu0 %2800
    %v2802 = vsel %vm1079, %v2310, 0.0
    %2803 = vadd.xlane.f32.xlu0 %v2802
    %v2804 = vpop.xlane.xlu0 %2803
    %v2805 = vsel %vm1079, %v2311, 0.0
    %2806 = vadd.xlane.f32.xlu0 %v2805
    %v2807 = vpop.xlane.xlu0 %2806
    %v2808 = vsel %vm1079, %v2312, 0.0
    %2809 = vadd.xlane.f32.xlu0 %v2808
    %v2810 = vpop.xlane.xlu0 %2809
    %v2811 = vmul.f32 %v2765, %v1128
    %v2812 = vmul.f32 %v2768, %v1128
    %v2813 = vmul.f32 %v2771, %v1128
    %v2814 = vmul.f32 %v2774, %v1128
    %v2815 = vmul.f32 %v2777, %v1128
    %v2816 = vmul.f32 %v2780, %v1128
    %v2817 = vmul.f32 %v2783, %v1128
    %v2818 = vmul.f32 %v2786, %v1128
    %v2819 = vmul.f32 %v2789, %v1128
    %v2820 = vmul.f32 %v2792, %v1128
    %v2821 = vmul.f32 %v2795, %v1128
    %v2822 = vmul.f32 %v2798, %v1128
    %v2823 = vmul.f32 %v2801, %v1128
    %v2824 = vmul.f32 %v2804, %v1128
    %v2825 = vmul.f32 %v2807, %v1128
    %v2826 = vmul.f32 %v2810, %v1128
    %v2827 = vsub.f32 %v2297, %v2811
    %v2828 = vsub.f32 %v2298, %v2812
    %v2829 = vsub.f32 %v2299, %v2813
    %v2830 = vsub.f32 %v2300, %v2814
    %v2831 = vsub.f32 %v2301, %v2815
    %v2832 = vsub.f32 %v2302, %v2816
    %v2833 = vsub.f32 %v2303, %v2817
    %v2834 = vsub.f32 %v2304, %v2818
    %v2835 = vsub.f32 %v2305, %v2819
    %v2836 = vsub.f32 %v2306, %v2820
    %v2837 = vsub.f32 %v2307, %v2821
    %v2838 = vsub.f32 %v2308, %v2822
    %v2839 = vsub.f32 %v2309, %v2823
    %v2840 = vsub.f32 %v2310, %v2824
    %v2841 = vsub.f32 %v2311, %v2825
    %v2842 = vsub.f32 %v2312, %v2826
    %v2843 = vmul.f32 %v2827, %v2827
    %v2844 = vmul.f32 %v2828, %v2828
    %v2845 = vmul.f32 %v2829, %v2829
    %v2846 = vmul.f32 %v2830, %v2830
    %v2847 = vmul.f32 %v2831, %v2831
    %v2848 = vmul.f32 %v2832, %v2832
    %v2849 = vmul.f32 %v2833, %v2833
    %v2850 = vmul.f32 %v2834, %v2834
    %v2851 = vmul.f32 %v2835, %v2835
    %v2852 = vmul.f32 %v2836, %v2836
    %v2853 = vmul.f32 %v2837, %v2837
    %v2854 = vmul.f32 %v2838, %v2838
    %v2855 = vmul.f32 %v2839, %v2839
    %v2856 = vmul.f32 %v2840, %v2840
    %v2857 = vmul.f32 %v2841, %v2841
    %v2858 = vmul.f32 %v2842, %v2842
    %v2859 = vsel %vm1079, %v2843, 0.0
    %2860 = vadd.xlane.f32.xlu0 %v2859
    %v2861 = vpop.xlane.xlu0 %2860
    %v2862 = vsel %vm1079, %v2844, 0.0
    %2863 = vadd.xlane.f32.xlu0 %v2862
    %v2864 = vpop.xlane.xlu0 %2863
    %v2865 = vsel %vm1079, %v2845, 0.0
    %2866 = vadd.xlane.f32.xlu0 %v2865
    %v2867 = vpop.xlane.xlu0 %2866
    %v2868 = vsel %vm1079, %v2846, 0.0
    %2869 = vadd.xlane.f32.xlu0 %v2868
    %v2870 = vpop.xlane.xlu0 %2869
    %v2871 = vsel %vm1079, %v2847, 0.0
    %2872 = vadd.xlane.f32.xlu0 %v2871
    %v2873 = vpop.xlane.xlu0 %2872
    %v2874 = vsel %vm1079, %v2848, 0.0
    %2875 = vadd.xlane.f32.xlu0 %v2874
    %v2876 = vpop.xlane.xlu0 %2875
    %v2877 = vsel %vm1079, %v2849, 0.0
    %2878 = vadd.xlane.f32.xlu0 %v2877
    %v2879 = vpop.xlane.xlu0 %2878
    %v2880 = vsel %vm1079, %v2850, 0.0
    %2881 = vadd.xlane.f32.xlu0 %v2880
    %v2882 = vpop.xlane.xlu0 %2881
    %v2883 = vsel %vm1079, %v2851, 0.0
    %2884 = vadd.xlane.f32.xlu0 %v2883
    %v2885 = vpop.xlane.xlu0 %2884
    %v2886 = vsel %vm1079, %v2852, 0.0
    %2887 = vadd.xlane.f32.xlu0 %v2886
    %v2888 = vpop.xlane.xlu0 %2887
    %v2889 = vsel %vm1079, %v2853, 0.0
    %2890 = vadd.xlane.f32.xlu0 %v2889
    %v2891 = vpop.xlane.xlu0 %2890
    %v2892 = vsel %vm1079, %v2854, 0.0
    %2893 = vadd.xlane.f32.xlu0 %v2892
    %v2894 = vpop.xlane.xlu0 %2893
    %v2895 = vsel %vm1079, %v2855, 0.0
    %2896 = vadd.xlane.f32.xlu0 %v2895
    %v2897 = vpop.xlane.xlu0 %2896
    %v2898 = vsel %vm1079, %v2856, 0.0
    %2899 = vadd.xlane.f32.xlu0 %v2898
    %v2900 = vpop.xlane.xlu0 %2899
    %v2901 = vsel %vm1079, %v2857, 0.0
    %2902 = vadd.xlane.f32.xlu0 %v2901
    %v2903 = vpop.xlane.xlu0 %2902
    %v2904 = vsel %vm1079, %v2858, 0.0
    %2905 = vadd.xlane.f32.xlu0 %v2904
    %v2906 = vpop.xlane.xlu0 %2905
    %v2907 = vmul.f32 %v2861, 0.015873017
    %v2908 = vmul.f32 %v2864, 0.015873017
    %v2909 = vmul.f32 %v2867, 0.015873017
    %v2910 = vmul.f32 %v2870, 0.015873017
    %v2911 = vmul.f32 %v2873, 0.015873017
    %v2912 = vmul.f32 %v2876, 0.015873017
    %v2913 = vmul.f32 %v2879, 0.015873017
    %v2914 = vmul.f32 %v2882, 0.015873017
    %v2915 = vmul.f32 %v2885, 0.015873017
    %v2916 = vmul.f32 %v2888, 0.015873017
    %v2917 = vmul.f32 %v2891, 0.015873017
    %v2918 = vmul.f32 %v2894, 0.015873017
    %v2919 = vmul.f32 %v2897, 0.015873017
    %v2920 = vmul.f32 %v2900, 0.015873017
    %v2921 = vmul.f32 %v2903, 0.015873017
    %v2922 = vmul.f32 %v2906, 0.015873017
    %v2923 = vrsqrt.pop %v2907
    %v2924 = vmul.f32 %v2907, %v2923
    %vm2925 = vcmp.eq.f32.partialorder %v2907, inf
    %v2926 = vsel %vm2925, %v2907, %v2924
    %vm2927 = vcmp.eq.f32.partialorder %v2907, 0.0
    %v2928 = vand.u32 %v2907, 2147483648
    %v2929 = vsel %vm2927, %v2928, %v2926
    %v2930 = vrsqrt.pop %v2908
    %v2931 = vmul.f32 %v2908, %v2930
    %vm2932 = vcmp.eq.f32.partialorder %v2908, inf
    %v2933 = vsel %vm2932, %v2908, %v2931
    %vm2934 = vcmp.eq.f32.partialorder %v2908, 0.0
    %v2935 = vand.u32 %v2908, 2147483648
    %v2936 = vsel %vm2934, %v2935, %v2933
    %v2937 = vrsqrt.pop %v2909
    %v2938 = vmul.f32 %v2909, %v2937
    %vm2939 = vcmp.eq.f32.partialorder %v2909, inf
    %v2940 = vsel %vm2939, %v2909, %v2938
    %vm2941 = vcmp.eq.f32.partialorder %v2909, 0.0
    %v2942 = vand.u32 %v2909, 2147483648
    %v2943 = vsel %vm2941, %v2942, %v2940
    %v2944 = vrsqrt.pop %v2910
    %v2945 = vmul.f32 %v2910, %v2944
    %vm2946 = vcmp.eq.f32.partialorder %v2910, inf
    %v2947 = vsel %vm2946, %v2910, %v2945
    %vm2948 = vcmp.eq.f32.partialorder %v2910, 0.0
    %v2949 = vand.u32 %v2910, 2147483648
    %v2950 = vsel %vm2948, %v2949, %v2947
    %v2951 = vrsqrt.pop %v2911
    %v2952 = vmul.f32 %v2911, %v2951
    %vm2953 = vcmp.eq.f32.partialorder %v2911, inf
    %v2954 = vsel %vm2953, %v2911, %v2952
    %vm2955 = vcmp.eq.f32.partialorder %v2911, 0.0
    %v2956 = vand.u32 %v2911, 2147483648
    %v2957 = vsel %vm2955, %v2956, %v2954
    %v2958 = vrsqrt.pop %v2912
    %v2959 = vmul.f32 %v2912, %v2958
    %vm2960 = vcmp.eq.f32.partialorder %v2912, inf
    %v2961 = vsel %vm2960, %v2912, %v2959
    %vm2962 = vcmp.eq.f32.partialorder %v2912, 0.0
    %v2963 = vand.u32 %v2912, 2147483648
    %v2964 = vsel %vm2962, %v2963, %v2961
    %v2965 = vrsqrt.pop %v2913
    %v2966 = vmul.f32 %v2913, %v2965
    %vm2967 = vcmp.eq.f32.partialorder %v2913, inf
    %v2968 = vsel %vm2967, %v2913, %v2966
    %vm2969 = vcmp.eq.f32.partialorder %v2913, 0.0
    %v2970 = vand.u32 %v2913, 2147483648
    %v2971 = vsel %vm2969, %v2970, %v2968
    %v2972 = vrsqrt.pop %v2914
    %v2973 = vmul.f32 %v2914, %v2972
    %vm2974 = vcmp.eq.f32.partialorder %v2914, inf
    %v2975 = vsel %vm2974, %v2914, %v2973
    %vm2976 = vcmp.eq.f32.partialorder %v2914, 0.0
    %v2977 = vand.u32 %v2914, 2147483648
    %v2978 = vsel %vm2976, %v2977, %v2975
    %v2979 = vrsqrt.pop %v2915
    %v2980 = vmul.f32 %v2915, %v2979
    %vm2981 = vcmp.eq.f32.partialorder %v2915, inf
    %v2982 = vsel %vm2981, %v2915, %v2980
    %vm2983 = vcmp.eq.f32.partialorder %v2915, 0.0
    %v2984 = vand.u32 %v2915, 2147483648
    %v2985 = vsel %vm2983, %v2984, %v2982
    %v2986 = vrsqrt.pop %v2916
    %v2987 = vmul.f32 %v2916, %v2986
    %vm2988 = vcmp.eq.f32.partialorder %v2916, inf
    %v2989 = vsel %vm2988, %v2916, %v2987
    %vm2990 = vcmp.eq.f32.partialorder %v2916, 0.0
    %v2991 = vand.u32 %v2916, 2147483648
    %v2992 = vsel %vm2990, %v2991, %v2989
    %v2993 = vrsqrt.pop %v2917
    %v2994 = vmul.f32 %v2917, %v2993
    %vm2995 = vcmp.eq.f32.partialorder %v2917, inf
    %v2996 = vsel %vm2995, %v2917, %v2994
    %vm2997 = vcmp.eq.f32.partialorder %v2917, 0.0
    %v2998 = vand.u32 %v2917, 2147483648
    %v2999 = vsel %vm2997, %v2998, %v2996
    %v3000 = vrsqrt.pop %v2918
    %v3001 = vmul.f32 %v2918, %v3000
    %vm3002 = vcmp.eq.f32.partialorder %v2918, inf
    %v3003 = vsel %vm3002, %v2918, %v3001
    %vm3004 = vcmp.eq.f32.partialorder %v2918, 0.0
    %v3005 = vand.u32 %v2918, 2147483648
    %v3006 = vsel %vm3004, %v3005, %v3003
    %v3007 = vrsqrt.pop %v2919
    %v3008 = vmul.f32 %v2919, %v3007
    %vm3009 = vcmp.eq.f32.partialorder %v2919, inf
    %v3010 = vsel %vm3009, %v2919, %v3008
    %vm3011 = vcmp.eq.f32.partialorder %v2919, 0.0
    %v3012 = vand.u32 %v2919, 2147483648
    %v3013 = vsel %vm3011, %v3012, %v3010
    %v3014 = vrsqrt.pop %v2920
    %v3015 = vmul.f32 %v2920, %v3014
    %vm3016 = vcmp.eq.f32.partialorder %v2920, inf
    %v3017 = vsel %vm3016, %v2920, %v3015
    %vm3018 = vcmp.eq.f32.partialorder %v2920, 0.0
    %v3019 = vand.u32 %v2920, 2147483648
    %v3020 = vsel %vm3018, %v3019, %v3017
    %v3021 = vrsqrt.pop %v2921
    %v3022 = vmul.f32 %v2921, %v3021
    %vm3023 = vcmp.eq.f32.partialorder %v2921, inf
    %v3024 = vsel %vm3023, %v2921, %v3022
    %vm3025 = vcmp.eq.f32.partialorder %v2921, 0.0
    %v3026 = vand.u32 %v2921, 2147483648
    %v3027 = vsel %vm3025, %v3026, %v3024
    %v3028 = vrsqrt.pop %v2922
    %v3029 = vmul.f32 %v2922, %v3028
    %vm3030 = vcmp.eq.f32.partialorder %v2922, inf
    %v3031 = vsel %vm3030, %v2922, %v3029
    %vm3032 = vcmp.eq.f32.partialorder %v2922, 0.0
    %v3033 = vand.u32 %v2922, 2147483648
    %v3034 = vsel %vm3032, %v3033, %v3031
    %v3035 = vadd.f32 %v2929, 1e-05
    %v3036 = vadd.f32 %v2936, 1e-05
    %v3037 = vadd.f32 %v2943, 1e-05
    %v3038 = vadd.f32 %v2950, 1e-05
    %v3039 = vadd.f32 %v2957, 1e-05
    %v3040 = vadd.f32 %v2964, 1e-05
    %v3041 = vadd.f32 %v2971, 1e-05
    %v3042 = vadd.f32 %v2978, 1e-05
    %v3043 = vadd.f32 %v2985, 1e-05
    %v3044 = vadd.f32 %v2992, 1e-05
    %v3045 = vadd.f32 %v2999, 1e-05
    %v3046 = vadd.f32 %v3006, 1e-05
    %v3047 = vadd.f32 %v3013, 1e-05
    %v3048 = vadd.f32 %v3020, 1e-05
    %v3049 = vadd.f32 %v3027, 1e-05
    %v3050 = vadd.f32 %v3034, 1e-05
    %v3051 = vrcp.pop %v3035
    %v3052 = vrcp.pop %v3036
    %v3053 = vrcp.pop %v3037
    %v3054 = vrcp.pop %v3038
    %v3055 = vrcp.pop %v3039
    %v3056 = vrcp.pop %v3040
    %v3057 = vrcp.pop %v3041
    %v3058 = vrcp.pop %v3042
    %v3059 = vrcp.pop %v3043
    %v3060 = vrcp.pop %v3044
    %v3061 = vrcp.pop %v3045
    %v3062 = vrcp.pop %v3046
    %v3063 = vrcp.pop %v3047
    %v3064 = vrcp.pop %v3048
    %v3065 = vrcp.pop %v3049
    %v3066 = vrcp.pop %v3050
    %v3067 = vmul.f32 %v2535, %v2827
    %v3068 = vmul.f32 %v2540, %v2828
    %v3069 = vmul.f32 %v2545, %v2829
    %v3070 = vmul.f32 %v2550, %v2830
    %v3071 = vmul.f32 %v2555, %v2831
    %v3072 = vmul.f32 %v2560, %v2832
    %v3073 = vmul.f32 %v2565, %v2833
    %v3074 = vmul.f32 %v2570, %v2834
    %v3075 = vmul.f32 %v2575, %v2835
    %v3076 = vmul.f32 %v2580, %v2836
    %v3077 = vmul.f32 %v2585, %v2837
    %v3078 = vmul.f32 %v2590, %v2838
    %v3079 = vmul.f32 %v2595, %v2839
    %v3080 = vmul.f32 %v2600, %v2840
    %v3081 = vmul.f32 %v2605, %v2841
    %v3082 = vmul.f32 %v2610, %v2842
    %v3083 = vmul.f32 %v3067, %v3051
    %v3084 = vmul.f32 %v3068, %v3052
    %v3085 = vmul.f32 %v3069, %v3053
    %v3086 = vmul.f32 %v3070, %v3054
    %v3087 = vmul.f32 %v3071, %v3055
    %v3088 = vmul.f32 %v3072, %v3056
    %v3089 = vmul.f32 %v3073, %v3057
    %v3090 = vmul.f32 %v3074, %v3058
    %v3091 = vmul.f32 %v3075, %v3059
    %v3092 = vmul.f32 %v3076, %v3060
    %v3093 = vmul.f32 %v3077, %v3061
    %v3094 = vmul.f32 %v3078, %v3062
    %v3095 = vmul.f32 %v3079, %v3063
    %v3096 = vmul.f32 %v3080, %v3064
    %v3097 = vmul.f32 %v3081, %v3065
    %v3098 = vmul.f32 %v3082, %v3066
    %v3099 = vadd.f32 %v3083, %v2385
    %v3100 = vadd.f32 %v3084, %v2390
    %v3101 = vadd.f32 %v3085, %v2395
    %v3102 = vadd.f32 %v3086, %v2400
    %v3103 = vadd.f32 %v3087, %v2405
    %v3104 = vadd.f32 %v3088, %v2410
    %v3105 = vadd.f32 %v3089, %v2415
    %v3106 = vadd.f32 %v3090, %v2420
    %v3107 = vadd.f32 %v3091, %v2425
    %v3108 = vadd.f32 %v3092, %v2430
    %v3109 = vadd.f32 %v3093, %v2435
    %v3110 = vadd.f32 %v3094, %v2440
    %v3111 = vadd.f32 %v3095, %v2445
    %v3112 = vadd.f32 %v3096, %v2450
    %v3113 = vadd.f32 %v3097, %v2455
    %v3114 = vadd.f32 %v3098, %v2460
    %vm3115 = vcmp.gt.f32.partialorder %v3099, 0.0
    %vm3116 = vcmp.gt.f32.partialorder %v3100, 0.0
    %vm3117 = vcmp.gt.f32.partialorder %v3101, 0.0
    %vm3118 = vcmp.gt.f32.partialorder %v3102, 0.0
    %vm3119 = vcmp.gt.f32.partialorder %v3103, 0.0
    %vm3120 = vcmp.gt.f32.partialorder %v3104, 0.0
    %vm3121 = vcmp.gt.f32.partialorder %v3105, 0.0
    %vm3122 = vcmp.gt.f32.partialorder %v3106, 0.0
    %vm3123 = vcmp.gt.f32.partialorder %v3107, 0.0
    %vm3124 = vcmp.gt.f32.partialorder %v3108, 0.0
    %vm3125 = vcmp.gt.f32.partialorder %v3109, 0.0
    %vm3126 = vcmp.gt.f32.partialorder %v3110, 0.0
    %vm3127 = vcmp.gt.f32.partialorder %v3111, 0.0
    %vm3128 = vcmp.gt.f32.partialorder %v3112, 0.0
    %vm3129 = vcmp.gt.f32.partialorder %v3113, 0.0
    %vm3130 = vcmp.gt.f32.partialorder %v3114, 0.0
    %v3131 = vmul.f32 %v3099, 0.01
    %v3132 = vmul.f32 %v3100, 0.01
    %v3133 = vmul.f32 %v3101, 0.01
    %v3134 = vmul.f32 %v3102, 0.01
    %v3135 = vmul.f32 %v3103, 0.01
    %v3136 = vmul.f32 %v3104, 0.01
    %v3137 = vmul.f32 %v3105, 0.01
    %v3138 = vmul.f32 %v3106, 0.01
    %v3139 = vmul.f32 %v3107, 0.01
    %v3140 = vmul.f32 %v3108, 0.01
    %v3141 = vmul.f32 %v3109, 0.01
    %v3142 = vmul.f32 %v3110, 0.01
    %v3143 = vmul.f32 %v3111, 0.01
    %v3144 = vmul.f32 %v3112, 0.01
    %v3145 = vmul.f32 %v3113, 0.01
    %v3146 = vmul.f32 %v3114, 0.01
    %v3147 = vsel %vm3115, %v3099, %v3131
    %v3148 = vsel %vm3116, %v3100, %v3132
    %v3149 = vsel %vm3117, %v3101, %v3133
    %v3150 = vsel %vm3118, %v3102, %v3134
    %v3151 = vsel %vm3119, %v3103, %v3135
    %v3152 = vsel %vm3120, %v3104, %v3136
    %v3153 = vsel %vm3121, %v3105, %v3137
    %v3154 = vsel %vm3122, %v3106, %v3138
    %v3155 = vsel %vm3123, %v3107, %v3139
    %v3156 = vsel %vm3124, %v3108, %v3140
    %v3157 = vsel %vm3125, %v3109, %v3141
    %v3158 = vsel %vm3126, %v3110, %v3142
    %v3159 = vsel %vm3127, %v3111, %v3143
    %v3160 = vsel %vm3128, %v3112, %v3144
    %v3161 = vsel %vm3129, %v3113, %v3145
    %v3162 = vsel %vm3130, %v3114, %v3146
    %v3163 = vld [vmem:[%s10] sm:$0xff]
    %v3164 = vld [vmem:[%s10 + $0x8] sm:$0xff]
    %v3165 = vld [vmem:[%s10 + $0x10] sm:$0xff]
    %v3166 = vld [vmem:[%s10 + $0x18] sm:$0xff]
    %v3167 = vld [vmem:[%s10 + $0x20] sm:$0xff]
    %v3168 = vld [vmem:[%s10 + $0x28] sm:$0xff]
    %v3169 = vld [vmem:[%s10 + $0x30] sm:$0xff]
    %v3170 = vld [vmem:[%s10 + $0x38] sm:$0xff]
    %v3171 = vld [vmem:[%s11] sm:$0x1]
    %v3173 = vlaneseq
    %v3174 = vshrl.u32 %v3173, 7
    %v3175 = vsub.s32 0, %v3174
    %v3176 = vrot.slane %v3171, %v3175
    %v3179 = vsel %vm1079, %v3147, 0
    %v3182 = vsel %vm1079, %v3148, 0
    %v3185 = vsel %vm1079, %v3149, 0
    %v3188 = vsel %vm1079, %v3150, 0
    %v3191 = vsel %vm1079, %v3151, 0
    %v3194 = vsel %vm1079, %v3152, 0
    %v3197 = vsel %vm1079, %v3153, 0
    %v3200 = vsel %vm1079, %v3154, 0
    %v3203 = vsel %vm1079, %v3155, 0
    %v3206 = vsel %vm1079, %v3156, 0
    %v3209 = vsel %vm1079, %v3157, 0
    %v3212 = vsel %vm1079, %v3158, 0
    %v3215 = vsel %vm1079, %v3159, 0
    %v3218 = vsel %vm1079, %v3160, 0
    %v3221 = vsel %vm1079, %v3161, 0
    %v3224 = vsel %vm1079, %v3162, 0
    %3226 = vmatprep.subr.mxu0 0.0
    %3227 = vmatpush1.msra.mxu0 %v3163
    %3228 = vmatprep.subr.mxu0 0.0
    %3229 = vmatpush1.msra.mxu0 %v3164
    %3230 = vmatprep.subr.mxu0 0.0
    %3231 = vmatpush1.msra.mxu0 %v3165
    %3232 = vmatprep.subr.mxu0 0.0
    %3233 = vmatpush1.msra.mxu0 %v3166
    %3234 = vmatprep.subr.mxu0 0.0
    %3235 = vmatpush1.msra.mxu0 %v3167
    %3236 = vmatprep.subr.mxu0 0.0
    %3237 = vmatpush1.msra.mxu0 %v3168
    %3238 = vmatprep.subr.mxu0 0.0
    %3239 = vmatpush1.msra.mxu0 %v3169
    %3240 = vmatprep.subr.mxu0 0.0
    %3241 = vmatpush1.msra.mxu0 %v3170
    %3242 = vmatprep.subr.mxu0 0.0
    %3243 = vmatpush1.msra.mxu0 0.0
    %3244 = vmatprep.subr.mxu0 0.0
    %3245 = vmatpush1.msra.mxu0 0.0
    %3246 = vmatprep.subr.mxu0 0.0
    %3247 = vmatpush1.msra.mxu0 0.0
    %3248 = vmatprep.subr.mxu0 0.0
    %3249 = vmatpush1.msra.mxu0 0.0
    %3250 = vmatprep.subr.mxu0 0.0
    %3251 = vmatpush1.msra.mxu0 0.0
    %3252 = vmatprep.subr.mxu0 0.0
    %3253 = vmatpush1.msra.mxu0 0.0
    %3254 = vmatprep.subr.mxu0 0.0
    %3255 = vmatpush1.msra.mxu0 0.0
    %3256 = vmatprep.subr.mxu0 0.0
    %3257 = vmatpush1.msra.mxu0 0.0
    %3258 = vmatprep.subr.mxu0 0.0
    %3259 = vmatpush1.msra.mxu0 0.0
    %3260 = vmatprep.subr.mxu0 0.0
    %3261 = vmatpush1.msra.mxu0 0.0
    %3262 = vmatprep.subr.mxu0 0.0
    %3263 = vmatpush1.msra.mxu0 0.0
    %3264 = vmatprep.subr.mxu0 0.0
    %3265 = vmatpush1.msra.mxu0 0.0
    %3266 = vmatprep.subr.mxu0 0.0
    %3267 = vmatpush1.msra.mxu0 0.0
    %3268 = vmatprep.subr.mxu0 0.0
    %3269 = vmatpush1.msra.mxu0 0.0
    %3270 = vmatprep.subr.mxu0 0.0
    %3271 = vmatpush1.msra.mxu0 0.0
    %3272 = vmatprep.subr.mxu0 0.0
    %3273 = vmatpush1.msra.mxu0 0.0
    %3274 = vmatprep.subr.mxu0 0.0
    %3275 = vmatpush1.msra.mxu0 0.0
    %3276 = vmatprep.subr.mxu0 0.0
    %3277 = vmatpush1.msra.mxu0 0.0
    %3278 = vmatprep.subr.mxu0 0.0
    %3279 = vmatpush1.msra.mxu0 0.0
    %3280 = vmatprep.subr.mxu0 0.0
    %3281 = vmatpush1.msra.mxu0 0.0
    %3282 = vmatprep.subr.mxu0 0.0
    %3283 = vmatpush1.msra.mxu0 0.0
    %3284 = vmatprep.subr.mxu0 0.0
    %3285 = vmatpush1.msra.mxu0 0.0
    %3286 = vmatprep.subr.mxu0 0.0
    %3287 = vmatpush1.msra.mxu0 0.0
    %3288 = vmatprep.subr.mxu0 0.0
    %3289 = vmatpush1.msra.mxu0 0.0
    %3290 = vmatprep.mubr.f32.mxu0 0.0
    %3291 = vmatmul.mubr.f32.gmra.mrb[0].mxu0 %v3179
    %v3292 = vpop.f32.mrb[0].mxu0
    %v3293 = vadd.f32 %v3176, %v3292
    %v3294 = vpop.f32.mrb[0].mxu0
    %3295 = vmatprep.mubr.f32.mxu0 0.0
    %3296 = vmatmul.mubr.f32.gmra.mrb[0].mxu0 %v3182
    %v3297 = vpop.f32.mrb[0].mxu0
    %v3298 = vadd.f32 %v3176, %v3297
    %v3299 = vpop.f32.mrb[0].mxu0
    %3300 = vmatprep.mubr.f32.mxu0 0.0
    %3301 = vmatmul.mubr.f32.gmra.mrb[0].mxu0 %v3185
    %v3302 = vpop.f32.mrb[0].mxu0
    %v3303 = vadd.f32 %v3176, %v3302
    %v3304 = vpop.f32.mrb[0].mxu0
    %3305 = vmatprep.mubr.f32.mxu0 0.0
    %3306 = vmatmul.mubr.f32.gmra.mrb[0].mxu0 %v3188
    %v3307 = vpop.f32.mrb[0].mxu0
    %v3308 = vadd.f32 %v3176, %v3307
    %v3309 = vpop.f32.mrb[0].mxu0
    %3310 = vmatprep.mubr.f32.mxu0 0.0
    %3311 = vmatmul.mubr.f32.gmra.mrb[0].mxu0 %v3191
    %v3312 = vpop.f32.mrb[0].mxu0
    %v3313 = vadd.f32 %v3176, %v3312
    %v3314 = vpop.f32.mrb[0].mxu0
    %3315 = vmatprep.mubr.f32.mxu0 0.0
    %3316 = vmatmul.mubr.f32.gmra.mrb[0].mxu0 %v3194
    %v3317 = vpop.f32.mrb[0].mxu0
    %v3318 = vadd.f32 %v3176, %v3317
    %v3319 = vpop.f32.mrb[0].mxu0
    %3320 = vmatprep.mubr.f32.mxu0 0.0
    %3321 = vmatmul.mubr.f32.gmra.mrb[0].mxu0 %v3197
    %v3322 = vpop.f32.mrb[0].mxu0
    %v3323 = vadd.f32 %v3176, %v3322
    %v3324 = vpop.f32.mrb[0].mxu0
    %3325 = vmatprep.mubr.f32.mxu0 0.0
    %3326 = vmatmul.mubr.f32.gmra.mrb[0].mxu0 %v3200
    %v3327 = vpop.f32.mrb[0].mxu0
    %v3328 = vadd.f32 %v3176, %v3327
    %v3329 = vpop.f32.mrb[0].mxu0
    %3330 = vmatprep.mubr.f32.mxu0 0.0
    %3331 = vmatmul.mubr.f32.gmra.mrb[0].mxu0 %v3203
    %v3332 = vpop.f32.mrb[0].mxu0
    %v3333 = vadd.f32 %v3176, %v3332
    %v3334 = vpop.f32.mrb[0].mxu0
    %3335 = vmatprep.mubr.f32.mxu0 0.0
    %3336 = vmatmul.mubr.f32.gmra.mrb[0].mxu0 %v3206
    %v3337 = vpop.f32.mrb[0].mxu0
    %v3338 = vadd.f32 %v3176, %v3337
    %v3339 = vpop.f32.mrb[0].mxu0
    %3340 = vmatprep.mubr.f32.mxu0 0.0
    %3341 = vmatmul.mubr.f32.gmra.mrb[0].mxu0 %v3209
    %v3342 = vpop.f32.mrb[0].mxu0
    %v3343 = vadd.f32 %v3176, %v3342
    %v3344 = vpop.f32.mrb[0].mxu0
    %3345 = vmatprep.mubr.f32.mxu0 0.0
    %3346 = vmatmul.mubr.f32.gmra.mrb[0].mxu0 %v3212
    %v3347 = vpop.f32.mrb[0].mxu0
    %v3348 = vadd.f32 %v3176, %v3347
    %v3349 = vpop.f32.mrb[0].mxu0
    %3350 = vmatprep.mubr.f32.mxu0 0.0
    %3351 = vmatmul.mubr.f32.gmra.mrb[0].mxu0 %v3215
    %v3352 = vpop.f32.mrb[0].mxu0
    %v3353 = vadd.f32 %v3176, %v3352
    %v3354 = vpop.f32.mrb[0].mxu0
    %3355 = vmatprep.mubr.f32.mxu0 0.0
    %3356 = vmatmul.mubr.f32.gmra.mrb[0].mxu0 %v3218
    %v3357 = vpop.f32.mrb[0].mxu0
    %v3358 = vadd.f32 %v3176, %v3357
    %v3359 = vpop.f32.mrb[0].mxu0
    %3360 = vmatprep.mubr.f32.mxu0 0.0
    %3361 = vmatmul.mubr.f32.gmra.mrb[0].mxu0 %v3221
    %v3362 = vpop.f32.mrb[0].mxu0
    %v3363 = vadd.f32 %v3176, %v3362
    %v3364 = vpop.f32.mrb[0].mxu0
    %3365 = vmatprep.mubr.f32.mxu0 0.0
    %3366 = vmatmul.mubr.f32.gmra.mrb[0].mxu0 %v3224
    %v3367 = vpop.f32.mrb[0].mxu0
    %v3368 = vadd.f32 %v3176, %v3367
    %v3369 = vpop.f32.mrb[0].mxu0
    %3370 = vdwg.mxu0
    %v3371 = vsel %vm1079, %v3293, 0.0
    %3372 = vadd.xlane.f32.xlu0 %v3371
    %v3373 = vpop.xlane.xlu0 %3372
    %v3374 = vsel %vm1079, %v3298, 0.0
    %3375 = vadd.xlane.f32.xlu0 %v3374
    %v3376 = vpop.xlane.xlu0 %3375
    %v3377 = vsel %vm1079, %v3303, 0.0
    %3378 = vadd.xlane.f32.xlu0 %v3377
    %v3379 = vpop.xlane.xlu0 %3378
    %v3380 = vsel %vm1079, %v3308, 0.0
    %3381 = vadd.xlane.f32.xlu0 %v3380
    %v3382 = vpop.xlane.xlu0 %3381
    %v3383 = vsel %vm1079, %v3313, 0.0
    %3384 = vadd.xlane.f32.xlu0 %v3383
    %v3385 = vpop.xlane.xlu0 %3384
    %v3386 = vsel %vm1079, %v3318, 0.0
    %3387 = vadd.xlane.f32.xlu0 %v3386
    %v3388 = vpop.xlane.xlu0 %3387
    %v3389 = vsel %vm1079, %v3323, 0.0
    %3390 = vadd.xlane.f32.xlu0 %v3389
    %v3391 = vpop.xlane.xlu0 %3390
    %v3392 = vsel %vm1079, %v3328, 0.0
    %3393 = vadd.xlane.f32.xlu0 %v3392
    %v3394 = vpop.xlane.xlu0 %3393
    %v3395 = vsel %vm1079, %v3333, 0.0
    %3396 = vadd.xlane.f32.xlu0 %v3395
    %v3397 = vpop.xlane.xlu0 %3396
    %v3398 = vsel %vm1079, %v3338, 0.0
    %3399 = vadd.xlane.f32.xlu0 %v3398
    %v3400 = vpop.xlane.xlu0 %3399
    %v3401 = vsel %vm1079, %v3343, 0.0
    %3402 = vadd.xlane.f32.xlu0 %v3401
    %v3403 = vpop.xlane.xlu0 %3402
    %v3404 = vsel %vm1079, %v3348, 0.0
    %3405 = vadd.xlane.f32.xlu0 %v3404
    %v3406 = vpop.xlane.xlu0 %3405
    %v3407 = vsel %vm1079, %v3353, 0.0
    %3408 = vadd.xlane.f32.xlu0 %v3407
    %v3409 = vpop.xlane.xlu0 %3408
    %v3410 = vsel %vm1079, %v3358, 0.0
    %3411 = vadd.xlane.f32.xlu0 %v3410
    %v3412 = vpop.xlane.xlu0 %3411
    %v3413 = vsel %vm1079, %v3363, 0.0
    %3414 = vadd.xlane.f32.xlu0 %v3413
    %v3415 = vpop.xlane.xlu0 %3414
    %v3416 = vsel %vm1079, %v3368, 0.0
    %3417 = vadd.xlane.f32.xlu0 %v3416
    %v3418 = vpop.xlane.xlu0 %3417
    %v3419 = vmul.f32 %v3373, %v1128
    %v3420 = vmul.f32 %v3376, %v1128
    %v3421 = vmul.f32 %v3379, %v1128
    %v3422 = vmul.f32 %v3382, %v1128
    %v3423 = vmul.f32 %v3385, %v1128
    %v3424 = vmul.f32 %v3388, %v1128
    %v3425 = vmul.f32 %v3391, %v1128
    %v3426 = vmul.f32 %v3394, %v1128
    %v3427 = vmul.f32 %v3397, %v1128
    %v3428 = vmul.f32 %v3400, %v1128
    %v3429 = vmul.f32 %v3403, %v1128
    %v3430 = vmul.f32 %v3406, %v1128
    %v3431 = vmul.f32 %v3409, %v1128
    %v3432 = vmul.f32 %v3412, %v1128
    %v3433 = vmul.f32 %v3415, %v1128
    %v3434 = vmul.f32 %v3418, %v1128
    %v3435 = vsub.f32 %v3293, %v3419
    %v3436 = vsub.f32 %v3298, %v3420
    %v3437 = vsub.f32 %v3303, %v3421
    %v3438 = vsub.f32 %v3308, %v3422
    %v3439 = vsub.f32 %v3313, %v3423
    %v3440 = vsub.f32 %v3318, %v3424
    %v3441 = vsub.f32 %v3323, %v3425
    %v3442 = vsub.f32 %v3328, %v3426
    %v3443 = vsub.f32 %v3333, %v3427
    %v3444 = vsub.f32 %v3338, %v3428
    %v3445 = vsub.f32 %v3343, %v3429
    %v3446 = vsub.f32 %v3348, %v3430
    %v3447 = vsub.f32 %v3353, %v3431
    %v3448 = vsub.f32 %v3358, %v3432
    %v3449 = vsub.f32 %v3363, %v3433
    %v3450 = vsub.f32 %v3368, %v3434
    %v3451 = vmul.f32 %v3435, %v3435
    %v3452 = vmul.f32 %v3436, %v3436
    %v3453 = vmul.f32 %v3437, %v3437
    %v3454 = vmul.f32 %v3438, %v3438
    %v3455 = vmul.f32 %v3439, %v3439
    %v3456 = vmul.f32 %v3440, %v3440
    %v3457 = vmul.f32 %v3441, %v3441
    %v3458 = vmul.f32 %v3442, %v3442
    %v3459 = vmul.f32 %v3443, %v3443
    %v3460 = vmul.f32 %v3444, %v3444
    %v3461 = vmul.f32 %v3445, %v3445
    %v3462 = vmul.f32 %v3446, %v3446
    %v3463 = vmul.f32 %v3447, %v3447
    %v3464 = vmul.f32 %v3448, %v3448
    %v3465 = vmul.f32 %v3449, %v3449
    %v3466 = vmul.f32 %v3450, %v3450
    %v3467 = vsel %vm1079, %v3451, 0.0
    %3468 = vadd.xlane.f32.xlu0 %v3467
    %v3469 = vpop.xlane.xlu0 %3468
    %v3470 = vsel %vm1079, %v3452, 0.0
    %3471 = vadd.xlane.f32.xlu0 %v3470
    %v3472 = vpop.xlane.xlu0 %3471
    %v3473 = vsel %vm1079, %v3453, 0.0
    %3474 = vadd.xlane.f32.xlu0 %v3473
    %v3475 = vpop.xlane.xlu0 %3474
    %v3476 = vsel %vm1079, %v3454, 0.0
    %3477 = vadd.xlane.f32.xlu0 %v3476
    %v3478 = vpop.xlane.xlu0 %3477
    %v3479 = vsel %vm1079, %v3455, 0.0
    %3480 = vadd.xlane.f32.xlu0 %v3479
    %v3481 = vpop.xlane.xlu0 %3480
    %v3482 = vsel %vm1079, %v3456, 0.0
    %3483 = vadd.xlane.f32.xlu0 %v3482
    %v3484 = vpop.xlane.xlu0 %3483
    %v3485 = vsel %vm1079, %v3457, 0.0
    %3486 = vadd.xlane.f32.xlu0 %v3485
    %v3487 = vpop.xlane.xlu0 %3486
    %v3488 = vsel %vm1079, %v3458, 0.0
    %3489 = vadd.xlane.f32.xlu0 %v3488
    %v3490 = vpop.xlane.xlu0 %3489
    %v3491 = vsel %vm1079, %v3459, 0.0
    %3492 = vadd.xlane.f32.xlu0 %v3491
    %v3493 = vpop.xlane.xlu0 %3492
    %v3494 = vsel %vm1079, %v3460, 0.0
    %3495 = vadd.xlane.f32.xlu0 %v3494
    %v3496 = vpop.xlane.xlu0 %3495
    %v3497 = vsel %vm1079, %v3461, 0.0
    %3498 = vadd.xlane.f32.xlu0 %v3497
    %v3499 = vpop.xlane.xlu0 %3498
    %v3500 = vsel %vm1079, %v3462, 0.0
    %3501 = vadd.xlane.f32.xlu0 %v3500
    %v3502 = vpop.xlane.xlu0 %3501
    %v3503 = vsel %vm1079, %v3463, 0.0
    %3504 = vadd.xlane.f32.xlu0 %v3503
    %v3505 = vpop.xlane.xlu0 %3504
    %v3506 = vsel %vm1079, %v3464, 0.0
    %3507 = vadd.xlane.f32.xlu0 %v3506
    %v3508 = vpop.xlane.xlu0 %3507
    %v3509 = vsel %vm1079, %v3465, 0.0
    %3510 = vadd.xlane.f32.xlu0 %v3509
    %v3511 = vpop.xlane.xlu0 %3510
    %v3512 = vsel %vm1079, %v3466, 0.0
    %3513 = vadd.xlane.f32.xlu0 %v3512
    %v3514 = vpop.xlane.xlu0 %3513
    %v3515 = vmul.f32 %v3469, 0.015873017
    %v3516 = vmul.f32 %v3472, 0.015873017
    %v3517 = vmul.f32 %v3475, 0.015873017
    %v3518 = vmul.f32 %v3478, 0.015873017
    %v3519 = vmul.f32 %v3481, 0.015873017
    %v3520 = vmul.f32 %v3484, 0.015873017
    %v3521 = vmul.f32 %v3487, 0.015873017
    %v3522 = vmul.f32 %v3490, 0.015873017
    %v3523 = vmul.f32 %v3493, 0.015873017
    %v3524 = vmul.f32 %v3496, 0.015873017
    %v3525 = vmul.f32 %v3499, 0.015873017
    %v3526 = vmul.f32 %v3502, 0.015873017
    %v3527 = vmul.f32 %v3505, 0.015873017
    %v3528 = vmul.f32 %v3508, 0.015873017
    %v3529 = vmul.f32 %v3511, 0.015873017
    %v3530 = vmul.f32 %v3514, 0.015873017
    %v3531 = vrsqrt.pop %v3515
    %v3532 = vmul.f32 %v3515, %v3531
    %vm3533 = vcmp.eq.f32.partialorder %v3515, inf
    %v3534 = vsel %vm3533, %v3515, %v3532
    %vm3535 = vcmp.eq.f32.partialorder %v3515, 0.0
    %v3536 = vand.u32 %v3515, 2147483648
    %v3537 = vsel %vm3535, %v3536, %v3534
    %v3538 = vrsqrt.pop %v3516
    %v3539 = vmul.f32 %v3516, %v3538
    %vm3540 = vcmp.eq.f32.partialorder %v3516, inf
    %v3541 = vsel %vm3540, %v3516, %v3539
    %vm3542 = vcmp.eq.f32.partialorder %v3516, 0.0
    %v3543 = vand.u32 %v3516, 2147483648
    %v3544 = vsel %vm3542, %v3543, %v3541
    %v3545 = vrsqrt.pop %v3517
    %v3546 = vmul.f32 %v3517, %v3545
    %vm3547 = vcmp.eq.f32.partialorder %v3517, inf
    %v3548 = vsel %vm3547, %v3517, %v3546
    %vm3549 = vcmp.eq.f32.partialorder %v3517, 0.0
    %v3550 = vand.u32 %v3517, 2147483648
    %v3551 = vsel %vm3549, %v3550, %v3548
    %v3552 = vrsqrt.pop %v3518
    %v3553 = vmul.f32 %v3518, %v3552
    %vm3554 = vcmp.eq.f32.partialorder %v3518, inf
    %v3555 = vsel %vm3554, %v3518, %v3553
    %vm3556 = vcmp.eq.f32.partialorder %v3518, 0.0
    %v3557 = vand.u32 %v3518, 2147483648
    %v3558 = vsel %vm3556, %v3557, %v3555
    %v3559 = vrsqrt.pop %v3519
    %v3560 = vmul.f32 %v3519, %v3559
    %vm3561 = vcmp.eq.f32.partialorder %v3519, inf
    %v3562 = vsel %vm3561, %v3519, %v3560
    %vm3563 = vcmp.eq.f32.partialorder %v3519, 0.0
    %v3564 = vand.u32 %v3519, 2147483648
    %v3565 = vsel %vm3563, %v3564, %v3562
    %v3566 = vrsqrt.pop %v3520
    %v3567 = vmul.f32 %v3520, %v3566
    %vm3568 = vcmp.eq.f32.partialorder %v3520, inf
    %v3569 = vsel %vm3568, %v3520, %v3567
    %vm3570 = vcmp.eq.f32.partialorder %v3520, 0.0
    %v3571 = vand.u32 %v3520, 2147483648
    %v3572 = vsel %vm3570, %v3571, %v3569
    %v3573 = vrsqrt.pop %v3521
    %v3574 = vmul.f32 %v3521, %v3573
    %vm3575 = vcmp.eq.f32.partialorder %v3521, inf
    %v3576 = vsel %vm3575, %v3521, %v3574
    %vm3577 = vcmp.eq.f32.partialorder %v3521, 0.0
    %v3578 = vand.u32 %v3521, 2147483648
    %v3579 = vsel %vm3577, %v3578, %v3576
    %v3580 = vrsqrt.pop %v3522
    %v3581 = vmul.f32 %v3522, %v3580
    %vm3582 = vcmp.eq.f32.partialorder %v3522, inf
    %v3583 = vsel %vm3582, %v3522, %v3581
    %vm3584 = vcmp.eq.f32.partialorder %v3522, 0.0
    %v3585 = vand.u32 %v3522, 2147483648
    %v3586 = vsel %vm3584, %v3585, %v3583
    %v3587 = vrsqrt.pop %v3523
    %v3588 = vmul.f32 %v3523, %v3587
    %vm3589 = vcmp.eq.f32.partialorder %v3523, inf
    %v3590 = vsel %vm3589, %v3523, %v3588
    %vm3591 = vcmp.eq.f32.partialorder %v3523, 0.0
    %v3592 = vand.u32 %v3523, 2147483648
    %v3593 = vsel %vm3591, %v3592, %v3590
    %v3594 = vrsqrt.pop %v3524
    %v3595 = vmul.f32 %v3524, %v3594
    %vm3596 = vcmp.eq.f32.partialorder %v3524, inf
    %v3597 = vsel %vm3596, %v3524, %v3595
    %vm3598 = vcmp.eq.f32.partialorder %v3524, 0.0
    %v3599 = vand.u32 %v3524, 2147483648
    %v3600 = vsel %vm3598, %v3599, %v3597
    %v3601 = vrsqrt.pop %v3525
    %v3602 = vmul.f32 %v3525, %v3601
    %vm3603 = vcmp.eq.f32.partialorder %v3525, inf
    %v3604 = vsel %vm3603, %v3525, %v3602
    %vm3605 = vcmp.eq.f32.partialorder %v3525, 0.0
    %v3606 = vand.u32 %v3525, 2147483648
    %v3607 = vsel %vm3605, %v3606, %v3604
    %v3608 = vrsqrt.pop %v3526
    %v3609 = vmul.f32 %v3526, %v3608
    %vm3610 = vcmp.eq.f32.partialorder %v3526, inf
    %v3611 = vsel %vm3610, %v3526, %v3609
    %vm3612 = vcmp.eq.f32.partialorder %v3526, 0.0
    %v3613 = vand.u32 %v3526, 2147483648
    %v3614 = vsel %vm3612, %v3613, %v3611
    %v3615 = vrsqrt.pop %v3527
    %v3616 = vmul.f32 %v3527, %v3615
    %vm3617 = vcmp.eq.f32.partialorder %v3527, inf
    %v3618 = vsel %vm3617, %v3527, %v3616
    %vm3619 = vcmp.eq.f32.partialorder %v3527, 0.0
    %v3620 = vand.u32 %v3527, 2147483648
    %v3621 = vsel %vm3619, %v3620, %v3618
    %v3622 = vrsqrt.pop %v3528
    %v3623 = vmul.f32 %v3528, %v3622
    %vm3624 = vcmp.eq.f32.partialorder %v3528, inf
    %v3625 = vsel %vm3624, %v3528, %v3623
    %vm3626 = vcmp.eq.f32.partialorder %v3528, 0.0
    %v3627 = vand.u32 %v3528, 2147483648
    %v3628 = vsel %vm3626, %v3627, %v3625
    %v3629 = vrsqrt.pop %v3529
    %v3630 = vmul.f32 %v3529, %v3629
    %vm3631 = vcmp.eq.f32.partialorder %v3529, inf
    %v3632 = vsel %vm3631, %v3529, %v3630
    %vm3633 = vcmp.eq.f32.partialorder %v3529, 0.0
    %v3634 = vand.u32 %v3529, 2147483648
    %v3635 = vsel %vm3633, %v3634, %v3632
    %v3636 = vrsqrt.pop %v3530
    %v3637 = vmul.f32 %v3530, %v3636
    %vm3638 = vcmp.eq.f32.partialorder %v3530, inf
    %v3639 = vsel %vm3638, %v3530, %v3637
    %vm3640 = vcmp.eq.f32.partialorder %v3530, 0.0
    %v3641 = vand.u32 %v3530, 2147483648
    %v3642 = vsel %vm3640, %v3641, %v3639
    %v3643 = vadd.f32 %v3537, 1e-05
    %v3644 = vadd.f32 %v3544, 1e-05
    %v3645 = vadd.f32 %v3551, 1e-05
    %v3646 = vadd.f32 %v3558, 1e-05
    %v3647 = vadd.f32 %v3565, 1e-05
    %v3648 = vadd.f32 %v3572, 1e-05
    %v3649 = vadd.f32 %v3579, 1e-05
    %v3650 = vadd.f32 %v3586, 1e-05
    %v3651 = vadd.f32 %v3593, 1e-05
    %v3652 = vadd.f32 %v3600, 1e-05
    %v3653 = vadd.f32 %v3607, 1e-05
    %v3654 = vadd.f32 %v3614, 1e-05
    %v3655 = vadd.f32 %v3621, 1e-05
    %v3656 = vadd.f32 %v3628, 1e-05
    %v3657 = vadd.f32 %v3635, 1e-05
    %v3658 = vadd.f32 %v3642, 1e-05
    %v3659 = vrcp.pop %v3643
    %v3660 = vrcp.pop %v3644
    %v3661 = vrcp.pop %v3645
    %v3662 = vrcp.pop %v3646
    %v3663 = vrcp.pop %v3647
    %v3664 = vrcp.pop %v3648
    %v3665 = vrcp.pop %v3649
    %v3666 = vrcp.pop %v3650
    %v3667 = vrcp.pop %v3651
    %v3668 = vrcp.pop %v3652
    %v3669 = vrcp.pop %v3653
    %v3670 = vrcp.pop %v3654
    %v3671 = vrcp.pop %v3655
    %v3672 = vrcp.pop %v3656
    %v3673 = vrcp.pop %v3657
    %v3674 = vrcp.pop %v3658
    %v3675 = vmul.f32 %v2385, %v3435
    %v3676 = vmul.f32 %v2390, %v3436
    %v3677 = vmul.f32 %v2395, %v3437
    %v3678 = vmul.f32 %v2400, %v3438
    %v3679 = vmul.f32 %v2405, %v3439
    %v3680 = vmul.f32 %v2410, %v3440
    %v3681 = vmul.f32 %v2415, %v3441
    %v3682 = vmul.f32 %v2420, %v3442
    %v3683 = vmul.f32 %v2425, %v3443
    %v3684 = vmul.f32 %v2430, %v3444
    %v3685 = vmul.f32 %v2435, %v3445
    %v3686 = vmul.f32 %v2440, %v3446
    %v3687 = vmul.f32 %v2445, %v3447
    %v3688 = vmul.f32 %v2450, %v3448
    %v3689 = vmul.f32 %v2455, %v3449
    %v3690 = vmul.f32 %v2460, %v3450
    %v3691 = vmul.f32 %v3675, %v3659
    %v3692 = vmul.f32 %v3676, %v3660
    %v3693 = vmul.f32 %v3677, %v3661
    %v3694 = vmul.f32 %v3678, %v3662
    %v3695 = vmul.f32 %v3679, %v3663
    %v3696 = vmul.f32 %v3680, %v3664
    %v3697 = vmul.f32 %v3681, %v3665
    %v3698 = vmul.f32 %v3682, %v3666
    %v3699 = vmul.f32 %v3683, %v3667
    %v3700 = vmul.f32 %v3684, %v3668
    %v3701 = vmul.f32 %v3685, %v3669
    %v3702 = vmul.f32 %v3686, %v3670
    %v3703 = vmul.f32 %v3687, %v3671
    %v3704 = vmul.f32 %v3688, %v3672
    %v3705 = vmul.f32 %v3689, %v3673
    %v3706 = vmul.f32 %v3690, %v3674
    %v3707 = vadd.f32 %v3691, %v2685
    %v3708 = vadd.f32 %v3692, %v2690
    %v3709 = vadd.f32 %v3693, %v2695
    %v3710 = vadd.f32 %v3694, %v2700
    %v3711 = vadd.f32 %v3695, %v2705
    %v3712 = vadd.f32 %v3696, %v2710
    %v3713 = vadd.f32 %v3697, %v2715
    %v3714 = vadd.f32 %v3698, %v2720
    %v3715 = vadd.f32 %v3699, %v2725
    %v3716 = vadd.f32 %v3700, %v2730
    %v3717 = vadd.f32 %v3701, %v2735
    %v3718 = vadd.f32 %v3702, %v2740
    %v3719 = vadd.f32 %v3703, %v2745
    %v3720 = vadd.f32 %v3704, %v2750
    %v3721 = vadd.f32 %v3705, %v2755
    %v3722 = vadd.f32 %v3706, %v2760
    %vm3723 = vcmp.gt.f32.partialorder %v3707, 0.0
    %vm3724 = vcmp.gt.f32.partialorder %v3708, 0.0
    %vm3725 = vcmp.gt.f32.partialorder %v3709, 0.0
    %vm3726 = vcmp.gt.f32.partialorder %v3710, 0.0
    %vm3727 = vcmp.gt.f32.partialorder %v3711, 0.0
    %vm3728 = vcmp.gt.f32.partialorder %v3712, 0.0
    %vm3729 = vcmp.gt.f32.partialorder %v3713, 0.0
    %vm3730 = vcmp.gt.f32.partialorder %v3714, 0.0
    %vm3731 = vcmp.gt.f32.partialorder %v3715, 0.0
    %vm3732 = vcmp.gt.f32.partialorder %v3716, 0.0
    %vm3733 = vcmp.gt.f32.partialorder %v3717, 0.0
    %vm3734 = vcmp.gt.f32.partialorder %v3718, 0.0
    %vm3735 = vcmp.gt.f32.partialorder %v3719, 0.0
    %vm3736 = vcmp.gt.f32.partialorder %v3720, 0.0
    %vm3737 = vcmp.gt.f32.partialorder %v3721, 0.0
    %vm3738 = vcmp.gt.f32.partialorder %v3722, 0.0
    %v3739 = vmul.f32 %v3707, 0.01
    %v3740 = vmul.f32 %v3708, 0.01
    %v3741 = vmul.f32 %v3709, 0.01
    %v3742 = vmul.f32 %v3710, 0.01
    %v3743 = vmul.f32 %v3711, 0.01
    %v3744 = vmul.f32 %v3712, 0.01
    %v3745 = vmul.f32 %v3713, 0.01
    %v3746 = vmul.f32 %v3714, 0.01
    %v3747 = vmul.f32 %v3715, 0.01
    %v3748 = vmul.f32 %v3716, 0.01
    %v3749 = vmul.f32 %v3717, 0.01
    %v3750 = vmul.f32 %v3718, 0.01
    %v3751 = vmul.f32 %v3719, 0.01
    %v3752 = vmul.f32 %v3720, 0.01
    %v3753 = vmul.f32 %v3721, 0.01
    %v3754 = vmul.f32 %v3722, 0.01
    %v3755 = vsel %vm3723, %v3707, %v3739
    %v3756 = vsel %vm3724, %v3708, %v3740
    %v3757 = vsel %vm3725, %v3709, %v3741
    %v3758 = vsel %vm3726, %v3710, %v3742
    %v3759 = vsel %vm3727, %v3711, %v3743
    %v3760 = vsel %vm3728, %v3712, %v3744
    %v3761 = vsel %vm3729, %v3713, %v3745
    %v3762 = vsel %vm3730, %v3714, %v3746
    %v3763 = vsel %vm3731, %v3715, %v3747
    %v3764 = vsel %vm3732, %v3716, %v3748
    %v3765 = vsel %vm3733, %v3717, %v3749
    %v3766 = vsel %vm3734, %v3718, %v3750
    %v3767 = vsel %vm3735, %v3719, %v3751
    %v3768 = vsel %vm3736, %v3720, %v3752
    %v3769 = vsel %vm3737, %v3721, %v3753
    %v3770 = vsel %vm3738, %v3722, %v3754
    %v3771 = vld [vmem:[#allocation7] sm:$0xff]
    %v3772 = vld [vmem:[#allocation7 + $0x8] sm:$0xff]
    %v3773 = vld [vmem:[#allocation7 + $0x10] sm:$0xff]
    %v3774 = vld [vmem:[#allocation7 + $0x18] sm:$0xff]
    %v3775 = vld [vmem:[#allocation7 + $0x20] sm:$0xff]
    %v3776 = vld [vmem:[#allocation7 + $0x28] sm:$0xff]
    %v3777 = vld [vmem:[#allocation7 + $0x30] sm:$0xff]
    %v3778 = vld [vmem:[#allocation7 + $0x38] sm:$0xff]
    %v3779 = vld [vmem:[%s13] sm:$0x1]
    %v3781 = vlaneseq
    %v3782 = vshrl.u32 %v3781, 7
    %v3783 = vsub.s32 0, %v3782
    %v3784 = vrot.slane %v3779, %v3783
    %v3787 = vsel %vm1079, %v3755, 0
    %v3790 = vsel %vm1079, %v3756, 0
    %v3793 = vsel %vm1079, %v3757, 0
    %v3796 = vsel %vm1079, %v3758, 0
    %v3799 = vsel %vm1079, %v3759, 0
    %v3802 = vsel %vm1079, %v3760, 0
    %v3805 = vsel %vm1079, %v3761, 0
    %v3808 = vsel %vm1079, %v3762, 0
    %v3811 = vsel %vm1079, %v3763, 0
    %v3814 = vsel %vm1079, %v3764, 0
    %v3817 = vsel %vm1079, %v3765, 0
    %v3820 = vsel %vm1079, %v3766, 0
    %v3823 = vsel %vm1079, %v3767, 0
    %v3826 = vsel %vm1079, %v3768, 0
    %v3829 = vsel %vm1079, %v3769, 0
    %v3832 = vsel %vm1079, %v3770, 0
    %3834 = vmatprep.subr.mxu0 0.0
    %3835 = vmatpush1.msra.mxu0 %v3771
    %3836 = vmatprep.subr.mxu0 0.0
    %3837 = vmatpush1.msra.mxu0 %v3772
    %3838 = vmatprep.subr.mxu0 0.0
    %3839 = vmatpush1.msra.mxu0 %v3773
    %3840 = vmatprep.subr.mxu0 0.0
    %3841 = vmatpush1.msra.mxu0 %v3774
    %3842 = vmatprep.subr.mxu0 0.0
    %3843 = vmatpush1.msra.mxu0 %v3775
    %3844 = vmatprep.subr.mxu0 0.0
    %3845 = vmatpush1.msra.mxu0 %v3776
    %3846 = vmatprep.subr.mxu0 0.0
    %3847 = vmatpush1.msra.mxu0 %v3777
    %3848 = vmatprep.subr.mxu0 0.0
    %3849 = vmatpush1.msra.mxu0 %v3778
    %3850 = vmatprep.subr.mxu0 0.0
    %3851 = vmatpush1.msra.mxu0 0.0
    %3852 = vmatprep.subr.mxu0 0.0
    %3853 = vmatpush1.msra.mxu0 0.0
    %3854 = vmatprep.subr.mxu0 0.0
    %3855 = vmatpush1.msra.mxu0 0.0
    %3856 = vmatprep.subr.mxu0 0.0
    %3857 = vmatpush1.msra.mxu0 0.0
    %3858 = vmatprep.subr.mxu0 0.0
    %3859 = vmatpush1.msra.mxu0 0.0
    %3860 = vmatprep.subr.mxu0 0.0
    %3861 = vmatpush1.msra.mxu0 0.0
    %3862 = vmatprep.subr.mxu0 0.0
    %3863 = vmatpush1.msra.mxu0 0.0
    %3864 = vmatprep.subr.mxu0 0.0
    %3865 = vmatpush1.msra.mxu0 0.0
    %3866 = vmatprep.subr.mxu0 0.0
    %3867 = vmatpush1.msra.mxu0 0.0
    %3868 = vmatprep.subr.mxu0 0.0
    %3869 = vmatpush1.msra.mxu0 0.0
    %3870 = vmatprep.subr.mxu0 0.0
    %3871 = vmatpush1.msra.mxu0 0.0
    %3872 = vmatprep.subr.mxu0 0.0
    %3873 = vmatpush1.msra.mxu0 0.0
    %3874 = vmatprep.subr.mxu0 0.0
    %3875 = vmatpush1.msra.mxu0 0.0
    %3876 = vmatprep.subr.mxu0 0.0
    %3877 = vmatpush1.msra.mxu0 0.0
    %3878 = vmatprep.subr.mxu0 0.0
    %3879 = vmatpush1.msra.mxu0 0.0
    %3880 = vmatprep.subr.mxu0 0.0
    %3881 = vmatpush1.msra.mxu0 0.0
    %3882 = vmatprep.subr.mxu0 0.0
    %3883 = vmatpush1.msra.mxu0 0.0
    %3884 = vmatprep.subr.mxu0 0.0
    %3885 = vmatpush1.msra.mxu0 0.0
    %3886 = vmatprep.subr.mxu0 0.0
    %3887 = vmatpush1.msra.mxu0 0.0
    %3888 = vmatprep.subr.mxu0 0.0
    %3889 = vmatpush1.msra.mxu0 0.0
    %3890 = vmatprep.subr.mxu0 0.0
    %3891 = vmatpush1.msra.mxu0 0.0
    %3892 = vmatprep.subr.mxu0 0.0
    %3893 = vmatpush1.msra.mxu0 0.0
    %3894 = vmatprep.subr.mxu0 0.0
    %3895 = vmatpush1.msra.mxu0 0.0
    %3896 = vmatprep.subr.mxu0 0.0
    %3897 = vmatpush1.msra.mxu0 0.0
    %3898 = vmatprep.mubr.f32.mxu0 0.0
    %3899 = vmatmul.mubr.f32.gmra.mrb[0].mxu0 %v3787
    %v3900 = vpop.f32.mrb[0].mxu0
    %v3901 = vadd.f32 %v3784, %v3900
    %v3902 = vpop.f32.mrb[0].mxu0
    %3903 = vmatprep.mubr.f32.mxu0 0.0
    %3904 = vmatmul.mubr.f32.gmra.mrb[0].mxu0 %v3790
    %v3905 = vpop.f32.mrb[0].mxu0
    %v3906 = vadd.f32 %v3784, %v3905
    %v3907 = vpop.f32.mrb[0].mxu0
    %3908 = vmatprep.mubr.f32.mxu0 0.0
    %3909 = vmatmul.mubr.f32.gmra.mrb[0].mxu0 %v3793
    %v3910 = vpop.f32.mrb[0].mxu0
    %v3911 = vadd.f32 %v3784, %v3910
    %v3912 = vpop.f32.mrb[0].mxu0
    %3913 = vmatprep.mubr.f32.mxu0 0.0
    %3914 = vmatmul.mubr.f32.gmra.mrb[0].mxu0 %v3796
    %v3915 = vpop.f32.mrb[0].mxu0
    %v3916 = vadd.f32 %v3784, %v3915
    %v3917 = vpop.f32.mrb[0].mxu0
    %3918 = vmatprep.mubr.f32.mxu0 0.0
    %3919 = vmatmul.mubr.f32.gmra.mrb[0].mxu0 %v3799
    %v3920 = vpop.f32.mrb[0].mxu0
    %v3921 = vadd.f32 %v3784, %v3920
    %v3922 = vpop.f32.mrb[0].mxu0
    %3923 = vmatprep.mubr.f32.mxu0 0.0
    %3924 = vmatmul.mubr.f32.gmra.mrb[0].mxu0 %v3802
    %v3925 = vpop.f32.mrb[0].mxu0
    %v3926 = vadd.f32 %v3784, %v3925
    %v3927 = vpop.f32.mrb[0].mxu0
    %3928 = vmatprep.mubr.f32.mxu0 0.0
    %3929 = vmatmul.mubr.f32.gmra.mrb[0].mxu0 %v3805
    %v3930 = vpop.f32.mrb[0].mxu0
    %v3931 = vadd.f32 %v3784, %v3930
    %v3932 = vpop.f32.mrb[0].mxu0
    %3933 = vmatprep.mubr.f32.mxu0 0.0
    %3934 = vmatmul.mubr.f32.gmra.mrb[0].mxu0 %v3808
    %v3935 = vpop.f32.mrb[0].mxu0
    %v3936 = vadd.f32 %v3784, %v3935
    %v3937 = vpop.f32.mrb[0].mxu0
    %3938 = vmatprep.mubr.f32.mxu0 0.0
    %3939 = vmatmul.mubr.f32.gmra.mrb[0].mxu0 %v3811
    %v3940 = vpop.f32.mrb[0].mxu0
    %v3941 = vadd.f32 %v3784, %v3940
    %v3942 = vpop.f32.mrb[0].mxu0
    %3943 = vmatprep.mubr.f32.mxu0 0.0
    %3944 = vmatmul.mubr.f32.gmra.mrb[0].mxu0 %v3814
    %v3945 = vpop.f32.mrb[0].mxu0
    %v3946 = vadd.f32 %v3784, %v3945
    %v3947 = vpop.f32.mrb[0].mxu0
    %3948 = vmatprep.mubr.f32.mxu0 0.0
    %3949 = vmatmul.mubr.f32.gmra.mrb[0].mxu0 %v3817
    %v3950 = vpop.f32.mrb[0].mxu0
    %v3951 = vadd.f32 %v3784, %v3950
    %v3952 = vpop.f32.mrb[0].mxu0
    %3953 = vmatprep.mubr.f32.mxu0 0.0
    %3954 = vmatmul.mubr.f32.gmra.mrb[0].mxu0 %v3820
    %v3955 = vpop.f32.mrb[0].mxu0
    %v3956 = vadd.f32 %v3784, %v3955
    %v3957 = vpop.f32.mrb[0].mxu0
    %3958 = vmatprep.mubr.f32.mxu0 0.0
    %3959 = vmatmul.mubr.f32.gmra.mrb[0].mxu0 %v3823
    %v3960 = vpop.f32.mrb[0].mxu0
    %v3961 = vadd.f32 %v3784, %v3960
    %v3962 = vpop.f32.mrb[0].mxu0
    %3963 = vmatprep.mubr.f32.mxu0 0.0
    %3964 = vmatmul.mubr.f32.gmra.mrb[0].mxu0 %v3826
    %v3965 = vpop.f32.mrb[0].mxu0
    %v3966 = vadd.f32 %v3784, %v3965
    %v3967 = vpop.f32.mrb[0].mxu0
    %3968 = vmatprep.mubr.f32.mxu0 0.0
    %3969 = vmatmul.mubr.f32.gmra.mrb[0].mxu0 %v3829
    %v3970 = vpop.f32.mrb[0].mxu0
    %v3971 = vadd.f32 %v3784, %v3970
    %v3972 = vpop.f32.mrb[0].mxu0
    %3973 = vmatprep.mubr.f32.mxu0 0.0
    %3974 = vmatmul.mubr.f32.gmra.mrb[0].mxu0 %v3832
    %v3975 = vpop.f32.mrb[0].mxu0
    %v3976 = vadd.f32 %v3784, %v3975
    %v3977 = vpop.f32.mrb[0].mxu0
    %3978 = vdwg.mxu0
    %v3979 = vadd.f32 %v3901, %v2297
    %v3980 = vadd.f32 %v3906, %v2298
    %v3981 = vadd.f32 %v3911, %v2299
    %v3982 = vadd.f32 %v3916, %v2300
    %v3983 = vadd.f32 %v3921, %v2301
    %v3984 = vadd.f32 %v3926, %v2302
    %v3985 = vadd.f32 %v3931, %v2303
    %v3986 = vadd.f32 %v3936, %v2304
    %v3987 = vadd.f32 %v3941, %v2305
    %v3988 = vadd.f32 %v3946, %v2306
    %v3989 = vadd.f32 %v3951, %v2307
    %v3990 = vadd.f32 %v3956, %v2308
    %v3991 = vadd.f32 %v3961, %v2309
    %v3992 = vadd.f32 %v3966, %v2310
    %v3993 = vadd.f32 %v3971, %v2311
    %v3994 = vadd.f32 %v3976, %v2312
    %v3995 = vld [vmem:[%s14] sm:$0xff]
    %v3996 = vld [vmem:[%s14 + $0x8] sm:$0xff]
    %v3997 = vld [vmem:[%s14 + $0x10] sm:$0xff]
    %v3998 = vld [vmem:[%s14 + $0x18] sm:$0xff]
    %v3999 = vld [vmem:[%s14 + $0x20] sm:$0xff]
    %v4000 = vld [vmem:[%s14 + $0x28] sm:$0xff]
    %v4001 = vld [vmem:[%s14 + $0x30] sm:$0xff]
    %v4002 = vld [vmem:[%s14 + $0x38] sm:$0xff]
    %v4003 = vld [vmem:[%s15] sm:$0x1]
    %v4005 = vlaneseq
    %v4006 = vshrl.u32 %v4005, 7
    %v4007 = vsub.s32 0, %v4006
    %v4008 = vrot.slane %v4003, %v4007
    %v4011 = vsel %vm1079, %v3979, 0
    %v4014 = vsel %vm1079, %v3980, 0
    %v4017 = vsel %vm1079, %v3981, 0
    %v4020 = vsel %vm1079, %v3982, 0
    %v4023 = vsel %vm1079, %v3983, 0
    %v4026 = vsel %vm1079, %v3984, 0
    %v4029 = vsel %vm1079, %v3985, 0
    %v4032 = vsel %vm1079, %v3986, 0
    %v4035 = vsel %vm1079, %v3987, 0
    %v4038 = vsel %vm1079, %v3988, 0
    %v4041 = vsel %vm1079, %v3989, 0
    %v4044 = vsel %vm1079, %v3990, 0
    %v4047 = vsel %vm1079, %v3991, 0
    %v4050 = vsel %vm1079, %v3992, 0
    %v4053 = vsel %vm1079, %v3993, 0
    %v4056 = vsel %vm1079, %v3994, 0
    %4058 = vmatprep.subr.mxu0 0.0
    %4059 = vmatpush1.msra.mxu0 %v3995
    %4060 = vmatprep.subr.mxu0 0.0
    %4061 = vmatpush1.msra.mxu0 %v3996
    %4062 = vmatprep.subr.mxu0 0.0
    %4063 = vmatpush1.msra.mxu0 %v3997
    %4064 = vmatprep.subr.mxu0 0.0
    %4065 = vmatpush1.msra.mxu0 %v3998
    %4066 = vmatprep.subr.mxu0 0.0
    %4067 = vmatpush1.msra.mxu0 %v3999
    %4068 = vmatprep.subr.mxu0 0.0
    %4069 = vmatpush1.msra.mxu0 %v4000
    %4070 = vmatprep.subr.mxu0 0.0
    %4071 = vmatpush1.msra.mxu0 %v4001
    %4072 = vmatprep.subr.mxu0 0.0
    %4073 = vmatpush1.msra.mxu0 %v4002
    %4074 = vmatprep.subr.mxu0 0.0
    %4075 = vmatpush1.msra.mxu0 0.0
    %4076 = vmatprep.subr.mxu0 0.0
    %4077 = vmatpush1.msra.mxu0 0.0
    %4078 = vmatprep.subr.mxu0 0.0
    %4079 = vmatpush1.msra.mxu0 0.0
    %4080 = vmatprep.subr.mxu0 0.0
    %4081 = vmatpush1.msra.mxu0 0.0
    %4082 = vmatprep.subr.mxu0 0.0
    %4083 = vmatpush1.msra.mxu0 0.0
    %4084 = vmatprep.subr.mxu0 0.0
    %4085 = vmatpush1.msra.mxu0 0.0
    %4086 = vmatprep.subr.mxu0 0.0
    %4087 = vmatpush1.msra.mxu0 0.0
    %4088 = vmatprep.subr.mxu0 0.0
    %4089 = vmatpush1.msra.mxu0 0.0
    %4090 = vmatprep.subr.mxu0 0.0
    %4091 = vmatpush1.msra.mxu0 0.0
    %4092 = vmatprep.subr.mxu0 0.0
    %4093 = vmatpush1.msra.mxu0 0.0
    %4094 = vmatprep.subr.mxu0 0.0
    %4095 = vmatpush1.msra.mxu0 0.0
    %4096 = vmatprep.subr.mxu0 0.0
    %4097 = vmatpush1.msra.mxu0 0.0
    %4098 = vmatprep.subr.mxu0 0.0
    %4099 = vmatpush1.msra.mxu0 0.0
    %4100 = vmatprep.subr.mxu0 0.0
    %4101 = vmatpush1.msra.mxu0 0.0
    %4102 = vmatprep.subr.mxu0 0.0
    %4103 = vmatpush1.msra.mxu0 0.0
    %4104 = vmatprep.subr.mxu0 0.0
    %4105 = vmatpush1.msra.mxu0 0.0
    %4106 = vmatprep.subr.mxu0 0.0
    %4107 = vmatpush1.msra.mxu0 0.0
    %4108 = vmatprep.subr.mxu0 0.0
    %4109 = vmatpush1.msra.mxu0 0.0
    %4110 = vmatprep.subr.mxu0 0.0
    %4111 = vmatpush1.msra.mxu0 0.0
    %4112 = vmatprep.subr.mxu0 0.0
    %4113 = vmatpush1.msra.mxu0 0.0
    %4114 = vmatprep.subr.mxu0 0.0
    %4115 = vmatpush1.msra.mxu0 0.0
    %4116 = vmatprep.subr.mxu0 0.0
    %4117 = vmatpush1.msra.mxu0 0.0
    %4118 = vmatprep.subr.mxu0 0.0
    %4119 = vmatpush1.msra.mxu0 0.0
    %4120 = vmatprep.subr.mxu0 0.0
    %4121 = vmatpush1.msra.mxu0 0.0
    %4122 = vmatprep.mubr.f32.mxu0 0.0
    %4123 = vmatmul.mubr.f32.gmra.mrb[0].mxu0 %v4011
    %v4124 = vpop.f32.mrb[0].mxu0
    %v4125 = vadd.f32 %v4008, %v4124
    %v4126 = vpop.f32.mrb[0].mxu0
    %4127 = vmatprep.mubr.f32.mxu0 0.0
    %4128 = vmatmul.mubr.f32.gmra.mrb[0].mxu0 %v4014
    %v4129 = vpop.f32.mrb[0].mxu0
    %v4130 = vadd.f32 %v4008, %v4129
    %v4131 = vpop.f32.mrb[0].mxu0
    %4132 = vmatprep.mubr.f32.mxu0 0.0
    %4133 = vmatmul.mubr.f32.gmra.mrb[0].mxu0 %v4017
    %v4134 = vpop.f32.mrb[0].mxu0
    %v4135 = vadd.f32 %v4008, %v4134
    %v4136 = vpop.f32.mrb[0].mxu0
    %4137 = vmatprep.mubr.f32.mxu0 0.0
    %4138 = vmatmul.mubr.f32.gmra.mrb[0].mxu0 %v4020
    %v4139 = vpop.f32.mrb[0].mxu0
    %v4140 = vadd.f32 %v4008, %v4139
    %v4141 = vpop.f32.mrb[0].mxu0
    %4142 = vmatprep.mubr.f32.mxu0 0.0
    %4143 = vmatmul.mubr.f32.gmra.mrb[0].mxu0 %v4023
    %v4144 = vpop.f32.mrb[0].mxu0
    %v4145 = vadd.f32 %v4008, %v4144
    %v4146 = vpop.f32.mrb[0].mxu0
    %4147 = vmatprep.mubr.f32.mxu0 0.0
    %4148 = vmatmul.mubr.f32.gmra.mrb[0].mxu0 %v4026
    %v4149 = vpop.f32.mrb[0].mxu0
    %v4150 = vadd.f32 %v4008, %v4149
    %v4151 = vpop.f32.mrb[0].mxu0
    %4152 = vmatprep.mubr.f32.mxu0 0.0
    %4153 = vmatmul.mubr.f32.gmra.mrb[0].mxu0 %v4029
    %v4154 = vpop.f32.mrb[0].mxu0
    %v4155 = vadd.f32 %v4008, %v4154
    %v4156 = vpop.f32.mrb[0].mxu0
    %4157 = vmatprep.mubr.f32.mxu0 0.0
    %4158 = vmatmul.mubr.f32.gmra.mrb[0].mxu0 %v4032
    %v4159 = vpop.f32.mrb[0].mxu0
    %v4160 = vadd.f32 %v4008, %v4159
    %v4161 = vpop.f32.mrb[0].mxu0
    %4162 = vmatprep.mubr.f32.mxu0 0.0
    %4163 = vmatmul.mubr.f32.gmra.mrb[0].mxu0 %v4035
    %v4164 = vpop.f32.mrb[0].mxu0
    %v4165 = vadd.f32 %v4008, %v4164
    %v4166 = vpop.f32.mrb[0].mxu0
    %4167 = vmatprep.mubr.f32.mxu0 0.0
    %4168 = vmatmul.mubr.f32.gmra.mrb[0].mxu0 %v4038
    %v4169 = vpop.f32.mrb[0].mxu0
    %v4170 = vadd.f32 %v4008, %v4169
    %v4171 = vpop.f32.mrb[0].mxu0
    %4172 = vmatprep.mubr.f32.mxu0 0.0
    %4173 = vmatmul.mubr.f32.gmra.mrb[0].mxu0 %v4041
    %v4174 = vpop.f32.mrb[0].mxu0
    %v4175 = vadd.f32 %v4008, %v4174
    %v4176 = vpop.f32.mrb[0].mxu0
    %4177 = vmatprep.mubr.f32.mxu0 0.0
    %4178 = vmatmul.mubr.f32.gmra.mrb[0].mxu0 %v4044
    %v4179 = vpop.f32.mrb[0].mxu0
    %v4180 = vadd.f32 %v4008, %v4179
    %v4181 = vpop.f32.mrb[0].mxu0
    %4182 = vmatprep.mubr.f32.mxu0 0.0
    %4183 = vmatmul.mubr.f32.gmra.mrb[0].mxu0 %v4047
    %v4184 = vpop.f32.mrb[0].mxu0
    %v4185 = vadd.f32 %v4008, %v4184
    %v4186 = vpop.f32.mrb[0].mxu0
    %4187 = vmatprep.mubr.f32.mxu0 0.0
    %4188 = vmatmul.mubr.f32.gmra.mrb[0].mxu0 %v4050
    %v4189 = vpop.f32.mrb[0].mxu0
    %v4190 = vadd.f32 %v4008, %v4189
    %v4191 = vpop.f32.mrb[0].mxu0
    %4192 = vmatprep.mubr.f32.mxu0 0.0
    %4193 = vmatmul.mubr.f32.gmra.mrb[0].mxu0 %v4053
    %v4194 = vpop.f32.mrb[0].mxu0
    %v4195 = vadd.f32 %v4008, %v4194
    %v4196 = vpop.f32.mrb[0].mxu0
    %4197 = vmatprep.mubr.f32.mxu0 0.0
    %4198 = vmatmul.mubr.f32.gmra.mrb[0].mxu0 %v4056
    %v4199 = vpop.f32.mrb[0].mxu0
    %v4200 = vadd.f32 %v4008, %v4199
    %v4201 = vpop.f32.mrb[0].mxu0
    %4202 = vdwg.mxu0
    %vm4203 = vcmp.gt.f32.partialorder %v4125, 0.0
    %vm4204 = vcmp.gt.f32.partialorder %v4130, 0.0
    %vm4205 = vcmp.gt.f32.partialorder %v4135, 0.0
    %vm4206 = vcmp.gt.f32.partialorder %v4140, 0.0
    %vm4207 = vcmp.gt.f32.partialorder %v4145, 0.0
    %vm4208 = vcmp.gt.f32.partialorder %v4150, 0.0
    %vm4209 = vcmp.gt.f32.partialorder %v4155, 0.0
    %vm4210 = vcmp.gt.f32.partialorder %v4160, 0.0
    %vm4211 = vcmp.gt.f32.partialorder %v4165, 0.0
    %vm4212 = vcmp.gt.f32.partialorder %v4170, 0.0
    %vm4213 = vcmp.gt.f32.partialorder %v4175, 0.0
    %vm4214 = vcmp.gt.f32.partialorder %v4180, 0.0
    %vm4215 = vcmp.gt.f32.partialorder %v4185, 0.0
    %vm4216 = vcmp.gt.f32.partialorder %v4190, 0.0
    %vm4217 = vcmp.gt.f32.partialorder %v4195, 0.0
    %vm4218 = vcmp.gt.f32.partialorder %v4200, 0.0
    %v4219 = vmul.f32 %v4125, 0.01
    %v4220 = vmul.f32 %v4130, 0.01
    %v4221 = vmul.f32 %v4135, 0.01
    %v4222 = vmul.f32 %v4140, 0.01
    %v4223 = vmul.f32 %v4145, 0.01
    %v4224 = vmul.f32 %v4150, 0.01
    %v4225 = vmul.f32 %v4155, 0.01
    %v4226 = vmul.f32 %v4160, 0.01
    %v4227 = vmul.f32 %v4165, 0.01
    %v4228 = vmul.f32 %v4170, 0.01
    %v4229 = vmul.f32 %v4175, 0.01
    %v4230 = vmul.f32 %v4180, 0.01
    %v4231 = vmul.f32 %v4185, 0.01
    %v4232 = vmul.f32 %v4190, 0.01
    %v4233 = vmul.f32 %v4195, 0.01
    %v4234 = vmul.f32 %v4200, 0.01
    %v4235 = vsel %vm4203, %v4125, %v4219
    %v4236 = vsel %vm4204, %v4130, %v4220
    %v4237 = vsel %vm4205, %v4135, %v4221
    %v4238 = vsel %vm4206, %v4140, %v4222
    %v4239 = vsel %vm4207, %v4145, %v4223
    %v4240 = vsel %vm4208, %v4150, %v4224
    %v4241 = vsel %vm4209, %v4155, %v4225
    %v4242 = vsel %vm4210, %v4160, %v4226
    %v4243 = vsel %vm4211, %v4165, %v4227
    %v4244 = vsel %vm4212, %v4170, %v4228
    %v4245 = vsel %vm4213, %v4175, %v4229
    %v4246 = vsel %vm4214, %v4180, %v4230
    %v4247 = vsel %vm4215, %v4185, %v4231
    %v4248 = vsel %vm4216, %v4190, %v4232
    %v4249 = vsel %vm4217, %v4195, %v4233
    %v4250 = vsel %vm4218, %v4200, %v4234
    %vm4251 = vcmask 130048
    %v4252 = vsel %vm4251, %v4235, -inf
    %4253 = vmax.xlane.f32.xlu0 %v4252
    %v4254 = vpop.xlane.xlu0 %4253
    %v4255 = vsel %vm4251, %v4236, -inf
    %4256 = vmax.xlane.f32.xlu0 %v4255
    %v4257 = vpop.xlane.xlu0 %4256
    %v4258 = vsel %vm4251, %v4237, -inf
    %4259 = vmax.xlane.f32.xlu0 %v4258
    %v4260 = vpop.xlane.xlu0 %4259
    %v4261 = vsel %vm4251, %v4238, -inf
    %4262 = vmax.xlane.f32.xlu0 %v4261
    %v4263 = vpop.xlane.xlu0 %4262
    %v4264 = vsel %vm4251, %v4239, -inf
    %4265 = vmax.xlane.f32.xlu0 %v4264
    %v4266 = vpop.xlane.xlu0 %4265
    %v4267 = vsel %vm4251, %v4240, -inf
    %4268 = vmax.xlane.f32.xlu0 %v4267
    %v4269 = vpop.xlane.xlu0 %4268
    %v4270 = vsel %vm4251, %v4241, -inf
    %4271 = vmax.xlane.f32.xlu0 %v4270
    %v4272 = vpop.xlane.xlu0 %4271
    %v4273 = vsel %vm4251, %v4242, -inf
    %4274 = vmax.xlane.f32.xlu0 %v4273
    %v4275 = vpop.xlane.xlu0 %4274
    %v4276 = vsel %vm4251, %v4243, -inf
    %4277 = vmax.xlane.f32.xlu0 %v4276
    %v4278 = vpop.xlane.xlu0 %4277
    %v4279 = vsel %vm4251, %v4244, -inf
    %4280 = vmax.xlane.f32.xlu0 %v4279
    %v4281 = vpop.xlane.xlu0 %4280
    %v4282 = vsel %vm4251, %v4245, -inf
    %4283 = vmax.xlane.f32.xlu0 %v4282
    %v4284 = vpop.xlane.xlu0 %4283
    %v4285 = vsel %vm4251, %v4246, -inf
    %4286 = vmax.xlane.f32.xlu0 %v4285
    %v4287 = vpop.xlane.xlu0 %4286
    %v4288 = vsel %vm4251, %v4247, -inf
    %4289 = vmax.xlane.f32.xlu0 %v4288
    %v4290 = vpop.xlane.xlu0 %4289
    %v4291 = vsel %vm4251, %v4248, -inf
    %4292 = vmax.xlane.f32.xlu0 %v4291
    %v4293 = vpop.xlane.xlu0 %4292
    %v4294 = vsel %vm4251, %v4249, -inf
    %4295 = vmax.xlane.f32.xlu0 %v4294
    %v4296 = vpop.xlane.xlu0 %4295
    %v4297 = vsel %vm4251, %v4250, -inf
    %4298 = vmax.xlane.f32.xlu0 %v4297
    %v4299 = vpop.xlane.xlu0 %4298
    %v4300 = vld [vmem:[%s16] sm:$0xff]
    %v4301 = vld [vmem:[%s16 + $0x8] sm:$0xff]
    %v4302 = vld [vmem:[%s17] sm:$0x1]
    %v4304 = vlaneseq
    %v4305 = vshrl.u32 %v4304, 7
    %v4306 = vsub.s32 0, %v4305
    %v4307 = vrot.slane %v4302, %v4306
    %v4325 = vlaneseq
    %v4326 = vand.u32 %v4325, 127
    %v4327 = vlaneseq
    %v4328 = vshrl.u32 %v4327, 7
    %v4329 = vsub.s32 %v4326, %v4328
    %v4330 = vrot.slane %v4254, %v4329
    %v4331 = vadd.s32 %v4326, 4294967288
    %v4332 = vlaneseq
    %v4333 = vshrl.u32 %v4332, 7
    %v4334 = vsub.s32 %v4331, %v4333
    %v4335 = vrot.slane %v4257, %v4334
    %vm4336 = vcmask 130112
    %v4337 = vsel %vm4336, %v4335, %v4330
    %v4338 = vlaneseq
    %v4339 = vshrl.u32 %v4338, 7
    %v4340 = vsub.s32 %v4326, %v4339
    %v4341 = vrot.slane %v4260, %v4340
    %v4342 = vlaneseq
    %v4343 = vshrl.u32 %v4342, 7
    %v4344 = vsub.s32 %v4331, %v4343
    %v4345 = vrot.slane %v4263, %v4344
    %v4346 = vsel %vm4336, %v4345, %v4341
    %v4347 = vlaneseq
    %v4348 = vshrl.u32 %v4347, 7
    %v4349 = vsub.s32 %v4326, %v4348
    %v4350 = vrot.slane %v4266, %v4349
    %v4351 = vlaneseq
    %v4352 = vshrl.u32 %v4351, 7
    %v4353 = vsub.s32 %v4331, %v4352
    %v4354 = vrot.slane %v4269, %v4353
    %v4355 = vsel %vm4336, %v4354, %v4350
    %v4356 = vlaneseq
    %v4357 = vshrl.u32 %v4356, 7
    %v4358 = vsub.s32 %v4326, %v4357
    %v4359 = vrot.slane %v4272, %v4358
    %v4360 = vlaneseq
    %v4361 = vshrl.u32 %v4360, 7
    %v4362 = vsub.s32 %v4331, %v4361
    %v4363 = vrot.slane %v4275, %v4362
    %v4364 = vsel %vm4336, %v4363, %v4359
    %v4365 = vlaneseq
    %v4366 = vshrl.u32 %v4365, 7
    %v4367 = vsub.s32 %v4326, %v4366
    %v4368 = vrot.slane %v4278, %v4367
    %v4369 = vlaneseq
    %v4370 = vshrl.u32 %v4369, 7
    %v4371 = vsub.s32 %v4331, %v4370
    %v4372 = vrot.slane %v4281, %v4371
    %v4373 = vsel %vm4336, %v4372, %v4368
    %v4374 = vlaneseq
    %v4375 = vshrl.u32 %v4374, 7
    %v4376 = vsub.s32 %v4326, %v4375
    %v4377 = vrot.slane %v4284, %v4376
    %v4378 = vlaneseq
    %v4379 = vshrl.u32 %v4378, 7
    %v4380 = vsub.s32 %v4331, %v4379
    %v4381 = vrot.slane %v4287, %v4380
    %v4382 = vsel %vm4336, %v4381, %v4377
    %v4383 = vlaneseq
    %v4384 = vshrl.u32 %v4383, 7
    %v4385 = vsub.s32 %v4326, %v4384
    %v4386 = vrot.slane %v4290, %v4385
    %v4387 = vlaneseq
    %v4388 = vshrl.u32 %v4387, 7
    %v4389 = vsub.s32 %v4331, %v4388
    %v4390 = vrot.slane %v4293, %v4389
    %v4391 = vsel %vm4336, %v4390, %v4386
    %v4392 = vlaneseq
    %v4393 = vshrl.u32 %v4392, 7
    %v4394 = vsub.s32 %v4326, %v4393
    %v4395 = vrot.slane %v4296, %v4394
    %v4396 = vlaneseq
    %v4397 = vshrl.u32 %v4396, 7
    %v4398 = vsub.s32 %v4331, %v4397
    %v4399 = vrot.slane %v4299, %v4398
    %v4400 = vsel %vm4336, %v4399, %v4395
    %vm4401 = vcmask 1041409
    %v4402 = vsel %vm4401, %v4346, %v4337
    %vm4403 = vcmask 1042434
    %v4404 = vsel %vm4403, %v4355, %v4402
    %vm4405 = vcmask 1043459
    %v4406 = vsel %vm4405, %v4364, %v4404
    %vm4407 = vcmask 1044484
    %v4408 = vsel %vm4407, %v4373, %v4406
    %vm4409 = vcmask 1045509
    %v4410 = vsel %vm4409, %v4382, %v4408
    %vm4411 = vcmask 1046534
    %v4412 = vsel %vm4411, %v4391, %v4410
    %vm4413 = vcmask 1047559
    %v4414 = vsel %vm4413, %v4400, %v4412
    %v4415 = vsel %vm4251, %v4414, 0
    %4417 = vmatprep.subr.mxu0 0.0
    %4418 = vmatpush1.msra.mxu0 %v4300
    %4419 = vmatprep.subr.mxu0 0.0
    %4420 = vmatpush1.msra.mxu0 %v4301
    %4421 = vmatprep.subr.mxu0 0.0
    %4422 = vmatpush1.msra.mxu0 0.0
    %4423 = vmatprep.subr.mxu0 0.0
    %4424 = vmatpush1.msra.mxu0 0.0
    %4425 = vmatprep.subr.mxu0 0.0
    %4426 = vmatpush1.msra.mxu0 0.0
    %4427 = vmatprep.subr.mxu0 0.0
    %4428 = vmatpush1.msra.mxu0 0.0
    %4429 = vmatprep.subr.mxu0 0.0
    %4430 = vmatpush1.msra.mxu0 0.0
    %4431 = vmatprep.subr.mxu0 0.0
    %4432 = vmatpush1.msra.mxu0 0.0
    %4433 = vmatprep.subr.mxu0 0.0
    %4434 = vmatpush1.msra.mxu0 0.0
    %4435 = vmatprep.subr.mxu0 0.0
    %4436 = vmatpush1.msra.mxu0 0.0
    %4437 = vmatprep.subr.mxu0 0.0
    %4438 = vmatpush1.msra.mxu0 0.0
    %4439 = vmatprep.subr.mxu0 0.0
    %4440 = vmatpush1.msra.mxu0 0.0
    %4441 = vmatprep.subr.mxu0 0.0
    %4442 = vmatpush1.msra.mxu0 0.0
    %4443 = vmatprep.subr.mxu0 0.0
    %4444 = vmatpush1.msra.mxu0 0.0
    %4445 = vmatprep.subr.mxu0 0.0
    %4446 = vmatpush1.msra.mxu0 0.0
    %4447 = vmatprep.subr.mxu0 0.0
    %4448 = vmatpush1.msra.mxu0 0.0
    %4449 = vmatprep.subr.mxu0 0.0
    %4450 = vmatpush1.msra.mxu0 0.0
    %4451 = vmatprep.subr.mxu0 0.0
    %4452 = vmatpush1.msra.mxu0 0.0
    %4453 = vmatprep.subr.mxu0 0.0
    %4454 = vmatpush1.msra.mxu0 0.0
    %4455 = vmatprep.subr.mxu0 0.0
    %4456 = vmatpush1.msra.mxu0 0.0
    %4457 = vmatprep.subr.mxu0 0.0
    %4458 = vmatpush1.msra.mxu0 0.0
    %4459 = vmatprep.subr.mxu0 0.0
    %4460 = vmatpush1.msra.mxu0 0.0
    %4461 = vmatprep.subr.mxu0 0.0
    %4462 = vmatpush1.msra.mxu0 0.0
    %4463 = vmatprep.subr.mxu0 0.0
    %4464 = vmatpush1.msra.mxu0 0.0
    %4465 = vmatprep.subr.mxu0 0.0
    %4466 = vmatpush1.msra.mxu0 0.0
    %4467 = vmatprep.subr.mxu0 0.0
    %4468 = vmatpush1.msra.mxu0 0.0
    %4469 = vmatprep.subr.mxu0 0.0
    %4470 = vmatpush1.msra.mxu0 0.0
    %4471 = vmatprep.subr.mxu0 0.0
    %4472 = vmatpush1.msra.mxu0 0.0
    %4473 = vmatprep.subr.mxu0 0.0
    %4474 = vmatpush1.msra.mxu0 0.0
    %4475 = vmatprep.subr.mxu0 0.0
    %4476 = vmatpush1.msra.mxu0 0.0
    %4477 = vmatprep.subr.mxu0 0.0
    %4478 = vmatpush1.msra.mxu0 0.0
    %4479 = vmatprep.subr.mxu0 0.0
    %4480 = vmatpush1.msra.mxu0 0.0
    %4481 = vmatprep.mubr.f32.mxu0 0.0
    %4482 = vmatmul.mubr.f32.gmra.mrb[0].mxu0 %v4415
    %v4483 = vpop.f32.mrb[0].mxu0
    %v4484 = vadd.f32 %v4307, %v4483
    %v4485 = vpop.f32.mrb[0].mxu0
    %4486 = vdwg.mxu0
    %vm4487 = vcmp.ge.s32.totalorder %v4326, 3
    %vm4488 = vcmp.gt.f32.partialorder %v4484, 0.0
    %v4489 = vmul.f32 %v4484, 0.01
    %v4490 = vsel %vm4488, %v4484, %v4489
    %v4491 = vsel %vm4487, %v4490, %v4484
    %4492 = vst.msk [vmem:[#allocation8] sm:$0xff] %vm116, %v4491
    // Predicated region
    $region86: #{tpu_custom_call.1} parent=1 // pred_check
      _
    $region87: #{tpu_custom_call.1} parent=1 // pred_check_branch
      %4494 = sbr.rel (0) target = $region89
    $region88: #{tpu_custom_call.1} parent=1 // pred_region
      %s4496 = ssub.s32 128, 128
      %4497 = vsyncadd [#allocation4], %s4496
      %s4499 = sshll.u32 [#allocation8], 4
      %s4500 = int_to_ptr.vmem [resolvable:$true] %s4499
      %4502 = dma.vmem_to_hbm [thread:$0]  %s4500, 128, %s18, [#allocation4]
    $region89: #{tpu_custom_call.1} parent=1 // pred_fallthru
      _
    // Predicated region
    $region90: #{tpu_custom_call.1} parent=1 // pred_check
      _
    $region91: #{tpu_custom_call.1} parent=1 // pred_check_branch
      %4504 = sbr.rel (0) target = $region93
    $region92: #{tpu_custom_call.1} parent=1 // pred_region
      %4505 = dma.done [#allocation4], 128
    $region93: #{tpu_custom_call.1} parent=1 // pred_fallthru
      _
    %4506 = vsyncpa [#allocation3], 1
    %4507 = vsyncpa [#allocation6], 1
    %4508 = vsyncpa [#allocation4], 1

</llo_original>
